<compile_context>
chip_gen: v7x
topology: tpu7x:2x2x1
jax: 0.10.0
libtpu: 0.0.40
codegen_flags: <defaults>
</compile_context>

<pallas_src>
import functools

import jax
import jax.numpy as jnp
from jax.experimental import pallas as pl
from jax.experimental.pallas import tpu as pltpu


LRELU_SLOPE = 0.2
BN_EPS = 1e-5
CONV1_SPLIT = 2   # "parallel" M split for conv1 (feeds both v7x TensorCores)


# ----------------------------------------------------------------------------
# Pallas kernels
# ----------------------------------------------------------------------------
def _mm_bias_lrelu_kernel(x_ref, w_ref, b_ref, o_ref):
    """o = leaky_relu(x @ w + b); bf16 operands, f32 accumulation, bf16 out."""
    acc = jnp.dot(x_ref[...], w_ref[...], preferred_element_type=jnp.float32)
    y = acc + b_ref[...]
    o_ref[...] = jnp.where(y > 0, y, LRELU_SLOPE * y).astype(o_ref.dtype)


def _mm_bn_lrelu_kernel(x_ref, w_ref, b_ref, g_ref, bt_ref, o_ref):
    """o = leaky_relu(BatchNorm(x @ w + b)); BN batch stats computed in-kernel.

    Single grid step: the whole (M, N) conv output lives in vregs/VMEM, so
    the batch mean/variance (centered, f32) are available before anything is
    written -- no HBM round-trip of y and no separate stats/epilogue kernels.
    """
    acc = jnp.dot(x_ref[...], w_ref[...], preferred_element_type=jnp.float32)
    acc = acc + b_ref[...]
    inv_m = 1.0 / acc.shape[0]
    mean = jnp.sum(acc, axis=0, keepdims=True) * inv_m
    cen = acc - mean
    var = jnp.sum(cen * cen, axis=0, keepdims=True) * inv_m      # biased var
    scale = g_ref[...] * jax.lax.rsqrt(var + BN_EPS)
    v = cen * scale + bt_ref[...]
    o_ref[...] = jnp.where(v > 0, v, LRELU_SLOPE * v).astype(o_ref.dtype)


def _mm_bn_lrelu_fc_kernel(x_ref, w_ref, b_ref, g_ref, bt_ref,
                           fcw_ref, fcb_ref, o_ref, *, batch):
    """conv4 + BatchNorm + LeakyReLU + final Linear(out_features=1), fused.

    fcw_ref is the FC weight pre-permuted to [(h*W + w), cout], so the final
    reduce runs directly over the conv-output rows (n, h, w) -- the NCHW
    flatten transpose and the separate FC launch are gone.
    """
    acc = jnp.dot(x_ref[...], w_ref[...], preferred_element_type=jnp.float32)
    acc = acc + b_ref[...]
    inv_m = 1.0 / acc.shape[0]
    mean = jnp.sum(acc, axis=0, keepdims=True) * inv_m
    cen = acc - mean
    var = jnp.sum(cen * cen, axis=0, keepdims=True) * inv_m
    scale = g_ref[...] * jax.lax.rsqrt(var + BN_EPS)
    v = cen * scale + bt_ref[...]
    a = jnp.where(v > 0, v, LRELU_SLOPE * v)                      # [M, cout] f32
    hw = a.shape[0] // batch
    prod = a.reshape(batch, hw, a.shape[1]) * fcw_ref[...]        # [B, hw, cout]
    s = jnp.sum(prod, axis=2)                                     # [B, hw]
    o_ref[...] = jnp.sum(s, axis=1, keepdims=True) + fcb_ref[...]  # [B, 1]


# ----------------------------------------------------------------------------
# pallas_call wrappers
# ----------------------------------------------------------------------------
def _round_up(a, b):
    return (a + b - 1) // b * b


def conv_lrelu(patches, w2d, b):
    """leaky_relu(patches @ w2d + b) -> bf16 [M, N]  (conv1: no BatchNorm)."""
    M, K = patches.shape
    N = w2d.shape[1]
    split = CONV1_SPLIT
    if split < 1 or M % split or (M // split) % 8:
        split = 1
    tm = M // split
    return pl.pallas_call(
        _mm_bias_lrelu_kernel,
        out_shape=jax.ShapeDtypeStruct((M, N), jnp.bfloat16),
        grid=(split,),
        in_specs=[
            pl.BlockSpec((tm, K), lambda i: (i, 0)),
            pl.BlockSpec((K, N), lambda i: (0, 0)),
            pl.BlockSpec((1, N), lambda i: (0, 0)),
        ],
        out_specs=pl.BlockSpec((tm, N), lambda i: (i, 0)),
        compiler_params=pltpu.CompilerParams(dimension_semantics=("parallel",)),
    )(patches, w2d, b.reshape(1, -1))


def conv_bn_lrelu(patches, w2d, b, gamma, beta):
    """Fused conv + BatchNorm(batch stats) + LeakyReLU in one single-step kernel.

    # TODO(synk): production batch sizes (M*K blocks beyond a comfortable VMEM
    # footprint) need M-tiling plus a cross-tile two-pass BN-stats scheme again.
    """
    M, K = patches.shape
    N = w2d.shape[1]
    return pl.pallas_call(
        _mm_bn_lrelu_kernel,
        out_shape=jax.ShapeDtypeStruct((M, N), jnp.bfloat16),
        grid=(1,),
        in_specs=[
            pl.BlockSpec((M, K), lambda i: (0, 0)),
            pl.BlockSpec((K, N), lambda i: (0, 0)),
            pl.BlockSpec((1, N), lambda i: (0, 0)),
            pl.BlockSpec((1, N), lambda i: (0, 0)),
            pl.BlockSpec((1, N), lambda i: (0, 0)),
        ],
        out_specs=pl.BlockSpec((M, N), lambda i: (0, 0)),
    )(patches, w2d, b.reshape(1, -1), gamma.reshape(1, -1), beta.reshape(1, -1))


def conv_bn_lrelu_fc(patches, w2d, b, gamma, beta, fcw, fcb, batch):
    """Fused conv4 + BatchNorm + LeakyReLU + Linear(->1); output [batch, 1] f32."""
    M, K = patches.shape
    N = w2d.shape[1]
    hw = M // batch
    kernel = functools.partial(_mm_bn_lrelu_fc_kernel, batch=batch)
    return pl.pallas_call(
        kernel,
        out_shape=jax.ShapeDtypeStruct((batch, 1), jnp.float32),
        grid=(1,),
        in_specs=[
            pl.BlockSpec((M, K), lambda i: (0, 0)),
            pl.BlockSpec((K, N), lambda i: (0, 0)),
            pl.BlockSpec((1, N), lambda i: (0, 0)),
            pl.BlockSpec((1, N), lambda i: (0, 0)),
            pl.BlockSpec((1, N), lambda i: (0, 0)),
            pl.BlockSpec((hw, N), lambda i: (0, 0)),
            pl.BlockSpec((1, 1), lambda i: (0, 0)),
        ],
        out_specs=pl.BlockSpec((batch, 1), lambda i: (0, 0)),
    )(patches, w2d, b.reshape(1, -1), gamma.reshape(1, -1), beta.reshape(1, -1),
      fcw, fcb.reshape(1, 1))


# ----------------------------------------------------------------------------
# Conv-as-im2col glue (layout plumbing; bf16 to halve HBM traffic)
# ----------------------------------------------------------------------------
# TODO(synk): patch extraction between layers is still XLA glue (16 strided
# slices + concat).  Moving it in-kernel (pixel-shuffled VMEM-resident input
# + static slices), or fusing the whole net into one pallas_call, would remove
# the remaining HBM round-trips of the sub-128-lane activations, but needs
# reshapes/relayouts that Mosaic does not reliably lower at these small
# spatial/channel sizes -- left in XLA for robustness.
def _extract_patches(x_nhwc, k=4, stride=2, pad=1):
    N, H, W, C = x_nhwc.shape
    xp = jnp.pad(x_nhwc, ((0, 0), (pad, pad), (pad, pad), (0, 0)))
    Ho = (H + 2 * pad - k) // stride + 1
    Wo = (W + 2 * pad - k) // stride + 1
    cols = [xp[:, kh:kh + stride * Ho:stride, kw:kw + stride * Wo:stride, :]
            for kh in range(k) for kw in range(k)]
    patches = jnp.concatenate(cols, axis=-1)            # [N,Ho,Wo,k*k*C]
    return patches.reshape(N * Ho * Wo, k * k * C), (N, Ho, Wo)


# ----------------------------------------------------------------------------
# Model
# ----------------------------------------------------------------------------
def init_params(key, ndf=8, input_nc=3):
    chans = [input_nc, ndf, ndf * 2, ndf * 4, ndf * 8]
    keys = jax.random.split(key, 32)
    ki = iter(range(32))
    params = {"convs": [], "bns": []}
    for l in range(4):
        cin, cout = chans[l], chans[l + 1]
        w = 0.02 * jax.random.normal(keys[next(ki)], (4, 4, cin, cout), jnp.float32)
        b = 0.01 * jax.random.normal(keys[next(ki)], (cout,), jnp.float32)
        params["convs"].append((w, b))
        if l >= 1:  # BatchNorm after conv 2,3,4
            gamma = 1.0 + 0.1 * jax.random.normal(keys[next(ki)], (cout,), jnp.float32)
            beta = 0.1 * jax.random.normal(keys[next(ki)], (cout,), jnp.float32)
            params["bns"].append((gamma, beta))
    fin = 4 * 4 * ndf * 8
    params["fc_w"] = 0.02 * jax.random.normal(keys[next(ki)], (fin, 1), jnp.float32)
    params["fc_b"] = 0.01 * jax.random.normal(keys[next(ki)], (1,), jnp.float32)
    return params


@jax.jit
def egan_discriminator_forward(params, x_nchw):
    # NCHW -> NHWC; bf16 matmul operands, f32 accumulation inside the kernels.
    x = jnp.transpose(x_nchw, (0, 2, 3, 1))
    cin = x.shape[-1]
    cin_p = _round_up(cin, 8)            # pad channels so conv1 K = 16*8 = 128
    if cin_p != cin:
        x = jnp.pad(x, ((0, 0), (0, 0), (0, 0), (0, cin_p - cin)))
    x = x.astype(jnp.bfloat16)

    # --- conv1 + LeakyReLU (one kernel, 2-way parallel M split) -------------
    w, b = params["convs"][0]
    if cin_p != cin:                      # zero-pad the matching weight rows
        w = jnp.pad(w, ((0, 0), (0, 0), (0, cin_p - cin), (0, 0)))
    cout = w.shape[-1]
    patches, (N, Ho, Wo) = _extract_patches(x)
    a = conv_lrelu(patches, w.reshape(-1, cout).astype(jnp.bfloat16), b)
    x = a.reshape(N, Ho, Wo, cout)

    # --- conv2 / conv3: conv + BatchNorm + LeakyReLU, one kernel each -------
    for l in (1, 2):
        w, b = params["convs"][l]
        gamma, beta = params["bns"][l - 1]
        cout = w.shape[-1]
        patches, (N, Ho, Wo) = _extract_patches(x)
        a = conv_bn_lrelu(patches, w.reshape(-1, cout).astype(jnp.bfloat16),
                          b, gamma, beta)
        x = a.reshape(N, Ho, Wo, cout)

    # --- conv4 + BatchNorm + LeakyReLU + Linear(->1), one kernel ------------
    w, b = params["convs"][3]
    gamma, beta = params["bns"][2]
    cout = w.shape[-1]
    patches, (N, Ho, Wo) = _extract_patches(x)
    # fc weight is stored in PyTorch's NCHW-flatten order (c*H*W + h*W + w);
    # permute once to [(h*W + w), c] so it lines up with the conv output rows.
    fcw = params["fc_w"].reshape(cout, Ho, Wo).transpose(1, 2, 0).reshape(Ho * Wo, cout)
    out = conv_bn_lrelu_fc(patches, w.reshape(-1, cout).astype(jnp.bfloat16),
                           b, gamma, beta, fcw, params["fc_b"], batch=N)
    return out[:, 0]                      # matches x.squeeze(1)


if __name__ == "__main__":
    NDF = 8          # ndf scaled down for a small synthetic run
    INPUT_NC = 3
    BATCH = 2
    SPATIAL = 64     # the module hard-codes 4*4 after four stride-2 convs

    key = jax.random.PRNGKey(0)
    kp, kx = jax.random.split(key)
    params = init_params(kp, ndf=NDF, input_nc=INPUT_NC)
    x = jax.random.normal(kx, (BATCH, INPUT_NC, SPATIAL, SPATIAL), jnp.float32)

    out = egan_discriminator_forward(params, x)
    out = jax.block_until_ready(out)
    assert out.shape == (BATCH,), out.shape
    assert bool(jnp.all(jnp.isfinite(out)))
    print("KERNEL_OK")
</pallas_src>

<mosaic_0001>
module attributes {stable_mosaic.version = 11 : i64} {
  func.func @_mm_bias_lrelu_kernel(%arg0: i32, %arg1: memref<1024x128xbf16, #tpu.memory_space<vmem>>, %arg2: memref<128x8xbf16, #tpu.memory_space<vmem>>, %arg3: memref<1x8xf32, #tpu.memory_space<vmem>>, %arg4: memref<1024x8xbf16, #tpu.memory_space<vmem>>) attributes {dimension_semantics = [#tpu.dimension_semantics<parallel>], iteration_bounds = array<i64: 2>, scalar_prefetch = 0 : i64, scratch_operands = 0 : i64, tpu.core_type = #tpu.core_type<tc>, window_params = [{transform_indices = @transform_0, window_bounds = array<i64: 1024, 128>}, {pipeline_mode = #tpu.pipeline_mode<synchronous>, transform_indices = @transform_1, window_bounds = array<i64: 128, 8>}, {pipeline_mode = #tpu.pipeline_mode<synchronous>, transform_indices = @transform_2, window_bounds = array<i64: 1, 8>}, {transform_indices = @transform_3, window_bounds = array<i64: 1024, 8>}]} {
    %c0 = arith.constant 0 : index
    %c0_0 = arith.constant 0 : index
    %0 = vector.load %arg1[%c0, %c0_0] : memref<1024x128xbf16, #tpu.memory_space<vmem>>, vector<1024x128xbf16>
    %c0_1 = arith.constant 0 : index
    %c0_2 = arith.constant 0 : index
    %1 = vector.load %arg2[%c0_1, %c0_2] : memref<128x8xbf16, #tpu.memory_space<vmem>>, vector<128x8xbf16>
    %cst = arith.constant dense<0.000000e+00> : vector<1024x8xf32>
    %2 = tpu.matmul %0, %1, %cst {dimension_numbers = #tpu.dot_dimension_numbers<[1], [0], [0], [1], [0, 0, 1, 1], [], []>} : vector<1024x128xbf16>, vector<128x8xbf16>, vector<1024x8xf32> -> vector<1024x8xf32>
    %c0_3 = arith.constant 0 : index
    %c0_4 = arith.constant 0 : index
    %3 = vector.load %arg3[%c0_3, %c0_4] : memref<1x8xf32, #tpu.memory_space<vmem>>, vector<1x8xf32>
    %4 = vector.broadcast %3 : vector<1x8xf32> to vector<1024x8xf32>
    %5 = arith.addf %2, %4 : vector<1024x8xf32>
    %cst_5 = arith.constant 0.000000e+00 : f32
    %6 = vector.broadcast %cst_5 : f32 to vector<1024x8xf32>
    %7 = arith.cmpf ogt, %5, %6 : vector<1024x8xf32>
    %cst_6 = arith.constant 2.000000e-01 : f32
    %8 = vector.broadcast %cst_6 : f32 to vector<1024x8xf32>
    %9 = arith.mulf %8, %5 : vector<1024x8xf32>
    %10 = arith.select %7, %5, %9 : vector<1024x8xi1>, vector<1024x8xf32>
    %11 = arith.truncf %10 : vector<1024x8xf32> to vector<1024x8xbf16>
    %c0_7 = arith.constant 0 : index
    %c0_8 = arith.constant 0 : index
    %12 = vector.load %arg4[%c0_7, %c0_8] : memref<1024x8xbf16, #tpu.memory_space<vmem>>, vector<1024x8xbf16>
    tpu.vector_store %arg4[%c0_7, %c0_8], %11 {strides = array<i32>} : memref<1024x8xbf16, #tpu.memory_space<vmem>>, vector<1024x8xbf16>,
    return
  }
  func.func @transform_0(%arg0: i32) -> (i32, i32) {
    %c0_i32 = arith.constant 0 : i32
    %c0_i32_0 = arith.constant 0 : i32
    return %arg0, %c0_i32 : i32, i32
  }
  func.func @transform_1(%arg0: i32) -> (i32, i32) {
    %c0_i32 = arith.constant 0 : i32
    %c0_i32_0 = arith.constant 0 : i32
    %c0_i32_1 = arith.constant 0 : i32
    return %c0_i32, %c0_i32_0 : i32, i32
  }
  func.func @transform_2(%arg0: i32) -> (i32, i32) {
    %c0_i32 = arith.constant 0 : i32
    %c0_i32_0 = arith.constant 0 : i32
    %c0_i32_1 = arith.constant 0 : i32
    return %c0_i32, %c0_i32_0 : i32, i32
  }
  func.func @transform_3(%arg0: i32) -> (i32, i32) {
    %c0_i32 = arith.constant 0 : i32
    %c0_i32_0 = arith.constant 0 : i32
    return %arg0, %c0_i32 : i32, i32
  }
}

module attributes {stable_mosaic.version = 11 : i64} {
  func.func @_mm_bn_lrelu_kernel(%arg0: i32, %arg1: memref<512x128xbf16, #tpu.memory_space<vmem>>, %arg2: memref<128x16xbf16, #tpu.memory_space<vmem>>, %arg3: memref<1x16xf32, #tpu.memory_space<vmem>>, %arg4: memref<1x16xf32, #tpu.memory_space<vmem>>, %arg5: memref<1x16xf32, #tpu.memory_space<vmem>>, %arg6: memref<512x16xbf16, #tpu.memory_space<vmem>>) attributes {dimension_semantics = [#tpu.dimension_semantics<arbitrary>], iteration_bounds = array<i64: 1>, scalar_prefetch = 0 : i64, scratch_operands = 0 : i64, tpu.core_type = #tpu.core_type<tc>, window_params = [{pipeline_mode = #tpu.pipeline_mode<synchronous>, transform_indices = @transform_0, window_bounds = array<i64: 512, 128>}, {pipeline_mode = #tpu.pipeline_mode<synchronous>, transform_indices = @transform_1, window_bounds = array<i64: 128, 16>}, {pipeline_mode = #tpu.pipeline_mode<synchronous>, transform_indices = @transform_2, window_bounds = array<i64: 1, 16>}, {pipeline_mode = #tpu.pipeline_mode<synchronous>, transform_indices = @transform_3, window_bounds = array<i64: 1, 16>}, {pipeline_mode = #tpu.pipeline_mode<synchronous>, transform_indices = @transform_4, window_bounds = array<i64: 1, 16>}, {pipeline_mode = #tpu.pipeline_mode<synchronous>, transform_indices = @transform_5, window_bounds = array<i64: 512, 16>}]} {
    %c0 = arith.constant 0 : index
    %c0_0 = arith.constant 0 : index
    %0 = vector.load %arg1[%c0, %c0_0] : memref<512x128xbf16, #tpu.memory_space<vmem>>, vector<512x128xbf16>
    %c0_1 = arith.constant 0 : index
    %c0_2 = arith.constant 0 : index
    %1 = vector.load %arg2[%c0_1, %c0_2] : memref<128x16xbf16, #tpu.memory_space<vmem>>, vector<128x16xbf16>
    %cst = arith.constant dense<0.000000e+00> : vector<512x16xf32>
    %2 = tpu.matmul %0, %1, %cst {dimension_numbers = #tpu.dot_dimension_numbers<[1], [0], [0], [1], [0, 0, 1, 1], [], []>} : vector<512x128xbf16>, vector<128x16xbf16>, vector<512x16xf32> -> vector<512x16xf32>
    %c0_3 = arith.constant 0 : index
    %c0_4 = arith.constant 0 : index
    %3 = vector.load %arg3[%c0_3, %c0_4] : memref<1x16xf32, #tpu.memory_space<vmem>>, vector<1x16xf32>
    %4 = vector.broadcast %3 : vector<1x16xf32> to vector<512x16xf32>
    %5 = arith.addf %2, %4 : vector<512x16xf32>
    %cst_5 = arith.constant dense<0.000000e+00> : vector<16xf32>
    %6 = vector.multi_reduction <add>, %5, %cst_5 [0] : vector<512x16xf32> to vector<16xf32>
    %7 = vector.shape_cast %6 : vector<16xf32> to vector<1x16xf32>
    %cst_6 = arith.constant 0.001953125 : f32
    %8 = vector.broadcast %cst_6 : f32 to vector<1x16xf32>
    %9 = arith.mulf %7, %8 : vector<1x16xf32>
    %10 = vector.broadcast %9 : vector<1x16xf32> to vector<512x16xf32>
    %11 = arith.subf %5, %10 : vector<512x16xf32>
    %12 = arith.mulf %11, %11 : vector<512x16xf32>
    %cst_7 = arith.constant dense<0.000000e+00> : vector<16xf32>
    %13 = vector.multi_reduction <add>, %12, %cst_7 [0] : vector<512x16xf32> to vector<16xf32>
    %14 = vector.shape_cast %13 : vector<16xf32> to vector<1x16xf32>
    %cst_8 = arith.constant 0.001953125 : f32
    %15 = vector.broadcast %cst_8 : f32 to vector<1x16xf32>
    %16 = arith.mulf %14, %15 : vector<1x16xf32>
    %c0_9 = arith.constant 0 : index
    %c0_10 = arith.constant 0 : index
    %17 = vector.load %arg4[%c0_9, %c0_10] : memref<1x16xf32, #tpu.memory_space<vmem>>, vector<1x16xf32>
    %cst_11 = arith.constant 9.99999974E-6 : f32
    %18 = vector.broadcast %cst_11 : f32 to vector<1x16xf32>
    %19 = arith.addf %16, %18 : vector<1x16xf32>
    %20 = math.rsqrt %19 : vector<1x16xf32>
    %21 = arith.mulf %17, %20 : vector<1x16xf32>
    %22 = vector.broadcast %21 : vector<1x16xf32> to vector<512x16xf32>
    %23 = arith.mulf %11, %22 : vector<512x16xf32>
    %c0_12 = arith.constant 0 : index
    %c0_13 = arith.constant 0 : index
    %24 = vector.load %arg5[%c0_12, %c0_13] : memref<1x16xf32, #tpu.memory_space<vmem>>, vector<1x16xf32>
    %25 = vector.broadcast %24 : vector<1x16xf32> to vector<512x16xf32>
    %26 = arith.addf %23, %25 : vector<512x16xf32>
    %cst_14 = arith.constant 0.000000e+00 : f32
    %27 = vector.broadcast %cst_14 : f32 to vector<512x16xf32>
    %28 = arith.cmpf ogt, %26, %27 : vector<512x16xf32>
    %cst_15 = arith.constant 2.000000e-01 : f32
    %29 = vector.broadcast %cst_15 : f32 to vector<512x16xf32>
    %30 = arith.mulf %29, %26 : vector<512x16xf32>
    %31 = arith.select %28, %26, %30 : vector<512x16xi1>, vector<512x16xf32>
    %32 = arith.truncf %31 : vector<512x16xf32> to vector<512x16xbf16>
    %c0_16 = arith.constant 0 : index
    %c0_17 = arith.constant 0 : index
    %33 = vector.load %arg6[%c0_16, %c0_17] : memref<512x16xbf16, #tpu.memory_space<vmem>>, vector<512x16xbf16>
    tpu.vector_store %arg6[%c0_16, %c0_17], %32 {strides = array<i32>} : memref<512x16xbf16, #tpu.memory_space<vmem>>, vector<512x16xbf16>,
    return
  }
  func.func @transform_0(%arg0: i32) -> (i32, i32) {
    %c0_i32 = arith.constant 0 : i32
    %c0_i32_0 = arith.constant 0 : i32
    %c0_i32_1 = arith.constant 0 : i32
    return %c0_i32, %c0_i32_0 : i32, i32
  }
  func.func @transform_1(%arg0: i32) -> (i32, i32) {
    %c0_i32 = arith.constant 0 : i32
    %c0_i32_0 = arith.constant 0 : i32
    %c0_i32_1 = arith.constant 0 : i32
    return %c0_i32, %c0_i32_0 : i32, i32
  }
  func.func @transform_2(%arg0: i32) -> (i32, i32) {
    %c0_i32 = arith.constant 0 : i32
    %c0_i32_0 = arith.constant 0 : i32
    %c0_i32_1 = arith.constant 0 : i32
    return %c0_i32, %c0_i32_0 : i32, i32
  }
  func.func @transform_3(%arg0: i32) -> (i32, i32) {
    %c0_i32 = arith.constant 0 : i32
    %c0_i32_0 = arith.constant 0 : i32
    %c0_i32_1 = arith.constant 0 : i32
    return %c0_i32, %c0_i32_0 : i32, i32
  }
  func.func @transform_4(%arg0: i32) -> (i32, i32) {
    %c0_i32 = arith.constant 0 : i32
    %c0_i32_0 = arith.constant 0 : i32
    %c0_i32_1 = arith.constant 0 : i32
    return %c0_i32, %c0_i32_0 : i32, i32
  }
  func.func @transform_5(%arg0: i32) -> (i32, i32) {
    %c0_i32 = arith.constant 0 : i32
    %c0_i32_0 = arith.constant 0 : i32
    %c0_i32_1 = arith.constant 0 : i32
    return %c0_i32, %c0_i32_0 : i32, i32
  }
}

module attributes {stable_mosaic.version = 11 : i64} {
  func.func @_mm_bn_lrelu_kernel(%arg0: i32, %arg1: memref<128x256xbf16, #tpu.memory_space<vmem>>, %arg2: memref<256x32xbf16, #tpu.memory_space<vmem>>, %arg3: memref<1x32xf32, #tpu.memory_space<vmem>>, %arg4: memref<1x32xf32, #tpu.memory_space<vmem>>, %arg5: memref<1x32xf32, #tpu.memory_space<vmem>>, %arg6: memref<128x32xbf16, #tpu.memory_space<vmem>>) attributes {dimension_semantics = [#tpu.dimension_semantics<arbitrary>], iteration_bounds = array<i64: 1>, scalar_prefetch = 0 : i64, scratch_operands = 0 : i64, tpu.core_type = #tpu.core_type<tc>, window_params = [{pipeline_mode = #tpu.pipeline_mode<synchronous>, transform_indices = @transform_0, window_bounds = array<i64: 128, 256>}, {pipeline_mode = #tpu.pipeline_mode<synchronous>, transform_indices = @transform_1, window_bounds = array<i64: 256, 32>}, {pipeline_mode = #tpu.pipeline_mode<synchronous>, transform_indices = @transform_2, window_bounds = array<i64: 1, 32>}, {pipeline_mode = #tpu.pipeline_mode<synchronous>, transform_indices = @transform_3, window_bounds = array<i64: 1, 32>}, {pipeline_mode = #tpu.pipeline_mode<synchronous>, transform_indices = @transform_4, window_bounds = array<i64: 1, 32>}, {pipeline_mode = #tpu.pipeline_mode<synchronous>, transform_indices = @transform_5, window_bounds = array<i64: 128, 32>}]} {
    %c0 = arith.constant 0 : index
    %c0_0 = arith.constant 0 : index
    %0 = vector.load %arg1[%c0, %c0_0] : memref<128x256xbf16, #tpu.memory_space<vmem>>, vector<128x256xbf16>
    %c0_1 = arith.constant 0 : index
    %c0_2 = arith.constant 0 : index
    %1 = vector.load %arg2[%c0_1, %c0_2] : memref<256x32xbf16, #tpu.memory_space<vmem>>, vector<256x32xbf16>
    %cst = arith.constant dense<0.000000e+00> : vector<128x32xf32>
    %2 = tpu.matmul %0, %1, %cst {dimension_numbers = #tpu.dot_dimension_numbers<[1], [0], [0], [1], [0, 0, 1, 1], [], []>} : vector<128x256xbf16>, vector<256x32xbf16>, vector<128x32xf32> -> vector<128x32xf32>
    %c0_3 = arith.constant 0 : index
    %c0_4 = arith.constant 0 : index
    %3 = vector.load %arg3[%c0_3, %c0_4] : memref<1x32xf32, #tpu.memory_space<vmem>>, vector<1x32xf32>
    %4 = vector.broadcast %3 : vector<1x32xf32> to vector<128x32xf32>
    %5 = arith.addf %2, %4 : vector<128x32xf32>
    %cst_5 = arith.constant dense<0.000000e+00> : vector<32xf32>
    %6 = vector.multi_reduction <add>, %5, %cst_5 [0] : vector<128x32xf32> to vector<32xf32>
    %7 = vector.shape_cast %6 : vector<32xf32> to vector<1x32xf32>
    %cst_6 = arith.constant 7.812500e-03 : f32
    %8 = vector.broadcast %cst_6 : f32 to vector<1x32xf32>
    %9 = arith.mulf %7, %8 : vector<1x32xf32>
    %10 = vector.broadcast %9 : vector<1x32xf32> to vector<128x32xf32>
    %11 = arith.subf %5, %10 : vector<128x32xf32>
    %12 = arith.mulf %11, %11 : vector<128x32xf32>
    %cst_7 = arith.constant dense<0.000000e+00> : vector<32xf32>
    %13 = vector.multi_reduction <add>, %12, %cst_7 [0] : vector<128x32xf32> to vector<32xf32>
    %14 = vector.shape_cast %13 : vector<32xf32> to vector<1x32xf32>
    %cst_8 = arith.constant 7.812500e-03 : f32
    %15 = vector.broadcast %cst_8 : f32 to vector<1x32xf32>
    %16 = arith.mulf %14, %15 : vector<1x32xf32>
    %c0_9 = arith.constant 0 : index
    %c0_10 = arith.constant 0 : index
    %17 = vector.load %arg4[%c0_9, %c0_10] : memref<1x32xf32, #tpu.memory_space<vmem>>, vector<1x32xf32>
    %cst_11 = arith.constant 9.99999974E-6 : f32
    %18 = vector.broadcast %cst_11 : f32 to vector<1x32xf32>
    %19 = arith.addf %16, %18 : vector<1x32xf32>
    %20 = math.rsqrt %19 : vector<1x32xf32>
    %21 = arith.mulf %17, %20 : vector<1x32xf32>
    %22 = vector.broadcast %21 : vector<1x32xf32> to vector<128x32xf32>
    %23 = arith.mulf %11, %22 : vector<128x32xf32>
    %c0_12 = arith.constant 0 : index
    %c0_13 = arith.constant 0 : index
    %24 = vector.load %arg5[%c0_12, %c0_13] : memref<1x32xf32, #tpu.memory_space<vmem>>, vector<1x32xf32>
    %25 = vector.broadcast %24 : vector<1x32xf32> to vector<128x32xf32>
    %26 = arith.addf %23, %25 : vector<128x32xf32>
    %cst_14 = arith.constant 0.000000e+00 : f32
    %27 = vector.broadcast %cst_14 : f32 to vector<128x32xf32>
    %28 = arith.cmpf ogt, %26, %27 : vector<128x32xf32>
    %cst_15 = arith.constant 2.000000e-01 : f32
    %29 = vector.broadcast %cst_15 : f32 to vector<128x32xf32>
    %30 = arith.mulf %29, %26 : vector<128x32xf32>
    %31 = arith.select %28, %26, %30 : vector<128x32xi1>, vector<128x32xf32>
    %32 = arith.truncf %31 : vector<128x32xf32> to vector<128x32xbf16>
    %c0_16 = arith.constant 0 : index
    %c0_17 = arith.constant 0 : index
    %33 = vector.load %arg6[%c0_16, %c0_17] : memref<128x32xbf16, #tpu.memory_space<vmem>>, vector<128x32xbf16>
    tpu.vector_store %arg6[%c0_16, %c0_17], %32 {strides = array<i32>} : memref<128x32xbf16, #tpu.memory_space<vmem>>, vector<128x32xbf16>,
    return
  }
  func.func @transform_0(%arg0: i32) -> (i32, i32) {
    %c0_i32 = arith.constant 0 : i32
    %c0_i32_0 = arith.constant 0 : i32
    %c0_i32_1 = arith.constant 0 : i32
    return %c0_i32, %c0_i32_0 : i32, i32
  }
  func.func @transform_1(%arg0: i32) -> (i32, i32) {
    %c0_i32 = arith.constant 0 : i32
    %c0_i32_0 = arith.constant 0 : i32
    %c0_i32_1 = arith.constant 0 : i32
    return %c0_i32, %c0_i32_0 : i32, i32
  }
  func.func @transform_2(%arg0: i32) -> (i32, i32) {
    %c0_i32 = arith.constant 0 : i32
    %c0_i32_0 = arith.constant 0 : i32
    %c0_i32_1 = arith.constant 0 : i32
    return %c0_i32, %c0_i32_0 : i32, i32
  }
  func.func @transform_3(%arg0: i32) -> (i32, i32) {
    %c0_i32 = arith.constant 0 : i32
    %c0_i32_0 = arith.constant 0 : i32
    %c0_i32_1 = arith.constant 0 : i32
    return %c0_i32, %c0_i32_0 : i32, i32
  }
  func.func @transform_4(%arg0: i32) -> (i32, i32) {
    %c0_i32 = arith.constant 0 : i32
    %c0_i32_0 = arith.constant 0 : i32
    %c0_i32_1 = arith.constant 0 : i32
    return %c0_i32, %c0_i32_0 : i32, i32
  }
  func.func @transform_5(%arg0: i32) -> (i32, i32) {
    %c0_i32 = arith.constant 0 : i32
    %c0_i32_0 = arith.constant 0 : i32
    %c0_i32_1 = arith.constant 0 : i32
    return %c0_i32, %c0_i32_0 : i32, i32
  }
}

module attributes {stable_mosaic.version = 11 : i64} {
  func.func @_mm_bn_lrelu_fc_kernel(%arg0: i32, %arg1: memref<32x512xbf16, #tpu.memory_space<vmem>>, %arg2: memref<512x64xbf16, #tpu.memory_space<vmem>>, %arg3: memref<1x64xf32, #tpu.memory_space<vmem>>, %arg4: memref<1x64xf32, #tpu.memory_space<vmem>>, %arg5: memref<1x64xf32, #tpu.memory_space<vmem>>, %arg6: memref<16x64xf32, #tpu.memory_space<vmem>>, %arg7: memref<1x1xf32, #tpu.memory_space<vmem>>, %arg8: memref<2x1xf32, #tpu.memory_space<vmem>>) attributes {dimension_semantics = [#tpu.dimension_semantics<arbitrary>], iteration_bounds = array<i64: 1>, scalar_prefetch = 0 : i64, scratch_operands = 0 : i64, tpu.core_type = #tpu.core_type<tc>, window_params = [{pipeline_mode = #tpu.pipeline_mode<synchronous>, transform_indices = @transform_0, window_bounds = array<i64: 32, 512>}, {pipeline_mode = #tpu.pipeline_mode<synchronous>, transform_indices = @transform_1, window_bounds = array<i64: 512, 64>}, {pipeline_mode = #tpu.pipeline_mode<synchronous>, transform_indices = @transform_2, window_bounds = array<i64: 1, 64>}, {pipeline_mode = #tpu.pipeline_mode<synchronous>, transform_indices = @transform_3, window_bounds = array<i64: 1, 64>}, {pipeline_mode = #tpu.pipeline_mode<synchronous>, transform_indices = @transform_4, window_bounds = array<i64: 1, 64>}, {pipeline_mode = #tpu.pipeline_mode<synchronous>, transform_indices = @transform_5, window_bounds = array<i64: 16, 64>}, {pipeline_mode = #tpu.pipeline_mode<synchronous>, transform_indices = @transform_6, window_bounds = array<i64: 1, 1>}, {pipeline_mode = #tpu.pipeline_mode<synchronous>, transform_indices = @transform_7, window_bounds = array<i64: 2, 1>}]} {
    %c0 = arith.constant 0 : index
    %c0_0 = arith.constant 0 : index
    %0 = vector.load %arg1[%c0, %c0_0] : memref<32x512xbf16, #tpu.memory_space<vmem>>, vector<32x512xbf16>
    %c0_1 = arith.constant 0 : index
    %c0_2 = arith.constant 0 : index
    %1 = vector.load %arg2[%c0_1, %c0_2] : memref<512x64xbf16, #tpu.memory_space<vmem>>, vector<512x64xbf16>
    %cst = arith.constant dense<0.000000e+00> : vector<32x64xf32>
    %2 = tpu.matmul %0, %1, %cst {dimension_numbers = #tpu.dot_dimension_numbers<[1], [0], [0], [1], [0, 0, 1, 1], [], []>} : vector<32x512xbf16>, vector<512x64xbf16>, vector<32x64xf32> -> vector<32x64xf32>
    %c0_3 = arith.constant 0 : index
    %c0_4 = arith.constant 0 : index
    %3 = vector.load %arg3[%c0_3, %c0_4] : memref<1x64xf32, #tpu.memory_space<vmem>>, vector<1x64xf32>
    %4 = vector.broadcast %3 : vector<1x64xf32> to vector<32x64xf32>
    %5 = arith.addf %2, %4 : vector<32x64xf32>
    %cst_5 = arith.constant dense<0.000000e+00> : vector<64xf32>
    %6 = vector.multi_reduction <add>, %5, %cst_5 [0] : vector<32x64xf32> to vector<64xf32>
    %7 = vector.shape_cast %6 : vector<64xf32> to vector<1x64xf32>
    %cst_6 = arith.constant 3.125000e-02 : f32
    %8 = vector.broadcast %cst_6 : f32 to vector<1x64xf32>
    %9 = arith.mulf %7, %8 : vector<1x64xf32>
    %10 = vector.broadcast %9 : vector<1x64xf32> to vector<32x64xf32>
    %11 = arith.subf %5, %10 : vector<32x64xf32>
    %12 = arith.mulf %11, %11 : vector<32x64xf32>
    %cst_7 = arith.constant dense<0.000000e+00> : vector<64xf32>
    %13 = vector.multi_reduction <add>, %12, %cst_7 [0] : vector<32x64xf32> to vector<64xf32>
    %14 = vector.shape_cast %13 : vector<64xf32> to vector<1x64xf32>
    %cst_8 = arith.constant 3.125000e-02 : f32
    %15 = vector.broadcast %cst_8 : f32 to vector<1x64xf32>
    %16 = arith.mulf %14, %15 : vector<1x64xf32>
    %c0_9 = arith.constant 0 : index
    %c0_10 = arith.constant 0 : index
    %17 = vector.load %arg4[%c0_9, %c0_10] : memref<1x64xf32, #tpu.memory_space<vmem>>, vector<1x64xf32>
    %cst_11 = arith.constant 9.99999974E-6 : f32
    %18 = vector.broadcast %cst_11 : f32 to vector<1x64xf32>
    %19 = arith.addf %16, %18 : vector<1x64xf32>
    %20 = math.rsqrt %19 : vector<1x64xf32>
    %21 = arith.mulf %17, %20 : vector<1x64xf32>
    %22 = vector.broadcast %21 : vector<1x64xf32> to vector<32x64xf32>
    %23 = arith.mulf %11, %22 : vector<32x64xf32>
    %c0_12 = arith.constant 0 : index
    %c0_13 = arith.constant 0 : index
    %24 = vector.load %arg5[%c0_12, %c0_13] : memref<1x64xf32, #tpu.memory_space<vmem>>, vector<1x64xf32>
    %25 = vector.broadcast %24 : vector<1x64xf32> to vector<32x64xf32>
    %26 = arith.addf %23, %25 : vector<32x64xf32>
    %cst_14 = arith.constant 0.000000e+00 : f32
    %27 = vector.broadcast %cst_14 : f32 to vector<32x64xf32>
    %28 = arith.cmpf ogt, %26, %27 : vector<32x64xf32>
    %cst_15 = arith.constant 2.000000e-01 : f32
    %29 = vector.broadcast %cst_15 : f32 to vector<32x64xf32>
    %30 = arith.mulf %29, %26 : vector<32x64xf32>
    %31 = arith.select %28, %26, %30 : vector<32x64xi1>, vector<32x64xf32>
    %32 = vector.shape_cast %31 : vector<32x64xf32> to vector<2x16x64xf32>
    %c0_16 = arith.constant 0 : index
    %c0_17 = arith.constant 0 : index
    %33 = vector.load %arg6[%c0_16, %c0_17] : memref<16x64xf32, #tpu.memory_space<vmem>>, vector<16x64xf32>
    %34 = vector.shape_cast %33 : vector<16x64xf32> to vector<1x16x64xf32>
    %35 = vector.broadcast %34 : vector<1x16x64xf32> to vector<2x16x64xf32>
    %36 = arith.mulf %32, %35 : vector<2x16x64xf32>
    %cst_18 = arith.constant dense<0.000000e+00> : vector<2x16xf32>
    %37 = vector.multi_reduction <add>, %36, %cst_18 [2] : vector<2x16x64xf32> to vector<2x16xf32>
    %cst_19 = arith.constant dense<0.000000e+00> : vector<2xf32>
    %38 = vector.multi_reduction <add>, %37, %cst_19 [1] : vector<2x16xf32> to vector<2xf32>
    %39 = vector.shape_cast %38 : vector<2xf32> to vector<2x1xf32>
    %c0_20 = arith.constant 0 : index
    %c0_21 = arith.constant 0 : index
    %40 = vector.load %arg7[%c0_20, %c0_21] : memref<1x1xf32, #tpu.memory_space<vmem>>, vector<1x1xf32>
    %41 = vector.broadcast %40 : vector<1x1xf32> to vector<2x1xf32>
    %42 = arith.addf %39, %41 : vector<2x1xf32>
    %c0_22 = arith.constant 0 : index
    %c0_23 = arith.constant 0 : index
    %43 = vector.load %arg8[%c0_22, %c0_23] : memref<2x1xf32, #tpu.memory_space<vmem>>, vector<2x1xf32>
    tpu.vector_store %arg8[%c0_22, %c0_23], %42 {strides = array<i32>} : memref<2x1xf32, #tpu.memory_space<vmem>>, vector<2x1xf32>,
    return
  }
  func.func @transform_0(%arg0: i32) -> (i32, i32) {
    %c0_i32 = arith.constant 0 : i32
    %c0_i32_0 = arith.constant 0 : i32
    %c0_i32_1 = arith.constant 0 : i32
    return %c0_i32, %c0_i32_0 : i32, i32
  }
  func.func @transform_1(%arg0: i32) -> (i32, i32) {
    %c0_i32 = arith.constant 0 : i32
    %c0_i32_0 = arith.constant 0 : i32
    %c0_i32_1 = arith.constant 0 : i32
    return %c0_i32, %c0_i32_0 : i32, i32
  }
  func.func @transform_2(%arg0: i32) -> (i32, i32) {
    %c0_i32 = arith.constant 0 : i32
    %c0_i32_0 = arith.constant 0 : i32
    %c0_i32_1 = arith.constant 0 : i32
    return %c0_i32, %c0_i32_0 : i32, i32
  }
  func.func @transform_3(%arg0: i32) -> (i32, i32) {
    %c0_i32 = arith.constant 0 : i32
    %c0_i32_0 = arith.constant 0 : i32
    %c0_i32_1 = arith.constant 0 : i32
    return %c0_i32, %c0_i32_0 : i32, i32
  }
  func.func @transform_4(%arg0: i32) -> (i32, i32) {
    %c0_i32 = arith.constant 0 : i32
    %c0_i32_0 = arith.constant 0 : i32
    %c0_i32_1 = arith.constant 0 : i32
    return %c0_i32, %c0_i32_0 : i32, i32
  }
  func.func @transform_5(%arg0: i32) -> (i32, i32) {
    %c0_i32 = arith.constant 0 : i32
    %c0_i32_0 = arith.constant 0 : i32
    %c0_i32_1 = arith.constant 0 : i32
    return %c0_i32, %c0_i32_0 : i32, i32
  }
  func.func @transform_6(%arg0: i32) -> (i32, i32) {
    %c0_i32 = arith.constant 0 : i32
    %c0_i32_0 = arith.constant 0 : i32
    %c0_i32_1 = arith.constant 0 : i32
    return %c0_i32, %c0_i32_0 : i32, i32
  }
  func.func @transform_7(%arg0: i32) -> (i32, i32) {
    %c0_i32 = arith.constant 0 : i32
    %c0_i32_0 = arith.constant 0 : i32
    %c0_i32_1 = arith.constant 0 : i32
    return %c0_i32, %c0_i32_0 : i32, i32
  }
}

</mosaic_0001>

<llo_original>
// kernel: egan_discriminator_forward.4
$region0: #{egan_discriminator_forward.4}
  #allocation0 [shape = 'u32[]', space=smem, size = 0x4, offset = 0x4, fixed_abs, tag = 'smem constant byte address 0x4 - core index']
  #allocation1 [shape = 'u32[144,128]{1,0:T(1,128)}', space=vmem, size = 0x12000, scoped, tag = 'internal scratch']
  %s0 = inlined_call_operand.vmem [shape: bf16[2048,128], index: 0, kind: input, shape index: {}]
  %s1 = inlined_call_operand.vmem [shape: bf16[128,8], index: 1, kind: input, shape index: {}]
  %s2 = inlined_call_operand.vmem [shape: f32[1,8], index: 2, kind: input, shape index: {}]
  %s3 = inlined_call_operand.vmem [shape: bf16[2048,8], index: 3, kind: output, shape index: {}]
  %s4 = sld [smem:[#allocation0]]
  $region45: #{egan_discriminator_forward.4} parent=0
    _
  %s6 = ssub.s32 1, %s4
  %s7 = scalar_select 0, %s6, %s4
  loop: start=0, step=1, limit=4
  $region2: #{egan_discriminator_forward.4} parent=0 // loop_pre_header
    _
  $region3: #{egan_discriminator_forward.4} parent=0 // loop_header
    %s9 = sphi 0, %s13
    %p10 = scmp.ge.s32.totalorder %s9, 4
    %s19 = sphi 0, %s21
    %s22 = sphi 0, %s19
    %s23 = sphi 0, %s22
    %s39 = sphi 0, %s23
    %s43 = sphi 0, %s43
    %s45 = sphi 0, %s43
    %s46 = sphi 0, %s45
    %s60 = sphi 0, %s46
    %s64 = sphi 0, %s64
    %s66 = sphi 0, %s64
    %s67 = sphi 0, %s66
    %s81 = sphi 0, %s67
    %s87 = sphi 0, %s89
    %s90 = sphi 0, %s87
    %s91 = sphi 0, %s90
    %s107 = sphi 0, %s91
  $region4: #{egan_discriminator_forward.4} parent=0 // loop_header_branch
    %12 = sbr.rel (%p10) target = $region8
  $region5: #{egan_discriminator_forward.4} parent=0 // loop_body
    %s14 = ssub.s32 %s9, 1
    %s15 = ssub.s32 %s9, 2
    %s16 = sadd.s32 %s9, 1
    %s17 = ssub.s32 %s9, %s16
    %p18 = scmp.eq.s32.totalorder %s17, 0
    %s20 = sadd.s32 %s19, 1
    %s21 = scalar_select %p18, %s19, %s20
    %p24 = pneg %p18
    %p25 = scmp.eq.s32.totalorder %s9, 1
    %p26 = por %p24, %p25
    %p27 = scmp.ne.s32.totalorder %s19, %s22
    %p28 = scmp.eq.s32.totalorder %s9, 0
    %p29 = por %p27, %p28
    %p30 = scmp.ne.s32.totalorder %s19, %s22
    %p31 = scmp.eq.s32.totalorder %s14, 1
    %p32 = por %p30, %p31
    %p33 = scmp.ne.s32.totalorder %s22, %s23
    %p34 = scmp.eq.s32.totalorder %s14, 0
    %p35 = por %p33, %p34
    %p36 = scmp.ne.s32.totalorder %s22, %s23
    %p37 = scmp.eq.s32.totalorder %s15, 1
    %p38 = por %p36, %p37
    %p40 = scmp.ne.s32.totalorder %s23, %s39
    %p41 = scmp.eq.s32.totalorder %s15, 0
    %p42 = por %p40, %p41
    %s44 = sadd.s32 %s43, 1
    %p47 = scmp.eq.s32.totalorder %s9, 1
    %p48 = scmp.ne.s32.totalorder %s43, %s45
    %p49 = scmp.eq.s32.totalorder %s9, 0
    %p50 = por %p48, %p49
    %p51 = scmp.ne.s32.totalorder %s43, %s45
    %p52 = scmp.eq.s32.totalorder %s14, 1
    %p53 = por %p51, %p52
    %p54 = scmp.ne.s32.totalorder %s45, %s46
    %p55 = scmp.eq.s32.totalorder %s14, 0
    %p56 = por %p54, %p55
    %p57 = scmp.ne.s32.totalorder %s45, %s46
    %p58 = scmp.eq.s32.totalorder %s15, 1
    %p59 = por %p57, %p58
    %p61 = scmp.ne.s32.totalorder %s46, %s60
    %p62 = scmp.eq.s32.totalorder %s15, 0
    %p63 = por %p61, %p62
    %s65 = sadd.s32 %s64, 1
    %p68 = scmp.eq.s32.totalorder %s9, 1
    %p69 = scmp.ne.s32.totalorder %s64, %s66
    %p70 = scmp.eq.s32.totalorder %s9, 0
    %p71 = por %p69, %p70
    %p72 = scmp.ne.s32.totalorder %s64, %s66
    %p73 = scmp.eq.s32.totalorder %s14, 1
    %p74 = por %p72, %p73
    %p75 = scmp.ne.s32.totalorder %s66, %s67
    %p76 = scmp.eq.s32.totalorder %s14, 0
    %p77 = por %p75, %p76
    %p78 = scmp.ne.s32.totalorder %s66, %s67
    %p79 = scmp.eq.s32.totalorder %s15, 1
    %p80 = por %p78, %p79
    %p82 = scmp.ne.s32.totalorder %s67, %s81
    %p83 = scmp.eq.s32.totalorder %s15, 0
    %p84 = por %p82, %p83
    %s85 = ssub.s32 %s9, %s16
    %p86 = scmp.eq.s32.totalorder %s85, 0
    %s88 = sadd.s32 %s87, 1
    %s89 = scalar_select %p86, %s87, %s88
    %p92 = pneg %p86
    %p93 = scmp.eq.s32.totalorder %s9, 1
    %p94 = por %p92, %p93
    %p95 = scmp.ne.s32.totalorder %s87, %s90
    %p96 = scmp.eq.s32.totalorder %s9, 0
    %p97 = por %p95, %p96
    %p98 = scmp.ne.s32.totalorder %s87, %s90
    %p99 = scmp.eq.s32.totalorder %s14, 1
    %p100 = por %p98, %p99
    %p101 = scmp.ne.s32.totalorder %s90, %s91
    %p102 = scmp.eq.s32.totalorder %s14, 0
    %p103 = por %p101, %p102
    %p104 = scmp.ne.s32.totalorder %s90, %s91
    %p105 = scmp.eq.s32.totalorder %s15, 1
    %p106 = por %p104, %p105
    %p108 = scmp.ne.s32.totalorder %s91, %s107
    %p109 = scmp.eq.s32.totalorder %s15, 0
    %p110 = por %p108, %p109
    %p111 = scmp.le.s32.totalorder 1, %s9
    %p112 = scmp.lt.s32.totalorder %s9, 3
    %p113 = pnand %p111, %p112
    %p114 = pneg %p113
    // Predicated region
    $region9: #{egan_discriminator_forward.4} parent=5 // pred_check
      _
    $region10: #{egan_discriminator_forward.4} parent=5 // pred_check_branch
      %116 = sbr.rel (%p113) target = $region12
    $region11: #{egan_discriminator_forward.4} parent=5 // pred_region
      %s117 = ssub.s32 %s9, 1
      // Predicated region
      $region13: #{egan_discriminator_forward.4} parent=11 // pred_check
        %p118 = pneg %p56
      $region14: #{egan_discriminator_forward.4} parent=11 // pred_check_branch
        %120 = sbr.rel (%p118) target = $region16
      $region15: #{egan_discriminator_forward.4} parent=11 // pred_region
        _
      $region16: #{egan_discriminator_forward.4} parent=11 // pred_fallthru
        _
      // Predicated region
      $region17: #{egan_discriminator_forward.4} parent=11 // pred_check
        %p121 = pneg %p77
      $region18: #{egan_discriminator_forward.4} parent=11 // pred_check_branch
        %123 = sbr.rel (%p121) target = $region20
      $region19: #{egan_discriminator_forward.4} parent=11 // pred_region
        _
      $region20: #{egan_discriminator_forward.4} parent=11 // pred_fallthru
        _
    $region12: #{egan_discriminator_forward.4} parent=5 // pred_fallthru
      _
    %p124 = scmp.lt.s32.totalorder %s9, 2
    // Predicated region
    $region21: #{egan_discriminator_forward.4} parent=5 // pred_check
      %p125 = pneg %p124
    $region22: #{egan_discriminator_forward.4} parent=5 // pred_check_branch
      %127 = sbr.rel (%p125) target = $region24
    $region23: #{egan_discriminator_forward.4} parent=5 // pred_region
      // Predicated region
      $region25: #{egan_discriminator_forward.4} parent=23 // pred_check
        %p128 = pneg %p29
      $region26: #{egan_discriminator_forward.4} parent=23 // pred_check_branch
        %130 = sbr.rel (%p128) target = $region28
      $region27: #{egan_discriminator_forward.4} parent=23 // pred_region
        %s131 = smul.u32 128, %s9
        %p132 = scmp.lt.s32.totalorder %s131, 255
        %s133 = scalar_select %p132, %s131, 255
        %s134 = smul.addr %s133, 4
        %s135 = scalar_lea.vmem %s0, %s134
        %s136 = smul.u32 128, %s9
      $region28: #{egan_discriminator_forward.4} parent=23 // pred_fallthru
        _
    $region24: #{egan_discriminator_forward.4} parent=5 // pred_fallthru
      _
    %p137 = scmp.le.s32.totalorder 1, %s9
    %p138 = scmp.lt.s32.totalorder %s9, 3
    %p139 = pnand %p137, %p138
    %p140 = pneg %p139
    // Predicated region
    $region29: #{egan_discriminator_forward.4} parent=5 // pred_check
      _
    $region30: #{egan_discriminator_forward.4} parent=5 // pred_check_branch
      %142 = sbr.rel (%p139) target = $region32
    $region31: #{egan_discriminator_forward.4} parent=5 // pred_region
      %s143 = ssub.s32 %s9, 1
      %s144 = smul.u32 128, %s14
      %p145 = scmp.lt.s32.totalorder %s144, 255
      %s146 = scalar_select %p145, %s144, 255
      %s147 = smul.addr %s146, 4
      %s148 = scalar_lea.vmem %s0, %s147
      %p149 = pneg %p35
      %p150 = pneg %p32
      %p151 = pneg %p56
      %p152 = pneg %p53
      %p153 = pneg %p77
      %p154 = pneg %p74
      %p155 = pneg %p103
      %p156 = pneg %p100
      %s157 = smul.u32 128, %s14
      %p158 = scmp.lt.s32.totalorder %s157, 255
      %s159 = scalar_select %p158, %s157, 255
      %s160 = smul.addr %s159, 4
      %s161 = scalar_lea.vmem %s3, %s160
      %s162 = smul.u32 128, %s14
      %p163 = scmp.lt.s32.totalorder %s162, 255
      %s164 = scalar_select %p163, %s162, 255
      %s165 = smul.addr %s164, 4
      %s166 = scalar_lea.vmem %s0, %s165
      %s167 = smul.u32 128, %s14
      %s168 = smul.u32 128, %s14
      %p169 = scmp.lt.s32.totalorder %s168, 255
      %s170 = scalar_select %p169, %s168, 255
      %s171 = smul.addr %s170, 4
      %s172 = scalar_lea.vmem %s3, %s171
      %s173 = smul.u32 128, %s14
      %v175 = vld [vmem:[%s166] sm:$0xf]
      %v176 = vld [vmem:[%s166 + $0x4] sm:$0xf]
      %v177 = vld [vmem:[%s166 + $0x8] sm:$0xf]
      %v178 = vld [vmem:[%s166 + $0xc] sm:$0xf]
      %v179 = vld [vmem:[%s166 + $0x10] sm:$0xf]
      %v180 = vld [vmem:[%s166 + $0x14] sm:$0xf]
      %v181 = vld [vmem:[%s166 + $0x18] sm:$0xf]
      %v182 = vld [vmem:[%s166 + $0x1c] sm:$0xf]
      %v183 = vld [vmem:[%s166 + $0x20] sm:$0xf]
      %v184 = vld [vmem:[%s166 + $0x24] sm:$0xf]
      %v185 = vld [vmem:[%s166 + $0x28] sm:$0xf]
      %v186 = vld [vmem:[%s166 + $0x2c] sm:$0xf]
      %v187 = vld [vmem:[%s166 + $0x30] sm:$0xf]
      %v188 = vld [vmem:[%s166 + $0x34] sm:$0xf]
      %v189 = vld [vmem:[%s166 + $0x38] sm:$0xf]
      %v190 = vld [vmem:[%s166 + $0x3c] sm:$0xf]
      %v191 = vld [vmem:[%s166 + $0x40] sm:$0xf]
      %v192 = vld [vmem:[%s166 + $0x44] sm:$0xf]
      %v193 = vld [vmem:[%s166 + $0x48] sm:$0xf]
      %v194 = vld [vmem:[%s166 + $0x4c] sm:$0xf]
      %v195 = vld [vmem:[%s166 + $0x50] sm:$0xf]
      %v196 = vld [vmem:[%s166 + $0x54] sm:$0xf]
      %v197 = vld [vmem:[%s166 + $0x58] sm:$0xf]
      %v198 = vld [vmem:[%s166 + $0x5c] sm:$0xf]
      %v199 = vld [vmem:[%s166 + $0x60] sm:$0xf]
      %v200 = vld [vmem:[%s166 + $0x64] sm:$0xf]
      %v201 = vld [vmem:[%s166 + $0x68] sm:$0xf]
      %v202 = vld [vmem:[%s166 + $0x6c] sm:$0xf]
      %v203 = vld [vmem:[%s166 + $0x70] sm:$0xf]
      %v204 = vld [vmem:[%s166 + $0x74] sm:$0xf]
      %v205 = vld [vmem:[%s166 + $0x78] sm:$0xf]
      %v206 = vld [vmem:[%s166 + $0x7c] sm:$0xf]
      %v207 = vld [vmem:[%s166 + $0x80] sm:$0xf]
      %v208 = vld [vmem:[%s166 + $0x84] sm:$0xf]
      %v209 = vld [vmem:[%s166 + $0x88] sm:$0xf]
      %v210 = vld [vmem:[%s166 + $0x8c] sm:$0xf]
      %v211 = vld [vmem:[%s166 + $0x90] sm:$0xf]
      %v212 = vld [vmem:[%s166 + $0x94] sm:$0xf]
      %v213 = vld [vmem:[%s166 + $0x98] sm:$0xf]
      %v214 = vld [vmem:[%s166 + $0x9c] sm:$0xf]
      %v215 = vld [vmem:[%s166 + $0xa0] sm:$0xf]
      %v216 = vld [vmem:[%s166 + $0xa4] sm:$0xf]
      %v217 = vld [vmem:[%s166 + $0xa8] sm:$0xf]
      %v218 = vld [vmem:[%s166 + $0xac] sm:$0xf]
      %v219 = vld [vmem:[%s166 + $0xb0] sm:$0xf]
      %v220 = vld [vmem:[%s166 + $0xb4] sm:$0xf]
      %v221 = vld [vmem:[%s166 + $0xb8] sm:$0xf]
      %v222 = vld [vmem:[%s166 + $0xbc] sm:$0xf]
      %v223 = vld [vmem:[%s166 + $0xc0] sm:$0xf]
      %v224 = vld [vmem:[%s166 + $0xc4] sm:$0xf]
      %v225 = vld [vmem:[%s166 + $0xc8] sm:$0xf]
      %v226 = vld [vmem:[%s166 + $0xcc] sm:$0xf]
      %v227 = vld [vmem:[%s166 + $0xd0] sm:$0xf]
      %v228 = vld [vmem:[%s166 + $0xd4] sm:$0xf]
      %v229 = vld [vmem:[%s166 + $0xd8] sm:$0xf]
      %v230 = vld [vmem:[%s166 + $0xdc] sm:$0xf]
      %v231 = vld [vmem:[%s166 + $0xe0] sm:$0xf]
      %v232 = vld [vmem:[%s166 + $0xe4] sm:$0xf]
      %v233 = vld [vmem:[%s166 + $0xe8] sm:$0xf]
      %v234 = vld [vmem:[%s166 + $0xec] sm:$0xf]
      %v235 = vld [vmem:[%s166 + $0xf0] sm:$0xf]
      %v236 = vld [vmem:[%s166 + $0xf4] sm:$0xf]
      %v237 = vld [vmem:[%s166 + $0xf8] sm:$0xf]
      %v238 = vld [vmem:[%s166 + $0xfc] sm:$0xf]
      %v239 = vld [vmem:[%s166 + $0x100] sm:$0xf]
      %v240 = vld [vmem:[%s166 + $0x104] sm:$0xf]
      %v241 = vld [vmem:[%s166 + $0x108] sm:$0xf]
      %v242 = vld [vmem:[%s166 + $0x10c] sm:$0xf]
      %v243 = vld [vmem:[%s166 + $0x110] sm:$0xf]
      %v244 = vld [vmem:[%s166 + $0x114] sm:$0xf]
      %v245 = vld [vmem:[%s166 + $0x118] sm:$0xf]
      %v246 = vld [vmem:[%s166 + $0x11c] sm:$0xf]
      %v247 = vld [vmem:[%s166 + $0x120] sm:$0xf]
      %v248 = vld [vmem:[%s166 + $0x124] sm:$0xf]
      %v249 = vld [vmem:[%s166 + $0x128] sm:$0xf]
      %v250 = vld [vmem:[%s166 + $0x12c] sm:$0xf]
      %v251 = vld [vmem:[%s166 + $0x130] sm:$0xf]
      %v252 = vld [vmem:[%s166 + $0x134] sm:$0xf]
      %v253 = vld [vmem:[%s166 + $0x138] sm:$0xf]
      %v254 = vld [vmem:[%s166 + $0x13c] sm:$0xf]
      %v255 = vld [vmem:[%s166 + $0x140] sm:$0xf]
      %v256 = vld [vmem:[%s166 + $0x144] sm:$0xf]
      %v257 = vld [vmem:[%s166 + $0x148] sm:$0xf]
      %v258 = vld [vmem:[%s166 + $0x14c] sm:$0xf]
      %v259 = vld [vmem:[%s166 + $0x150] sm:$0xf]
      %v260 = vld [vmem:[%s166 + $0x154] sm:$0xf]
      %v261 = vld [vmem:[%s166 + $0x158] sm:$0xf]
      %v262 = vld [vmem:[%s166 + $0x15c] sm:$0xf]
      %v263 = vld [vmem:[%s166 + $0x160] sm:$0xf]
      %v264 = vld [vmem:[%s166 + $0x164] sm:$0xf]
      %v265 = vld [vmem:[%s166 + $0x168] sm:$0xf]
      %v266 = vld [vmem:[%s166 + $0x16c] sm:$0xf]
      %v267 = vld [vmem:[%s166 + $0x170] sm:$0xf]
      %v268 = vld [vmem:[%s166 + $0x174] sm:$0xf]
      %v269 = vld [vmem:[%s166 + $0x178] sm:$0xf]
      %v270 = vld [vmem:[%s166 + $0x17c] sm:$0xf]
      %v271 = vld [vmem:[%s166 + $0x180] sm:$0xf]
      %v272 = vld [vmem:[%s166 + $0x184] sm:$0xf]
      %v273 = vld [vmem:[%s166 + $0x188] sm:$0xf]
      %v274 = vld [vmem:[%s166 + $0x18c] sm:$0xf]
      %v275 = vld [vmem:[%s166 + $0x190] sm:$0xf]
      %v276 = vld [vmem:[%s166 + $0x194] sm:$0xf]
      %v277 = vld [vmem:[%s166 + $0x198] sm:$0xf]
      %v278 = vld [vmem:[%s166 + $0x19c] sm:$0xf]
      %v279 = vld [vmem:[%s166 + $0x1a0] sm:$0xf]
      %v280 = vld [vmem:[%s166 + $0x1a4] sm:$0xf]
      %v281 = vld [vmem:[%s166 + $0x1a8] sm:$0xf]
      %v282 = vld [vmem:[%s166 + $0x1ac] sm:$0xf]
      %v283 = vld [vmem:[%s166 + $0x1b0] sm:$0xf]
      %v284 = vld [vmem:[%s166 + $0x1b4] sm:$0xf]
      %v285 = vld [vmem:[%s166 + $0x1b8] sm:$0xf]
      %v286 = vld [vmem:[%s166 + $0x1bc] sm:$0xf]
      %v287 = vld [vmem:[%s166 + $0x1c0] sm:$0xf]
      %v288 = vld [vmem:[%s166 + $0x1c4] sm:$0xf]
      %v289 = vld [vmem:[%s166 + $0x1c8] sm:$0xf]
      %v290 = vld [vmem:[%s166 + $0x1cc] sm:$0xf]
      %v291 = vld [vmem:[%s166 + $0x1d0] sm:$0xf]
      %v292 = vld [vmem:[%s166 + $0x1d4] sm:$0xf]
      %v293 = vld [vmem:[%s166 + $0x1d8] sm:$0xf]
      %v294 = vld [vmem:[%s166 + $0x1dc] sm:$0xf]
      %v295 = vld [vmem:[%s166 + $0x1e0] sm:$0xf]
      %v296 = vld [vmem:[%s166 + $0x1e4] sm:$0xf]
      %v297 = vld [vmem:[%s166 + $0x1e8] sm:$0xf]
      %v298 = vld [vmem:[%s166 + $0x1ec] sm:$0xf]
      %v299 = vld [vmem:[%s166 + $0x1f0] sm:$0xf]
      %v300 = vld [vmem:[%s166 + $0x1f4] sm:$0xf]
      %v301 = vld [vmem:[%s166 + $0x1f8] sm:$0xf]
      %v302 = vld [vmem:[%s166 + $0x1fc] sm:$0xf]
      %v303 = vld [vmem:[%s1] sm:$0xf]
      %v304 = vld [vmem:[%s1 + $0x4] sm:$0xf]
      %v305 = vld [vmem:[%s1 + $0x8] sm:$0xf]
      %v306 = vld [vmem:[%s1 + $0xc] sm:$0xf]
      %v307 = vld [vmem:[%s1 + $0x10] sm:$0xf]
      %v308 = vld [vmem:[%s1 + $0x14] sm:$0xf]
      %v309 = vld [vmem:[%s1 + $0x18] sm:$0xf]
      %v310 = vld [vmem:[%s1 + $0x1c] sm:$0xf]
      %v311 = vld [vmem:[%s1 + $0x20] sm:$0xf]
      %v312 = vld [vmem:[%s1 + $0x24] sm:$0xf]
      %v313 = vld [vmem:[%s1 + $0x28] sm:$0xf]
      %v314 = vld [vmem:[%s1 + $0x2c] sm:$0xf]
      %v315 = vld [vmem:[%s1 + $0x30] sm:$0xf]
      %v316 = vld [vmem:[%s1 + $0x34] sm:$0xf]
      %v317 = vld [vmem:[%s1 + $0x38] sm:$0xf]
      %v318 = vld [vmem:[%s1 + $0x3c] sm:$0xf]
      %v319 = vld [vmem:[%s2] sm:$0x1]
      %v321 = vlaneseq
      %v322 = vshrl.u32 %v321, 7
      %v323 = vsub.s32 0, %v322
      %v324 = vrot.slane %v319, %v323
      %v454 = vunpack.c.l.b16 %v175
      %v455 = vunpack.c.l.b16 %v176
      %v456 = vunpack.c.l.b16 %v177
      %v457 = vunpack.c.l.b16 %v178
      %v458 = vunpack.c.l.b16 %v179
      %v459 = vunpack.c.l.b16 %v180
      %v460 = vunpack.c.l.b16 %v181
      %v461 = vunpack.c.l.b16 %v182
      %v462 = vunpack.c.l.b16 %v183
      %v463 = vunpack.c.l.b16 %v184
      %v464 = vunpack.c.l.b16 %v185
      %v465 = vunpack.c.l.b16 %v186
      %v466 = vunpack.c.l.b16 %v187
      %v467 = vunpack.c.l.b16 %v188
      %v468 = vunpack.c.l.b16 %v189
      %v469 = vunpack.c.l.b16 %v190
      %v470 = vunpack.c.l.b16 %v191
      %v471 = vunpack.c.l.b16 %v192
      %v472 = vunpack.c.l.b16 %v193
      %v473 = vunpack.c.l.b16 %v194
      %v474 = vunpack.c.l.b16 %v195
      %v475 = vunpack.c.l.b16 %v196
      %v476 = vunpack.c.l.b16 %v197
      %v477 = vunpack.c.l.b16 %v198
      %v478 = vunpack.c.l.b16 %v199
      %v479 = vunpack.c.l.b16 %v200
      %v480 = vunpack.c.l.b16 %v201
      %v481 = vunpack.c.l.b16 %v202
      %v482 = vunpack.c.l.b16 %v203
      %v483 = vunpack.c.l.b16 %v204
      %v484 = vunpack.c.l.b16 %v205
      %v485 = vunpack.c.l.b16 %v206
      %v486 = vunpack.c.l.b16 %v207
      %v487 = vunpack.c.l.b16 %v208
      %v488 = vunpack.c.l.b16 %v209
      %v489 = vunpack.c.l.b16 %v210
      %v490 = vunpack.c.l.b16 %v211
      %v491 = vunpack.c.l.b16 %v212
      %v492 = vunpack.c.l.b16 %v213
      %v493 = vunpack.c.l.b16 %v214
      %v494 = vunpack.c.l.b16 %v215
      %v495 = vunpack.c.l.b16 %v216
      %v496 = vunpack.c.l.b16 %v217
      %v497 = vunpack.c.l.b16 %v218
      %v498 = vunpack.c.l.b16 %v219
      %v499 = vunpack.c.l.b16 %v220
      %v500 = vunpack.c.l.b16 %v221
      %v501 = vunpack.c.l.b16 %v222
      %v502 = vunpack.c.l.b16 %v223
      %v503 = vunpack.c.l.b16 %v224
      %v504 = vunpack.c.l.b16 %v225
      %v505 = vunpack.c.l.b16 %v226
      %v506 = vunpack.c.l.b16 %v227
      %v507 = vunpack.c.l.b16 %v228
      %v508 = vunpack.c.l.b16 %v229
      %v509 = vunpack.c.l.b16 %v230
      %v510 = vunpack.c.l.b16 %v231
      %v511 = vunpack.c.l.b16 %v232
      %v512 = vunpack.c.l.b16 %v233
      %v513 = vunpack.c.l.b16 %v234
      %v514 = vunpack.c.l.b16 %v235
      %v515 = vunpack.c.l.b16 %v236
      %v516 = vunpack.c.l.b16 %v237
      %v517 = vunpack.c.l.b16 %v238
      %v518 = vunpack.c.l.b16 %v239
      %v519 = vunpack.c.l.b16 %v240
      %v520 = vunpack.c.l.b16 %v241
      %v521 = vunpack.c.l.b16 %v242
      %v522 = vunpack.c.l.b16 %v243
      %v523 = vunpack.c.l.b16 %v244
      %v524 = vunpack.c.l.b16 %v245
      %v525 = vunpack.c.l.b16 %v246
      %v526 = vunpack.c.l.b16 %v247
      %v527 = vunpack.c.l.b16 %v248
      %v528 = vunpack.c.l.b16 %v249
      %v529 = vunpack.c.l.b16 %v250
      %v530 = vunpack.c.l.b16 %v251
      %v531 = vunpack.c.l.b16 %v252
      %v532 = vunpack.c.l.b16 %v253
      %v533 = vunpack.c.l.b16 %v254
      %v534 = vunpack.c.l.b16 %v255
      %v535 = vunpack.c.l.b16 %v256
      %v536 = vunpack.c.l.b16 %v257
      %v537 = vunpack.c.l.b16 %v258
      %v538 = vunpack.c.l.b16 %v259
      %v539 = vunpack.c.l.b16 %v260
      %v540 = vunpack.c.l.b16 %v261
      %v541 = vunpack.c.l.b16 %v262
      %v542 = vunpack.c.l.b16 %v263
      %v543 = vunpack.c.l.b16 %v264
      %v544 = vunpack.c.l.b16 %v265
      %v545 = vunpack.c.l.b16 %v266
      %v546 = vunpack.c.l.b16 %v267
      %v547 = vunpack.c.l.b16 %v268
      %v548 = vunpack.c.l.b16 %v269
      %v549 = vunpack.c.l.b16 %v270
      %v550 = vunpack.c.l.b16 %v271
      %v551 = vunpack.c.l.b16 %v272
      %v552 = vunpack.c.l.b16 %v273
      %v553 = vunpack.c.l.b16 %v274
      %v554 = vunpack.c.l.b16 %v275
      %v555 = vunpack.c.l.b16 %v276
      %v556 = vunpack.c.l.b16 %v277
      %v557 = vunpack.c.l.b16 %v278
      %v558 = vunpack.c.l.b16 %v279
      %v559 = vunpack.c.l.b16 %v280
      %v560 = vunpack.c.l.b16 %v281
      %v561 = vunpack.c.l.b16 %v282
      %v562 = vunpack.c.l.b16 %v283
      %v563 = vunpack.c.l.b16 %v284
      %v564 = vunpack.c.l.b16 %v285
      %v565 = vunpack.c.l.b16 %v286
      %v566 = vunpack.c.l.b16 %v287
      %v567 = vunpack.c.l.b16 %v288
      %v568 = vunpack.c.l.b16 %v289
      %v569 = vunpack.c.l.b16 %v290
      %v570 = vunpack.c.l.b16 %v291
      %v571 = vunpack.c.l.b16 %v292
      %v572 = vunpack.c.l.b16 %v293
      %v573 = vunpack.c.l.b16 %v294
      %v574 = vunpack.c.l.b16 %v295
      %v575 = vunpack.c.l.b16 %v296
      %v576 = vunpack.c.l.b16 %v297
      %v577 = vunpack.c.l.b16 %v298
      %v578 = vunpack.c.l.b16 %v299
      %v579 = vunpack.c.l.b16 %v300
      %v580 = vunpack.c.l.b16 %v301
      %v581 = vunpack.c.l.b16 %v302
      %v582 = vpack.c.b16 %v455, %v454
      %v583 = vpack.c.b16 %v457, %v456
      %v584 = vpack.c.b16 %v459, %v458
      %v585 = vpack.c.b16 %v461, %v460
      %v586 = vpack.c.b16 %v463, %v462
      %v587 = vpack.c.b16 %v465, %v464
      %v588 = vpack.c.b16 %v467, %v466
      %v589 = vpack.c.b16 %v469, %v468
      %v590 = vpack.c.b16 %v471, %v470
      %v591 = vpack.c.b16 %v473, %v472
      %v592 = vpack.c.b16 %v475, %v474
      %v593 = vpack.c.b16 %v477, %v476
      %v594 = vpack.c.b16 %v479, %v478
      %v595 = vpack.c.b16 %v481, %v480
      %v596 = vpack.c.b16 %v483, %v482
      %v597 = vpack.c.b16 %v485, %v484
      %v598 = vpack.c.b16 %v487, %v486
      %v599 = vpack.c.b16 %v489, %v488
      %v600 = vpack.c.b16 %v491, %v490
      %v601 = vpack.c.b16 %v493, %v492
      %v602 = vpack.c.b16 %v495, %v494
      %v603 = vpack.c.b16 %v497, %v496
      %v604 = vpack.c.b16 %v499, %v498
      %v605 = vpack.c.b16 %v501, %v500
      %v606 = vpack.c.b16 %v503, %v502
      %v607 = vpack.c.b16 %v505, %v504
      %v608 = vpack.c.b16 %v507, %v506
      %v609 = vpack.c.b16 %v509, %v508
      %v610 = vpack.c.b16 %v511, %v510
      %v611 = vpack.c.b16 %v513, %v512
      %v612 = vpack.c.b16 %v515, %v514
      %v613 = vpack.c.b16 %v517, %v516
      %v614 = vpack.c.b16 %v519, %v518
      %v615 = vpack.c.b16 %v521, %v520
      %v616 = vpack.c.b16 %v523, %v522
      %v617 = vpack.c.b16 %v525, %v524
      %v618 = vpack.c.b16 %v527, %v526
      %v619 = vpack.c.b16 %v529, %v528
      %v620 = vpack.c.b16 %v531, %v530
      %v621 = vpack.c.b16 %v533, %v532
      %v622 = vpack.c.b16 %v535, %v534
      %v623 = vpack.c.b16 %v537, %v536
      %v624 = vpack.c.b16 %v539, %v538
      %v625 = vpack.c.b16 %v541, %v540
      %v626 = vpack.c.b16 %v543, %v542
      %v627 = vpack.c.b16 %v545, %v544
      %v628 = vpack.c.b16 %v547, %v546
      %v629 = vpack.c.b16 %v549, %v548
      %v630 = vpack.c.b16 %v551, %v550
      %v631 = vpack.c.b16 %v553, %v552
      %v632 = vpack.c.b16 %v555, %v554
      %v633 = vpack.c.b16 %v557, %v556
      %v634 = vpack.c.b16 %v559, %v558
      %v635 = vpack.c.b16 %v561, %v560
      %v636 = vpack.c.b16 %v563, %v562
      %v637 = vpack.c.b16 %v565, %v564
      %v638 = vpack.c.b16 %v567, %v566
      %v639 = vpack.c.b16 %v569, %v568
      %v640 = vpack.c.b16 %v571, %v570
      %v641 = vpack.c.b16 %v573, %v572
      %v642 = vpack.c.b16 %v575, %v574
      %v643 = vpack.c.b16 %v577, %v576
      %v644 = vpack.c.b16 %v579, %v578
      %v645 = vpack.c.b16 %v581, %v580
      %v726 = vunpack.c.l.b16 %v303
      %v727 = vunpack.c.l.b16 %v304
      %v728 = vunpack.c.l.b16 %v305
      %v729 = vunpack.c.l.b16 %v306
      %v730 = vunpack.c.l.b16 %v307
      %v731 = vunpack.c.l.b16 %v308
      %v732 = vunpack.c.l.b16 %v309
      %v733 = vunpack.c.l.b16 %v310
      %v734 = vunpack.c.l.b16 %v311
      %v735 = vunpack.c.l.b16 %v312
      %v736 = vunpack.c.l.b16 %v313
      %v737 = vunpack.c.l.b16 %v314
      %v738 = vunpack.c.l.b16 %v315
      %v739 = vunpack.c.l.b16 %v316
      %v740 = vunpack.c.l.b16 %v317
      %v741 = vunpack.c.l.b16 %v318
      %v742 = vpack.c.b16 %v727, %v726
      %v743 = vpack.c.b16 %v729, %v728
      %v744 = vpack.c.b16 %v731, %v730
      %v745 = vpack.c.b16 %v733, %v732
      %v746 = vpack.c.b16 %v735, %v734
      %v747 = vpack.c.b16 %v737, %v736
      %v748 = vpack.c.b16 %v739, %v738
      %v749 = vpack.c.b16 %v741, %v740
      %758 = vmatprep.subr.bf16.mxu0 0
      %759 = vmatpush1.bf16.msra.mxu0 %v742
      %760 = vmatprep.subr.bf16.mxu0 0
      %761 = vmatpush1.bf16.msra.mxu0 %v743
      %762 = vmatprep.subr.bf16.mxu0 0
      %763 = vmatpush1.bf16.msra.mxu0 %v744
      %764 = vmatprep.subr.bf16.mxu0 0
      %765 = vmatpush1.bf16.msra.mxu0 %v745
      %766 = vmatprep.subr.bf16.mxu0 0
      %767 = vmatpush1.bf16.msra.mxu0 %v746
      %768 = vmatprep.subr.bf16.mxu0 0
      %769 = vmatpush1.bf16.msra.mxu0 %v747
      %770 = vmatprep.subr.bf16.mxu0 0
      %771 = vmatpush1.bf16.msra.mxu0 %v748
      %772 = vmatprep.subr.bf16.mxu0 0
      %773 = vmatpush1.bf16.msra.mxu0 %v749
      %774 = vmatprep.subr.bf16.mxu0 0
      %775 = vmatpush1.bf16.msra.mxu0 0
      %776 = vmatprep.subr.bf16.mxu0 0
      %777 = vmatpush1.bf16.msra.mxu0 0
      %778 = vmatprep.subr.bf16.mxu0 0
      %779 = vmatpush1.bf16.msra.mxu0 0
      %780 = vmatprep.subr.bf16.mxu0 0
      %781 = vmatpush1.bf16.msra.mxu0 0
      %782 = vmatprep.subr.bf16.mxu0 0
      %783 = vmatpush1.bf16.msra.mxu0 0
      %784 = vmatprep.subr.bf16.mxu0 0
      %785 = vmatpush1.bf16.msra.mxu0 0
      %786 = vmatprep.subr.bf16.mxu0 0
      %787 = vmatpush1.bf16.msra.mxu0 0
      %788 = vmatprep.subr.bf16.mxu0 0
      %789 = vmatpush1.bf16.msra.mxu0 0
      %790 = vmatprep.mubr.bf16.mxu0 0
      %791 = vmatmul.mubr.bf16.gmra.mrb[0].mxu0 %v582
      %v792 = vpop.f32.mrb[0].mxu0
      %v793 = vadd.f32 %v324, %v792
      %v794 = vpop.f32.mrb[0].mxu0
      %v795 = vpop.f32.mrb[0].mxu0
      %v796 = vadd.f32 %v324, %v795
      %v797 = vpop.f32.mrb[0].mxu0
      %798 = vmatprep.mubr.bf16.mxu0 0
      %799 = vmatmul.mubr.bf16.gmra.mrb[0].mxu0 %v583
      %v800 = vpop.f32.mrb[0].mxu0
      %v801 = vadd.f32 %v324, %v800
      %v802 = vpop.f32.mrb[0].mxu0
      %v803 = vpop.f32.mrb[0].mxu0
      %v804 = vadd.f32 %v324, %v803
      %v805 = vpop.f32.mrb[0].mxu0
      %806 = vmatprep.mubr.bf16.mxu0 0
      %807 = vmatmul.mubr.bf16.gmra.mrb[0].mxu0 %v584
      %v808 = vpop.f32.mrb[0].mxu0
      %v809 = vadd.f32 %v324, %v808
      %v810 = vpop.f32.mrb[0].mxu0
      %v811 = vpop.f32.mrb[0].mxu0
      %v812 = vadd.f32 %v324, %v811
      %v813 = vpop.f32.mrb[0].mxu0
      %814 = vmatprep.mubr.bf16.mxu0 0
      %815 = vmatmul.mubr.bf16.gmra.mrb[0].mxu0 %v585
      %v816 = vpop.f32.mrb[0].mxu0
      %v817 = vadd.f32 %v324, %v816
      %v818 = vpop.f32.mrb[0].mxu0
      %v819 = vpop.f32.mrb[0].mxu0
      %v820 = vadd.f32 %v324, %v819
      %v821 = vpop.f32.mrb[0].mxu0
      %822 = vmatprep.mubr.bf16.mxu0 0
      %823 = vmatmul.mubr.bf16.gmra.mrb[0].mxu0 %v586
      %v824 = vpop.f32.mrb[0].mxu0
      %v825 = vadd.f32 %v324, %v824
      %v826 = vpop.f32.mrb[0].mxu0
      %v827 = vpop.f32.mrb[0].mxu0
      %v828 = vadd.f32 %v324, %v827
      %v829 = vpop.f32.mrb[0].mxu0
      %830 = vmatprep.mubr.bf16.mxu0 0
      %831 = vmatmul.mubr.bf16.gmra.mrb[0].mxu0 %v587
      %v832 = vpop.f32.mrb[0].mxu0
      %v833 = vadd.f32 %v324, %v832
      %v834 = vpop.f32.mrb[0].mxu0
      %v835 = vpop.f32.mrb[0].mxu0
      %v836 = vadd.f32 %v324, %v835
      %v837 = vpop.f32.mrb[0].mxu0
      %838 = vmatprep.mubr.bf16.mxu0 0
      %839 = vmatmul.mubr.bf16.gmra.mrb[0].mxu0 %v588
      %v840 = vpop.f32.mrb[0].mxu0
      %v841 = vadd.f32 %v324, %v840
      %v842 = vpop.f32.mrb[0].mxu0
      %v843 = vpop.f32.mrb[0].mxu0
      %v844 = vadd.f32 %v324, %v843
      %v845 = vpop.f32.mrb[0].mxu0
      %846 = vmatprep.mubr.bf16.mxu0 0
      %847 = vmatmul.mubr.bf16.gmra.mrb[0].mxu0 %v589
      %v848 = vpop.f32.mrb[0].mxu0
      %v849 = vadd.f32 %v324, %v848
      %v850 = vpop.f32.mrb[0].mxu0
      %v851 = vpop.f32.mrb[0].mxu0
      %v852 = vadd.f32 %v324, %v851
      %v853 = vpop.f32.mrb[0].mxu0
      %854 = vmatprep.mubr.bf16.mxu0 0
      %855 = vmatmul.mubr.bf16.gmra.mrb[0].mxu0 %v590
      %v856 = vpop.f32.mrb[0].mxu0
      %v857 = vadd.f32 %v324, %v856
      %v858 = vpop.f32.mrb[0].mxu0
      %v859 = vpop.f32.mrb[0].mxu0
      %v860 = vadd.f32 %v324, %v859
      %v861 = vpop.f32.mrb[0].mxu0
      %862 = vmatprep.mubr.bf16.mxu0 0
      %863 = vmatmul.mubr.bf16.gmra.mrb[0].mxu0 %v591
      %v864 = vpop.f32.mrb[0].mxu0
      %v865 = vadd.f32 %v324, %v864
      %v866 = vpop.f32.mrb[0].mxu0
      %v867 = vpop.f32.mrb[0].mxu0
      %v868 = vadd.f32 %v324, %v867
      %v869 = vpop.f32.mrb[0].mxu0
      %870 = vmatprep.mubr.bf16.mxu0 0
      %871 = vmatmul.mubr.bf16.gmra.mrb[0].mxu0 %v592
      %v872 = vpop.f32.mrb[0].mxu0
      %v873 = vadd.f32 %v324, %v872
      %v874 = vpop.f32.mrb[0].mxu0
      %v875 = vpop.f32.mrb[0].mxu0
      %v876 = vadd.f32 %v324, %v875
      %v877 = vpop.f32.mrb[0].mxu0
      %878 = vmatprep.mubr.bf16.mxu0 0
      %879 = vmatmul.mubr.bf16.gmra.mrb[0].mxu0 %v593
      %v880 = vpop.f32.mrb[0].mxu0
      %v881 = vadd.f32 %v324, %v880
      %v882 = vpop.f32.mrb[0].mxu0
      %v883 = vpop.f32.mrb[0].mxu0
      %v884 = vadd.f32 %v324, %v883
      %v885 = vpop.f32.mrb[0].mxu0
      %886 = vmatprep.mubr.bf16.mxu0 0
      %887 = vmatmul.mubr.bf16.gmra.mrb[0].mxu0 %v594
      %v888 = vpop.f32.mrb[0].mxu0
      %v889 = vadd.f32 %v324, %v888
      %v890 = vpop.f32.mrb[0].mxu0
      %v891 = vpop.f32.mrb[0].mxu0
      %v892 = vadd.f32 %v324, %v891
      %v893 = vpop.f32.mrb[0].mxu0
      %894 = vmatprep.mubr.bf16.mxu0 0
      %895 = vmatmul.mubr.bf16.gmra.mrb[0].mxu0 %v595
      %v896 = vpop.f32.mrb[0].mxu0
      %v897 = vadd.f32 %v324, %v896
      %v898 = vpop.f32.mrb[0].mxu0
      %v899 = vpop.f32.mrb[0].mxu0
      %v900 = vadd.f32 %v324, %v899
      %v901 = vpop.f32.mrb[0].mxu0
      %902 = vmatprep.mubr.bf16.mxu0 0
      %903 = vmatmul.mubr.bf16.gmra.mrb[0].mxu0 %v596
      %v904 = vpop.f32.mrb[0].mxu0
      %v905 = vadd.f32 %v324, %v904
      %v906 = vpop.f32.mrb[0].mxu0
      %v907 = vpop.f32.mrb[0].mxu0
      %v908 = vadd.f32 %v324, %v907
      %v909 = vpop.f32.mrb[0].mxu0
      %910 = vmatprep.mubr.bf16.mxu0 0
      %911 = vmatmul.mubr.bf16.gmra.mrb[0].mxu0 %v597
      %v912 = vpop.f32.mrb[0].mxu0
      %v913 = vadd.f32 %v324, %v912
      %v914 = vpop.f32.mrb[0].mxu0
      %v915 = vpop.f32.mrb[0].mxu0
      %v916 = vadd.f32 %v324, %v915
      %v917 = vpop.f32.mrb[0].mxu0
      %918 = vmatprep.mubr.bf16.mxu0 0
      %919 = vmatmul.mubr.bf16.gmra.mrb[0].mxu0 %v598
      %v920 = vpop.f32.mrb[0].mxu0
      %v921 = vadd.f32 %v324, %v920
      %v922 = vpop.f32.mrb[0].mxu0
      %v923 = vpop.f32.mrb[0].mxu0
      %v924 = vadd.f32 %v324, %v923
      %v925 = vpop.f32.mrb[0].mxu0
      %926 = vmatprep.mubr.bf16.mxu0 0
      %927 = vmatmul.mubr.bf16.gmra.mrb[0].mxu0 %v599
      %v928 = vpop.f32.mrb[0].mxu0
      %v929 = vadd.f32 %v324, %v928
      %v930 = vpop.f32.mrb[0].mxu0
      %v931 = vpop.f32.mrb[0].mxu0
      %v932 = vadd.f32 %v324, %v931
      %v933 = vpop.f32.mrb[0].mxu0
      %934 = vmatprep.mubr.bf16.mxu0 0
      %935 = vmatmul.mubr.bf16.gmra.mrb[0].mxu0 %v600
      %v936 = vpop.f32.mrb[0].mxu0
      %v937 = vadd.f32 %v324, %v936
      %v938 = vpop.f32.mrb[0].mxu0
      %v939 = vpop.f32.mrb[0].mxu0
      %v940 = vadd.f32 %v324, %v939
      %v941 = vpop.f32.mrb[0].mxu0
      %942 = vmatprep.mubr.bf16.mxu0 0
      %943 = vmatmul.mubr.bf16.gmra.mrb[0].mxu0 %v601
      %v944 = vpop.f32.mrb[0].mxu0
      %v945 = vadd.f32 %v324, %v944
      %v946 = vpop.f32.mrb[0].mxu0
      %v947 = vpop.f32.mrb[0].mxu0
      %v948 = vadd.f32 %v324, %v947
      %v949 = vpop.f32.mrb[0].mxu0
      %950 = vmatprep.mubr.bf16.mxu0 0
      %951 = vmatmul.mubr.bf16.gmra.mrb[0].mxu0 %v602
      %v952 = vpop.f32.mrb[0].mxu0
      %v953 = vadd.f32 %v324, %v952
      %v954 = vpop.f32.mrb[0].mxu0
      %v955 = vpop.f32.mrb[0].mxu0
      %v956 = vadd.f32 %v324, %v955
      %v957 = vpop.f32.mrb[0].mxu0
      %958 = vmatprep.mubr.bf16.mxu0 0
      %959 = vmatmul.mubr.bf16.gmra.mrb[0].mxu0 %v603
      %v960 = vpop.f32.mrb[0].mxu0
      %v961 = vadd.f32 %v324, %v960
      %v962 = vpop.f32.mrb[0].mxu0
      %v963 = vpop.f32.mrb[0].mxu0
      %v964 = vadd.f32 %v324, %v963
      %v965 = vpop.f32.mrb[0].mxu0
      %966 = vmatprep.mubr.bf16.mxu0 0
      %967 = vmatmul.mubr.bf16.gmra.mrb[0].mxu0 %v604
      %v968 = vpop.f32.mrb[0].mxu0
      %v969 = vadd.f32 %v324, %v968
      %v970 = vpop.f32.mrb[0].mxu0
      %v971 = vpop.f32.mrb[0].mxu0
      %v972 = vadd.f32 %v324, %v971
      %v973 = vpop.f32.mrb[0].mxu0
      %974 = vmatprep.mubr.bf16.mxu0 0
      %975 = vmatmul.mubr.bf16.gmra.mrb[0].mxu0 %v605
      %v976 = vpop.f32.mrb[0].mxu0
      %v977 = vadd.f32 %v324, %v976
      %v978 = vpop.f32.mrb[0].mxu0
      %v979 = vpop.f32.mrb[0].mxu0
      %v980 = vadd.f32 %v324, %v979
      %v981 = vpop.f32.mrb[0].mxu0
      %982 = vmatprep.mubr.bf16.mxu0 0
      %983 = vmatmul.mubr.bf16.gmra.mrb[0].mxu0 %v606
      %v984 = vpop.f32.mrb[0].mxu0
      %v985 = vadd.f32 %v324, %v984
      %v986 = vpop.f32.mrb[0].mxu0
      %v987 = vpop.f32.mrb[0].mxu0
      %v988 = vadd.f32 %v324, %v987
      %v989 = vpop.f32.mrb[0].mxu0
      %990 = vmatprep.mubr.bf16.mxu0 0
      %991 = vmatmul.mubr.bf16.gmra.mrb[0].mxu0 %v607
      %v992 = vpop.f32.mrb[0].mxu0
      %v993 = vadd.f32 %v324, %v992
      %v994 = vpop.f32.mrb[0].mxu0
      %v995 = vpop.f32.mrb[0].mxu0
      %v996 = vadd.f32 %v324, %v995
      %v997 = vpop.f32.mrb[0].mxu0
      %998 = vmatprep.mubr.bf16.mxu0 0
      %999 = vmatmul.mubr.bf16.gmra.mrb[0].mxu0 %v608
      %v1000 = vpop.f32.mrb[0].mxu0
      %v1001 = vadd.f32 %v324, %v1000
      %v1002 = vpop.f32.mrb[0].mxu0
      %v1003 = vpop.f32.mrb[0].mxu0
      %v1004 = vadd.f32 %v324, %v1003
      %v1005 = vpop.f32.mrb[0].mxu0
      %1006 = vmatprep.mubr.bf16.mxu0 0
      %1007 = vmatmul.mubr.bf16.gmra.mrb[0].mxu0 %v609
      %v1008 = vpop.f32.mrb[0].mxu0
      %v1009 = vadd.f32 %v324, %v1008
      %v1010 = vpop.f32.mrb[0].mxu0
      %v1011 = vpop.f32.mrb[0].mxu0
      %v1012 = vadd.f32 %v324, %v1011
      %v1013 = vpop.f32.mrb[0].mxu0
      %1014 = vmatprep.mubr.bf16.mxu0 0
      %1015 = vmatmul.mubr.bf16.gmra.mrb[0].mxu0 %v610
      %v1016 = vpop.f32.mrb[0].mxu0
      %v1017 = vadd.f32 %v324, %v1016
      %v1018 = vpop.f32.mrb[0].mxu0
      %v1019 = vpop.f32.mrb[0].mxu0
      %v1020 = vadd.f32 %v324, %v1019
      %v1021 = vpop.f32.mrb[0].mxu0
      %1022 = vmatprep.mubr.bf16.mxu0 0
      %1023 = vmatmul.mubr.bf16.gmra.mrb[0].mxu0 %v611
      %v1024 = vpop.f32.mrb[0].mxu0
      %v1025 = vadd.f32 %v324, %v1024
      %v1026 = vpop.f32.mrb[0].mxu0
      %v1027 = vpop.f32.mrb[0].mxu0
      %v1028 = vadd.f32 %v324, %v1027
      %v1029 = vpop.f32.mrb[0].mxu0
      %1030 = vmatprep.mubr.bf16.mxu0 0
      %1031 = vmatmul.mubr.bf16.gmra.mrb[0].mxu0 %v612
      %v1032 = vpop.f32.mrb[0].mxu0
      %v1033 = vadd.f32 %v324, %v1032
      %v1034 = vpop.f32.mrb[0].mxu0
      %v1035 = vpop.f32.mrb[0].mxu0
      %v1036 = vadd.f32 %v324, %v1035
      %v1037 = vpop.f32.mrb[0].mxu0
      %1038 = vmatprep.mubr.bf16.mxu0 0
      %1039 = vmatmul.mubr.bf16.gmra.mrb[0].mxu0 %v613
      %v1040 = vpop.f32.mrb[0].mxu0
      %v1041 = vadd.f32 %v324, %v1040
      %v1042 = vpop.f32.mrb[0].mxu0
      %v1043 = vpop.f32.mrb[0].mxu0
      %v1044 = vadd.f32 %v324, %v1043
      %v1045 = vpop.f32.mrb[0].mxu0
      %1046 = vmatprep.mubr.bf16.mxu0 0
      %1047 = vmatmul.mubr.bf16.gmra.mrb[0].mxu0 %v614
      %v1048 = vpop.f32.mrb[0].mxu0
      %v1049 = vadd.f32 %v324, %v1048
      %v1050 = vpop.f32.mrb[0].mxu0
      %v1051 = vpop.f32.mrb[0].mxu0
      %v1052 = vadd.f32 %v324, %v1051
      %v1053 = vpop.f32.mrb[0].mxu0
      %1054 = vmatprep.mubr.bf16.mxu0 0
      %1055 = vmatmul.mubr.bf16.gmra.mrb[0].mxu0 %v615
      %v1056 = vpop.f32.mrb[0].mxu0
      %v1057 = vadd.f32 %v324, %v1056
      %v1058 = vpop.f32.mrb[0].mxu0
      %v1059 = vpop.f32.mrb[0].mxu0
      %v1060 = vadd.f32 %v324, %v1059
      %v1061 = vpop.f32.mrb[0].mxu0
      %1062 = vmatprep.mubr.bf16.mxu0 0
      %1063 = vmatmul.mubr.bf16.gmra.mrb[0].mxu0 %v616
      %v1064 = vpop.f32.mrb[0].mxu0
      %v1065 = vadd.f32 %v324, %v1064
      %v1066 = vpop.f32.mrb[0].mxu0
      %v1067 = vpop.f32.mrb[0].mxu0
      %v1068 = vadd.f32 %v324, %v1067
      %v1069 = vpop.f32.mrb[0].mxu0
      %1070 = vmatprep.mubr.bf16.mxu0 0
      %1071 = vmatmul.mubr.bf16.gmra.mrb[0].mxu0 %v617
      %v1072 = vpop.f32.mrb[0].mxu0
      %v1073 = vadd.f32 %v324, %v1072
      %v1074 = vpop.f32.mrb[0].mxu0
      %v1075 = vpop.f32.mrb[0].mxu0
      %v1076 = vadd.f32 %v324, %v1075
      %v1077 = vpop.f32.mrb[0].mxu0
      %1078 = vmatprep.mubr.bf16.mxu0 0
      %1079 = vmatmul.mubr.bf16.gmra.mrb[0].mxu0 %v618
      %v1080 = vpop.f32.mrb[0].mxu0
      %v1081 = vadd.f32 %v324, %v1080
      %v1082 = vpop.f32.mrb[0].mxu0
      %v1083 = vpop.f32.mrb[0].mxu0
      %v1084 = vadd.f32 %v324, %v1083
      %v1085 = vpop.f32.mrb[0].mxu0
      %1086 = vmatprep.mubr.bf16.mxu0 0
      %1087 = vmatmul.mubr.bf16.gmra.mrb[0].mxu0 %v619
      %v1088 = vpop.f32.mrb[0].mxu0
      %v1089 = vadd.f32 %v324, %v1088
      %v1090 = vpop.f32.mrb[0].mxu0
      %v1091 = vpop.f32.mrb[0].mxu0
      %v1092 = vadd.f32 %v324, %v1091
      %v1093 = vpop.f32.mrb[0].mxu0
      %1094 = vmatprep.mubr.bf16.mxu0 0
      %1095 = vmatmul.mubr.bf16.gmra.mrb[0].mxu0 %v620
      %v1096 = vpop.f32.mrb[0].mxu0
      %v1097 = vadd.f32 %v324, %v1096
      %v1098 = vpop.f32.mrb[0].mxu0
      %v1099 = vpop.f32.mrb[0].mxu0
      %v1100 = vadd.f32 %v324, %v1099
      %v1101 = vpop.f32.mrb[0].mxu0
      %1102 = vmatprep.mubr.bf16.mxu0 0
      %1103 = vmatmul.mubr.bf16.gmra.mrb[0].mxu0 %v621
      %v1104 = vpop.f32.mrb[0].mxu0
      %v1105 = vadd.f32 %v324, %v1104
      %v1106 = vpop.f32.mrb[0].mxu0
      %v1107 = vpop.f32.mrb[0].mxu0
      %v1108 = vadd.f32 %v324, %v1107
      %v1109 = vpop.f32.mrb[0].mxu0
      %1110 = vmatprep.mubr.bf16.mxu0 0
      %1111 = vmatmul.mubr.bf16.gmra.mrb[0].mxu0 %v622
      %v1112 = vpop.f32.mrb[0].mxu0
      %v1113 = vadd.f32 %v324, %v1112
      %v1114 = vpop.f32.mrb[0].mxu0
      %v1115 = vpop.f32.mrb[0].mxu0
      %v1116 = vadd.f32 %v324, %v1115
      %v1117 = vpop.f32.mrb[0].mxu0
      %1118 = vmatprep.mubr.bf16.mxu0 0
      %1119 = vmatmul.mubr.bf16.gmra.mrb[0].mxu0 %v623
      %v1120 = vpop.f32.mrb[0].mxu0
      %v1121 = vadd.f32 %v324, %v1120
      %v1122 = vpop.f32.mrb[0].mxu0
      %v1123 = vpop.f32.mrb[0].mxu0
      %v1124 = vadd.f32 %v324, %v1123
      %v1125 = vpop.f32.mrb[0].mxu0
      %1126 = vmatprep.mubr.bf16.mxu0 0
      %1127 = vmatmul.mubr.bf16.gmra.mrb[0].mxu0 %v624
      %v1128 = vpop.f32.mrb[0].mxu0
      %v1129 = vadd.f32 %v324, %v1128
      %v1130 = vpop.f32.mrb[0].mxu0
      %v1131 = vpop.f32.mrb[0].mxu0
      %v1132 = vadd.f32 %v324, %v1131
      %v1133 = vpop.f32.mrb[0].mxu0
      %1134 = vmatprep.mubr.bf16.mxu0 0
      %1135 = vmatmul.mubr.bf16.gmra.mrb[0].mxu0 %v625
      %v1136 = vpop.f32.mrb[0].mxu0
      %v1137 = vadd.f32 %v324, %v1136
      %v1138 = vpop.f32.mrb[0].mxu0
      %v1139 = vpop.f32.mrb[0].mxu0
      %v1140 = vadd.f32 %v324, %v1139
      %v1141 = vpop.f32.mrb[0].mxu0
      %1142 = vmatprep.mubr.bf16.mxu0 0
      %1143 = vmatmul.mubr.bf16.gmra.mrb[0].mxu0 %v626
      %v1144 = vpop.f32.mrb[0].mxu0
      %v1145 = vadd.f32 %v324, %v1144
      %v1146 = vpop.f32.mrb[0].mxu0
      %v1147 = vpop.f32.mrb[0].mxu0
      %v1148 = vadd.f32 %v324, %v1147
      %v1149 = vpop.f32.mrb[0].mxu0
      %1150 = vmatprep.mubr.bf16.mxu0 0
      %1151 = vmatmul.mubr.bf16.gmra.mrb[0].mxu0 %v627
      %v1152 = vpop.f32.mrb[0].mxu0
      %v1153 = vadd.f32 %v324, %v1152
      %v1154 = vpop.f32.mrb[0].mxu0
      %v1155 = vpop.f32.mrb[0].mxu0
      %v1156 = vadd.f32 %v324, %v1155
      %v1157 = vpop.f32.mrb[0].mxu0
      %1158 = vmatprep.mubr.bf16.mxu0 0
      %1159 = vmatmul.mubr.bf16.gmra.mrb[0].mxu0 %v628
      %v1160 = vpop.f32.mrb[0].mxu0
      %v1161 = vadd.f32 %v324, %v1160
      %v1162 = vpop.f32.mrb[0].mxu0
      %v1163 = vpop.f32.mrb[0].mxu0
      %v1164 = vadd.f32 %v324, %v1163
      %v1165 = vpop.f32.mrb[0].mxu0
      %1166 = vmatprep.mubr.bf16.mxu0 0
      %1167 = vmatmul.mubr.bf16.gmra.mrb[0].mxu0 %v629
      %v1168 = vpop.f32.mrb[0].mxu0
      %v1169 = vadd.f32 %v324, %v1168
      %v1170 = vpop.f32.mrb[0].mxu0
      %v1171 = vpop.f32.mrb[0].mxu0
      %v1172 = vadd.f32 %v324, %v1171
      %v1173 = vpop.f32.mrb[0].mxu0
      %1174 = vmatprep.mubr.bf16.mxu0 0
      %1175 = vmatmul.mubr.bf16.gmra.mrb[0].mxu0 %v630
      %v1176 = vpop.f32.mrb[0].mxu0
      %v1177 = vadd.f32 %v324, %v1176
      %v1178 = vpop.f32.mrb[0].mxu0
      %v1179 = vpop.f32.mrb[0].mxu0
      %v1180 = vadd.f32 %v324, %v1179
      %v1181 = vpop.f32.mrb[0].mxu0
      %1182 = vmatprep.mubr.bf16.mxu0 0
      %1183 = vmatmul.mubr.bf16.gmra.mrb[0].mxu0 %v631
      %v1184 = vpop.f32.mrb[0].mxu0
      %v1185 = vadd.f32 %v324, %v1184
      %v1186 = vpop.f32.mrb[0].mxu0
      %v1187 = vpop.f32.mrb[0].mxu0
      %v1188 = vadd.f32 %v324, %v1187
      %v1189 = vpop.f32.mrb[0].mxu0
      %1190 = vmatprep.mubr.bf16.mxu0 0
      %1191 = vmatmul.mubr.bf16.gmra.mrb[0].mxu0 %v632
      %v1192 = vpop.f32.mrb[0].mxu0
      %v1193 = vadd.f32 %v324, %v1192
      %v1194 = vpop.f32.mrb[0].mxu0
      %v1195 = vpop.f32.mrb[0].mxu0
      %v1196 = vadd.f32 %v324, %v1195
      %v1197 = vpop.f32.mrb[0].mxu0
      %1198 = vmatprep.mubr.bf16.mxu0 0
      %1199 = vmatmul.mubr.bf16.gmra.mrb[0].mxu0 %v633
      %v1200 = vpop.f32.mrb[0].mxu0
      %v1201 = vadd.f32 %v324, %v1200
      %v1202 = vpop.f32.mrb[0].mxu0
      %v1203 = vpop.f32.mrb[0].mxu0
      %v1204 = vadd.f32 %v324, %v1203
      %v1205 = vpop.f32.mrb[0].mxu0
      %1206 = vmatprep.mubr.bf16.mxu0 0
      %1207 = vmatmul.mubr.bf16.gmra.mrb[0].mxu0 %v634
      %v1208 = vpop.f32.mrb[0].mxu0
      %v1209 = vadd.f32 %v324, %v1208
      %v1210 = vpop.f32.mrb[0].mxu0
      %v1211 = vpop.f32.mrb[0].mxu0
      %v1212 = vadd.f32 %v324, %v1211
      %v1213 = vpop.f32.mrb[0].mxu0
      %1214 = vmatprep.mubr.bf16.mxu0 0
      %1215 = vmatmul.mubr.bf16.gmra.mrb[0].mxu0 %v635
      %v1216 = vpop.f32.mrb[0].mxu0
      %v1217 = vadd.f32 %v324, %v1216
      %v1218 = vpop.f32.mrb[0].mxu0
      %v1219 = vpop.f32.mrb[0].mxu0
      %v1220 = vadd.f32 %v324, %v1219
      %v1221 = vpop.f32.mrb[0].mxu0
      %1222 = vmatprep.mubr.bf16.mxu0 0
      %1223 = vmatmul.mubr.bf16.gmra.mrb[0].mxu0 %v636
      %v1224 = vpop.f32.mrb[0].mxu0
      %v1225 = vadd.f32 %v324, %v1224
      %v1226 = vpop.f32.mrb[0].mxu0
      %v1227 = vpop.f32.mrb[0].mxu0
      %v1228 = vadd.f32 %v324, %v1227
      %v1229 = vpop.f32.mrb[0].mxu0
      %1230 = vmatprep.mubr.bf16.mxu0 0
      %1231 = vmatmul.mubr.bf16.gmra.mrb[0].mxu0 %v637
      %v1232 = vpop.f32.mrb[0].mxu0
      %v1233 = vadd.f32 %v324, %v1232
      %v1234 = vpop.f32.mrb[0].mxu0
      %v1235 = vpop.f32.mrb[0].mxu0
      %v1236 = vadd.f32 %v324, %v1235
      %v1237 = vpop.f32.mrb[0].mxu0
      %1238 = vmatprep.mubr.bf16.mxu0 0
      %1239 = vmatmul.mubr.bf16.gmra.mrb[0].mxu0 %v638
      %v1240 = vpop.f32.mrb[0].mxu0
      %v1241 = vadd.f32 %v324, %v1240
      %v1242 = vpop.f32.mrb[0].mxu0
      %v1243 = vpop.f32.mrb[0].mxu0
      %v1244 = vadd.f32 %v324, %v1243
      %v1245 = vpop.f32.mrb[0].mxu0
      %1246 = vmatprep.mubr.bf16.mxu0 0
      %1247 = vmatmul.mubr.bf16.gmra.mrb[0].mxu0 %v639
      %v1248 = vpop.f32.mrb[0].mxu0
      %v1249 = vadd.f32 %v324, %v1248
      %v1250 = vpop.f32.mrb[0].mxu0
      %v1251 = vpop.f32.mrb[0].mxu0
      %v1252 = vadd.f32 %v324, %v1251
      %v1253 = vpop.f32.mrb[0].mxu0
      %1254 = vmatprep.mubr.bf16.mxu0 0
      %1255 = vmatmul.mubr.bf16.gmra.mrb[0].mxu0 %v640
      %v1256 = vpop.f32.mrb[0].mxu0
      %v1257 = vadd.f32 %v324, %v1256
      %v1258 = vpop.f32.mrb[0].mxu0
      %v1259 = vpop.f32.mrb[0].mxu0
      %v1260 = vadd.f32 %v324, %v1259
      %v1261 = vpop.f32.mrb[0].mxu0
      %1262 = vmatprep.mubr.bf16.mxu0 0
      %1263 = vmatmul.mubr.bf16.gmra.mrb[0].mxu0 %v641
      %v1264 = vpop.f32.mrb[0].mxu0
      %v1265 = vadd.f32 %v324, %v1264
      %v1266 = vpop.f32.mrb[0].mxu0
      %v1267 = vpop.f32.mrb[0].mxu0
      %v1268 = vadd.f32 %v324, %v1267
      %v1269 = vpop.f32.mrb[0].mxu0
      %1270 = vmatprep.mubr.bf16.mxu0 0
      %1271 = vmatmul.mubr.bf16.gmra.mrb[0].mxu0 %v642
      %v1272 = vpop.f32.mrb[0].mxu0
      %v1273 = vadd.f32 %v324, %v1272
      %v1274 = vpop.f32.mrb[0].mxu0
      %v1275 = vpop.f32.mrb[0].mxu0
      %v1276 = vadd.f32 %v324, %v1275
      %v1277 = vpop.f32.mrb[0].mxu0
      %1278 = vmatprep.mubr.bf16.mxu0 0
      %1279 = vmatmul.mubr.bf16.gmra.mrb[0].mxu0 %v643
      %v1280 = vpop.f32.mrb[0].mxu0
      %v1281 = vadd.f32 %v324, %v1280
      %v1282 = vpop.f32.mrb[0].mxu0
      %v1283 = vpop.f32.mrb[0].mxu0
      %v1284 = vadd.f32 %v324, %v1283
      %v1285 = vpop.f32.mrb[0].mxu0
      %1286 = vmatprep.mubr.bf16.mxu0 0
      %1287 = vmatmul.mubr.bf16.gmra.mrb[0].mxu0 %v644
      %v1288 = vpop.f32.mrb[0].mxu0
      %v1289 = vadd.f32 %v324, %v1288
      %v1290 = vpop.f32.mrb[0].mxu0
      %v1291 = vpop.f32.mrb[0].mxu0
      %v1292 = vadd.f32 %v324, %v1291
      %v1293 = vpop.f32.mrb[0].mxu0
      %1294 = vmatprep.mubr.bf16.mxu0 0
      %1295 = vmatmul.mubr.bf16.gmra.mrb[0].mxu0 %v645
      %v1296 = vpop.f32.mrb[0].mxu0
      %v1297 = vadd.f32 %v324, %v1296
      %v1298 = vpop.f32.mrb[0].mxu0
      %v1299 = vpop.f32.mrb[0].mxu0
      %v1300 = vadd.f32 %v324, %v1299
      %v1301 = vpop.f32.mrb[0].mxu0
      %1302 = vdwg.mxu0
      %vm1303 = vcmp.gt.f32.partialorder %v793, 0.0
      %vm1304 = vcmp.gt.f32.partialorder %v796, 0.0
      %vm1305 = vcmp.gt.f32.partialorder %v801, 0.0
      %vm1306 = vcmp.gt.f32.partialorder %v804, 0.0
      %vm1307 = vcmp.gt.f32.partialorder %v809, 0.0
      %vm1308 = vcmp.gt.f32.partialorder %v812, 0.0
      %vm1309 = vcmp.gt.f32.partialorder %v817, 0.0
      %vm1310 = vcmp.gt.f32.partialorder %v820, 0.0
      %vm1311 = vcmp.gt.f32.partialorder %v825, 0.0
      %vm1312 = vcmp.gt.f32.partialorder %v828, 0.0
      %vm1313 = vcmp.gt.f32.partialorder %v833, 0.0
      %vm1314 = vcmp.gt.f32.partialorder %v836, 0.0
      %vm1315 = vcmp.gt.f32.partialorder %v841, 0.0
      %vm1316 = vcmp.gt.f32.partialorder %v844, 0.0
      %vm1317 = vcmp.gt.f32.partialorder %v849, 0.0
      %vm1318 = vcmp.gt.f32.partialorder %v852, 0.0
      %vm1319 = vcmp.gt.f32.partialorder %v857, 0.0
      %vm1320 = vcmp.gt.f32.partialorder %v860, 0.0
      %vm1321 = vcmp.gt.f32.partialorder %v865, 0.0
      %vm1322 = vcmp.gt.f32.partialorder %v868, 0.0
      %vm1323 = vcmp.gt.f32.partialorder %v873, 0.0
      %vm1324 = vcmp.gt.f32.partialorder %v876, 0.0
      %vm1325 = vcmp.gt.f32.partialorder %v881, 0.0
      %vm1326 = vcmp.gt.f32.partialorder %v884, 0.0
      %vm1327 = vcmp.gt.f32.partialorder %v889, 0.0
      %vm1328 = vcmp.gt.f32.partialorder %v892, 0.0
      %vm1329 = vcmp.gt.f32.partialorder %v897, 0.0
      %vm1330 = vcmp.gt.f32.partialorder %v900, 0.0
      %vm1331 = vcmp.gt.f32.partialorder %v905, 0.0
      %vm1332 = vcmp.gt.f32.partialorder %v908, 0.0
      %vm1333 = vcmp.gt.f32.partialorder %v913, 0.0
      %vm1334 = vcmp.gt.f32.partialorder %v916, 0.0
      %vm1335 = vcmp.gt.f32.partialorder %v921, 0.0
      %vm1336 = vcmp.gt.f32.partialorder %v924, 0.0
      %vm1337 = vcmp.gt.f32.partialorder %v929, 0.0
      %vm1338 = vcmp.gt.f32.partialorder %v932, 0.0
      %vm1339 = vcmp.gt.f32.partialorder %v937, 0.0
      %vm1340 = vcmp.gt.f32.partialorder %v940, 0.0
      %vm1341 = vcmp.gt.f32.partialorder %v945, 0.0
      %vm1342 = vcmp.gt.f32.partialorder %v948, 0.0
      %vm1343 = vcmp.gt.f32.partialorder %v953, 0.0
      %vm1344 = vcmp.gt.f32.partialorder %v956, 0.0
      %vm1345 = vcmp.gt.f32.partialorder %v961, 0.0
      %vm1346 = vcmp.gt.f32.partialorder %v964, 0.0
      %vm1347 = vcmp.gt.f32.partialorder %v969, 0.0
      %vm1348 = vcmp.gt.f32.partialorder %v972, 0.0
      %vm1349 = vcmp.gt.f32.partialorder %v977, 0.0
      %vm1350 = vcmp.gt.f32.partialorder %v980, 0.0
      %vm1351 = vcmp.gt.f32.partialorder %v985, 0.0
      %vm1352 = vcmp.gt.f32.partialorder %v988, 0.0
      %vm1353 = vcmp.gt.f32.partialorder %v993, 0.0
      %vm1354 = vcmp.gt.f32.partialorder %v996, 0.0
      %vm1355 = vcmp.gt.f32.partialorder %v1001, 0.0
      %vm1356 = vcmp.gt.f32.partialorder %v1004, 0.0
      %vm1357 = vcmp.gt.f32.partialorder %v1009, 0.0
      %vm1358 = vcmp.gt.f32.partialorder %v1012, 0.0
      %vm1359 = vcmp.gt.f32.partialorder %v1017, 0.0
      %vm1360 = vcmp.gt.f32.partialorder %v1020, 0.0
      %vm1361 = vcmp.gt.f32.partialorder %v1025, 0.0
      %vm1362 = vcmp.gt.f32.partialorder %v1028, 0.0
      %vm1363 = vcmp.gt.f32.partialorder %v1033, 0.0
      %vm1364 = vcmp.gt.f32.partialorder %v1036, 0.0
      %vm1365 = vcmp.gt.f32.partialorder %v1041, 0.0
      %vm1366 = vcmp.gt.f32.partialorder %v1044, 0.0
      %vm1367 = vcmp.gt.f32.partialorder %v1049, 0.0
      %vm1368 = vcmp.gt.f32.partialorder %v1052, 0.0
      %vm1369 = vcmp.gt.f32.partialorder %v1057, 0.0
      %vm1370 = vcmp.gt.f32.partialorder %v1060, 0.0
      %vm1371 = vcmp.gt.f32.partialorder %v1065, 0.0
      %vm1372 = vcmp.gt.f32.partialorder %v1068, 0.0
      %vm1373 = vcmp.gt.f32.partialorder %v1073, 0.0
      %vm1374 = vcmp.gt.f32.partialorder %v1076, 0.0
      %vm1375 = vcmp.gt.f32.partialorder %v1081, 0.0
      %vm1376 = vcmp.gt.f32.partialorder %v1084, 0.0
      %vm1377 = vcmp.gt.f32.partialorder %v1089, 0.0
      %vm1378 = vcmp.gt.f32.partialorder %v1092, 0.0
      %vm1379 = vcmp.gt.f32.partialorder %v1097, 0.0
      %vm1380 = vcmp.gt.f32.partialorder %v1100, 0.0
      %vm1381 = vcmp.gt.f32.partialorder %v1105, 0.0
      %vm1382 = vcmp.gt.f32.partialorder %v1108, 0.0
      %vm1383 = vcmp.gt.f32.partialorder %v1113, 0.0
      %vm1384 = vcmp.gt.f32.partialorder %v1116, 0.0
      %vm1385 = vcmp.gt.f32.partialorder %v1121, 0.0
      %vm1386 = vcmp.gt.f32.partialorder %v1124, 0.0
      %vm1387 = vcmp.gt.f32.partialorder %v1129, 0.0
      %vm1388 = vcmp.gt.f32.partialorder %v1132, 0.0
      %vm1389 = vcmp.gt.f32.partialorder %v1137, 0.0
      %vm1390 = vcmp.gt.f32.partialorder %v1140, 0.0
      %vm1391 = vcmp.gt.f32.partialorder %v1145, 0.0
      %vm1392 = vcmp.gt.f32.partialorder %v1148, 0.0
      %vm1393 = vcmp.gt.f32.partialorder %v1153, 0.0
      %vm1394 = vcmp.gt.f32.partialorder %v1156, 0.0
      %vm1395 = vcmp.gt.f32.partialorder %v1161, 0.0
      %vm1396 = vcmp.gt.f32.partialorder %v1164, 0.0
      %vm1397 = vcmp.gt.f32.partialorder %v1169, 0.0
      %vm1398 = vcmp.gt.f32.partialorder %v1172, 0.0
      %vm1399 = vcmp.gt.f32.partialorder %v1177, 0.0
      %vm1400 = vcmp.gt.f32.partialorder %v1180, 0.0
      %vm1401 = vcmp.gt.f32.partialorder %v1185, 0.0
      %vm1402 = vcmp.gt.f32.partialorder %v1188, 0.0
      %vm1403 = vcmp.gt.f32.partialorder %v1193, 0.0
      %vm1404 = vcmp.gt.f32.partialorder %v1196, 0.0
      %vm1405 = vcmp.gt.f32.partialorder %v1201, 0.0
      %vm1406 = vcmp.gt.f32.partialorder %v1204, 0.0
      %vm1407 = vcmp.gt.f32.partialorder %v1209, 0.0
      %vm1408 = vcmp.gt.f32.partialorder %v1212, 0.0
      %vm1409 = vcmp.gt.f32.partialorder %v1217, 0.0
      %vm1410 = vcmp.gt.f32.partialorder %v1220, 0.0
      %vm1411 = vcmp.gt.f32.partialorder %v1225, 0.0
      %vm1412 = vcmp.gt.f32.partialorder %v1228, 0.0
      %vm1413 = vcmp.gt.f32.partialorder %v1233, 0.0
      %vm1414 = vcmp.gt.f32.partialorder %v1236, 0.0
      %vm1415 = vcmp.gt.f32.partialorder %v1241, 0.0
      %vm1416 = vcmp.gt.f32.partialorder %v1244, 0.0
      %vm1417 = vcmp.gt.f32.partialorder %v1249, 0.0
      %vm1418 = vcmp.gt.f32.partialorder %v1252, 0.0
      %vm1419 = vcmp.gt.f32.partialorder %v1257, 0.0
      %vm1420 = vcmp.gt.f32.partialorder %v1260, 0.0
      %vm1421 = vcmp.gt.f32.partialorder %v1265, 0.0
      %vm1422 = vcmp.gt.f32.partialorder %v1268, 0.0
      %vm1423 = vcmp.gt.f32.partialorder %v1273, 0.0
      %vm1424 = vcmp.gt.f32.partialorder %v1276, 0.0
      %vm1425 = vcmp.gt.f32.partialorder %v1281, 0.0
      %vm1426 = vcmp.gt.f32.partialorder %v1284, 0.0
      %vm1427 = vcmp.gt.f32.partialorder %v1289, 0.0
      %vm1428 = vcmp.gt.f32.partialorder %v1292, 0.0
      %vm1429 = vcmp.gt.f32.partialorder %v1297, 0.0
      %vm1430 = vcmp.gt.f32.partialorder %v1300, 0.0
      %v1431 = vmul.f32 %v793, 0.2
      %v1432 = vmul.f32 %v796, 0.2
      %v1433 = vmul.f32 %v801, 0.2
      %v1434 = vmul.f32 %v804, 0.2
      %v1435 = vmul.f32 %v809, 0.2
      %v1436 = vmul.f32 %v812, 0.2
      %v1437 = vmul.f32 %v817, 0.2
      %v1438 = vmul.f32 %v820, 0.2
      %v1439 = vmul.f32 %v825, 0.2
      %v1440 = vmul.f32 %v828, 0.2
      %v1441 = vmul.f32 %v833, 0.2
      %v1442 = vmul.f32 %v836, 0.2
      %v1443 = vmul.f32 %v841, 0.2
      %v1444 = vmul.f32 %v844, 0.2
      %v1445 = vmul.f32 %v849, 0.2
      %v1446 = vmul.f32 %v852, 0.2
      %v1447 = vmul.f32 %v857, 0.2
      %v1448 = vmul.f32 %v860, 0.2
      %v1449 = vmul.f32 %v865, 0.2
      %v1450 = vmul.f32 %v868, 0.2
      %v1451 = vmul.f32 %v873, 0.2
      %v1452 = vmul.f32 %v876, 0.2
      %v1453 = vmul.f32 %v881, 0.2
      %v1454 = vmul.f32 %v884, 0.2
      %v1455 = vmul.f32 %v889, 0.2
      %v1456 = vmul.f32 %v892, 0.2
      %v1457 = vmul.f32 %v897, 0.2
      %v1458 = vmul.f32 %v900, 0.2
      %v1459 = vmul.f32 %v905, 0.2
      %v1460 = vmul.f32 %v908, 0.2
      %v1461 = vmul.f32 %v913, 0.2
      %v1462 = vmul.f32 %v916, 0.2
      %v1463 = vmul.f32 %v921, 0.2
      %v1464 = vmul.f32 %v924, 0.2
      %v1465 = vmul.f32 %v929, 0.2
      %v1466 = vmul.f32 %v932, 0.2
      %v1467 = vmul.f32 %v937, 0.2
      %v1468 = vmul.f32 %v940, 0.2
      %v1469 = vmul.f32 %v945, 0.2
      %v1470 = vmul.f32 %v948, 0.2
      %v1471 = vmul.f32 %v953, 0.2
      %v1472 = vmul.f32 %v956, 0.2
      %v1473 = vmul.f32 %v961, 0.2
      %v1474 = vmul.f32 %v964, 0.2
      %v1475 = vmul.f32 %v969, 0.2
      %v1476 = vmul.f32 %v972, 0.2
      %v1477 = vmul.f32 %v977, 0.2
      %v1478 = vmul.f32 %v980, 0.2
      %v1479 = vmul.f32 %v985, 0.2
      %v1480 = vmul.f32 %v988, 0.2
      %v1481 = vmul.f32 %v993, 0.2
      %v1482 = vmul.f32 %v996, 0.2
      %v1483 = vmul.f32 %v1001, 0.2
      %v1484 = vmul.f32 %v1004, 0.2
      %v1485 = vmul.f32 %v1009, 0.2
      %v1486 = vmul.f32 %v1012, 0.2
      %v1487 = vmul.f32 %v1017, 0.2
      %v1488 = vmul.f32 %v1020, 0.2
      %v1489 = vmul.f32 %v1025, 0.2
      %v1490 = vmul.f32 %v1028, 0.2
      %v1491 = vmul.f32 %v1033, 0.2
      %v1492 = vmul.f32 %v1036, 0.2
      %v1493 = vmul.f32 %v1041, 0.2
      %v1494 = vmul.f32 %v1044, 0.2
      %v1495 = vmul.f32 %v1049, 0.2
      %v1496 = vmul.f32 %v1052, 0.2
      %v1497 = vmul.f32 %v1057, 0.2
      %v1498 = vmul.f32 %v1060, 0.2
      %v1499 = vmul.f32 %v1065, 0.2
      %v1500 = vmul.f32 %v1068, 0.2
      %v1501 = vmul.f32 %v1073, 0.2
      %v1502 = vmul.f32 %v1076, 0.2
      %v1503 = vmul.f32 %v1081, 0.2
      %v1504 = vmul.f32 %v1084, 0.2
      %v1505 = vmul.f32 %v1089, 0.2
      %v1506 = vmul.f32 %v1092, 0.2
      %v1507 = vmul.f32 %v1097, 0.2
      %v1508 = vmul.f32 %v1100, 0.2
      %v1509 = vmul.f32 %v1105, 0.2
      %v1510 = vmul.f32 %v1108, 0.2
      %v1511 = vmul.f32 %v1113, 0.2
      %v1512 = vmul.f32 %v1116, 0.2
      %v1513 = vmul.f32 %v1121, 0.2
      %v1514 = vmul.f32 %v1124, 0.2
      %v1515 = vmul.f32 %v1129, 0.2
      %v1516 = vmul.f32 %v1132, 0.2
      %v1517 = vmul.f32 %v1137, 0.2
      %v1518 = vmul.f32 %v1140, 0.2
      %v1519 = vmul.f32 %v1145, 0.2
      %v1520 = vmul.f32 %v1148, 0.2
      %v1521 = vmul.f32 %v1153, 0.2
      %v1522 = vmul.f32 %v1156, 0.2
      %v1523 = vmul.f32 %v1161, 0.2
      %v1524 = vmul.f32 %v1164, 0.2
      %v1525 = vmul.f32 %v1169, 0.2
      %v1526 = vmul.f32 %v1172, 0.2
      %v1527 = vmul.f32 %v1177, 0.2
      %v1528 = vmul.f32 %v1180, 0.2
      %v1529 = vmul.f32 %v1185, 0.2
      %v1530 = vmul.f32 %v1188, 0.2
      %v1531 = vmul.f32 %v1193, 0.2
      %v1532 = vmul.f32 %v1196, 0.2
      %v1533 = vmul.f32 %v1201, 0.2
      %v1534 = vmul.f32 %v1204, 0.2
      %v1535 = vmul.f32 %v1209, 0.2
      %v1536 = vmul.f32 %v1212, 0.2
      %v1537 = vmul.f32 %v1217, 0.2
      %v1538 = vmul.f32 %v1220, 0.2
      %v1539 = vmul.f32 %v1225, 0.2
      %v1540 = vmul.f32 %v1228, 0.2
      %v1541 = vmul.f32 %v1233, 0.2
      %v1542 = vmul.f32 %v1236, 0.2
      %v1543 = vmul.f32 %v1241, 0.2
      %v1544 = vmul.f32 %v1244, 0.2
      %v1545 = vmul.f32 %v1249, 0.2
      %v1546 = vmul.f32 %v1252, 0.2
      %v1547 = vmul.f32 %v1257, 0.2
      %v1548 = vmul.f32 %v1260, 0.2
      %v1549 = vmul.f32 %v1265, 0.2
      %v1550 = vmul.f32 %v1268, 0.2
      %v1551 = vmul.f32 %v1273, 0.2
      %v1552 = vmul.f32 %v1276, 0.2
      %v1553 = vmul.f32 %v1281, 0.2
      %v1554 = vmul.f32 %v1284, 0.2
      %v1555 = vmul.f32 %v1289, 0.2
      %v1556 = vmul.f32 %v1292, 0.2
      %v1557 = vmul.f32 %v1297, 0.2
      %v1558 = vmul.f32 %v1300, 0.2
      %v1559 = vsel %vm1303, %v793, %v1431
      %v1560 = vsel %vm1304, %v796, %v1432
      %v1561 = vsel %vm1305, %v801, %v1433
      %v1562 = vsel %vm1306, %v804, %v1434
      %v1563 = vsel %vm1307, %v809, %v1435
      %v1564 = vsel %vm1308, %v812, %v1436
      %v1565 = vsel %vm1309, %v817, %v1437
      %v1566 = vsel %vm1310, %v820, %v1438
      %v1567 = vsel %vm1311, %v825, %v1439
      %v1568 = vsel %vm1312, %v828, %v1440
      %v1569 = vsel %vm1313, %v833, %v1441
      %v1570 = vsel %vm1314, %v836, %v1442
      %v1571 = vsel %vm1315, %v841, %v1443
      %v1572 = vsel %vm1316, %v844, %v1444
      %v1573 = vsel %vm1317, %v849, %v1445
      %v1574 = vsel %vm1318, %v852, %v1446
      %v1575 = vsel %vm1319, %v857, %v1447
      %v1576 = vsel %vm1320, %v860, %v1448
      %v1577 = vsel %vm1321, %v865, %v1449
      %v1578 = vsel %vm1322, %v868, %v1450
      %v1579 = vsel %vm1323, %v873, %v1451
      %v1580 = vsel %vm1324, %v876, %v1452
      %v1581 = vsel %vm1325, %v881, %v1453
      %v1582 = vsel %vm1326, %v884, %v1454
      %v1583 = vsel %vm1327, %v889, %v1455
      %v1584 = vsel %vm1328, %v892, %v1456
      %v1585 = vsel %vm1329, %v897, %v1457
      %v1586 = vsel %vm1330, %v900, %v1458
      %v1587 = vsel %vm1331, %v905, %v1459
      %v1588 = vsel %vm1332, %v908, %v1460
      %v1589 = vsel %vm1333, %v913, %v1461
      %v1590 = vsel %vm1334, %v916, %v1462
      %v1591 = vsel %vm1335, %v921, %v1463
      %v1592 = vsel %vm1336, %v924, %v1464
      %v1593 = vsel %vm1337, %v929, %v1465
      %v1594 = vsel %vm1338, %v932, %v1466
      %v1595 = vsel %vm1339, %v937, %v1467
      %v1596 = vsel %vm1340, %v940, %v1468
      %v1597 = vsel %vm1341, %v945, %v1469
      %v1598 = vsel %vm1342, %v948, %v1470
      %v1599 = vsel %vm1343, %v953, %v1471
      %v1600 = vsel %vm1344, %v956, %v1472
      %v1601 = vsel %vm1345, %v961, %v1473
      %v1602 = vsel %vm1346, %v964, %v1474
      %v1603 = vsel %vm1347, %v969, %v1475
      %v1604 = vsel %vm1348, %v972, %v1476
      %v1605 = vsel %vm1349, %v977, %v1477
      %v1606 = vsel %vm1350, %v980, %v1478
      %v1607 = vsel %vm1351, %v985, %v1479
      %v1608 = vsel %vm1352, %v988, %v1480
      %v1609 = vsel %vm1353, %v993, %v1481
      %v1610 = vsel %vm1354, %v996, %v1482
      %v1611 = vsel %vm1355, %v1001, %v1483
      %v1612 = vsel %vm1356, %v1004, %v1484
      %v1613 = vsel %vm1357, %v1009, %v1485
      %v1614 = vsel %vm1358, %v1012, %v1486
      %v1615 = vsel %vm1359, %v1017, %v1487
      %v1616 = vsel %vm1360, %v1020, %v1488
      %v1617 = vsel %vm1361, %v1025, %v1489
      %v1618 = vsel %vm1362, %v1028, %v1490
      %v1619 = vsel %vm1363, %v1033, %v1491
      %v1620 = vsel %vm1364, %v1036, %v1492
      %v1621 = vsel %vm1365, %v1041, %v1493
      %v1622 = vsel %vm1366, %v1044, %v1494
      %v1623 = vsel %vm1367, %v1049, %v1495
      %v1624 = vsel %vm1368, %v1052, %v1496
      %v1625 = vsel %vm1369, %v1057, %v1497
      %v1626 = vsel %vm1370, %v1060, %v1498
      %v1627 = vsel %vm1371, %v1065, %v1499
      %v1628 = vsel %vm1372, %v1068, %v1500
      %v1629 = vsel %vm1373, %v1073, %v1501
      %v1630 = vsel %vm1374, %v1076, %v1502
      %v1631 = vsel %vm1375, %v1081, %v1503
      %v1632 = vsel %vm1376, %v1084, %v1504
      %v1633 = vsel %vm1377, %v1089, %v1505
      %v1634 = vsel %vm1378, %v1092, %v1506
      %v1635 = vsel %vm1379, %v1097, %v1507
      %v1636 = vsel %vm1380, %v1100, %v1508
      %v1637 = vsel %vm1381, %v1105, %v1509
      %v1638 = vsel %vm1382, %v1108, %v1510
      %v1639 = vsel %vm1383, %v1113, %v1511
      %v1640 = vsel %vm1384, %v1116, %v1512
      %v1641 = vsel %vm1385, %v1121, %v1513
      %v1642 = vsel %vm1386, %v1124, %v1514
      %v1643 = vsel %vm1387, %v1129, %v1515
      %v1644 = vsel %vm1388, %v1132, %v1516
      %v1645 = vsel %vm1389, %v1137, %v1517
      %v1646 = vsel %vm1390, %v1140, %v1518
      %v1647 = vsel %vm1391, %v1145, %v1519
      %v1648 = vsel %vm1392, %v1148, %v1520
      %v1649 = vsel %vm1393, %v1153, %v1521
      %v1650 = vsel %vm1394, %v1156, %v1522
      %v1651 = vsel %vm1395, %v1161, %v1523
      %v1652 = vsel %vm1396, %v1164, %v1524
      %v1653 = vsel %vm1397, %v1169, %v1525
      %v1654 = vsel %vm1398, %v1172, %v1526
      %v1655 = vsel %vm1399, %v1177, %v1527
      %v1656 = vsel %vm1400, %v1180, %v1528
      %v1657 = vsel %vm1401, %v1185, %v1529
      %v1658 = vsel %vm1402, %v1188, %v1530
      %v1659 = vsel %vm1403, %v1193, %v1531
      %v1660 = vsel %vm1404, %v1196, %v1532
      %v1661 = vsel %vm1405, %v1201, %v1533
      %v1662 = vsel %vm1406, %v1204, %v1534
      %v1663 = vsel %vm1407, %v1209, %v1535
      %v1664 = vsel %vm1408, %v1212, %v1536
      %v1665 = vsel %vm1409, %v1217, %v1537
      %v1666 = vsel %vm1410, %v1220, %v1538
      %v1667 = vsel %vm1411, %v1225, %v1539
      %v1668 = vsel %vm1412, %v1228, %v1540
      %v1669 = vsel %vm1413, %v1233, %v1541
      %v1670 = vsel %vm1414, %v1236, %v1542
      %v1671 = vsel %vm1415, %v1241, %v1543
      %v1672 = vsel %vm1416, %v1244, %v1544
      %v1673 = vsel %vm1417, %v1249, %v1545
      %v1674 = vsel %vm1418, %v1252, %v1546
      %v1675 = vsel %vm1419, %v1257, %v1547
      %v1676 = vsel %vm1420, %v1260, %v1548
      %v1677 = vsel %vm1421, %v1265, %v1549
      %v1678 = vsel %vm1422, %v1268, %v1550
      %v1679 = vsel %vm1423, %v1273, %v1551
      %v1680 = vsel %vm1424, %v1276, %v1552
      %v1681 = vsel %vm1425, %v1281, %v1553
      %v1682 = vsel %vm1426, %v1284, %v1554
      %v1683 = vsel %vm1427, %v1289, %v1555
      %v1684 = vsel %vm1428, %v1292, %v1556
      %v1685 = vsel %vm1429, %v1297, %v1557
      %v1686 = vsel %vm1430, %v1300, %v1558
      %v1687 = vpack.c.bf16 %v1560, %v1559
      %v1688 = vpack.c.bf16 %v1562, %v1561
      %v1689 = vpack.c.bf16 %v1564, %v1563
      %v1690 = vpack.c.bf16 %v1566, %v1565
      %v1691 = vpack.c.bf16 %v1568, %v1567
      %v1692 = vpack.c.bf16 %v1570, %v1569
      %v1693 = vpack.c.bf16 %v1572, %v1571
      %v1694 = vpack.c.bf16 %v1574, %v1573
      %v1695 = vpack.c.bf16 %v1576, %v1575
      %v1696 = vpack.c.bf16 %v1578, %v1577
      %v1697 = vpack.c.bf16 %v1580, %v1579
      %v1698 = vpack.c.bf16 %v1582, %v1581
      %v1699 = vpack.c.bf16 %v1584, %v1583
      %v1700 = vpack.c.bf16 %v1586, %v1585
      %v1701 = vpack.c.bf16 %v1588, %v1587
      %v1702 = vpack.c.bf16 %v1590, %v1589
      %v1703 = vpack.c.bf16 %v1592, %v1591
      %v1704 = vpack.c.bf16 %v1594, %v1593
      %v1705 = vpack.c.bf16 %v1596, %v1595
      %v1706 = vpack.c.bf16 %v1598, %v1597
      %v1707 = vpack.c.bf16 %v1600, %v1599
      %v1708 = vpack.c.bf16 %v1602, %v1601
      %v1709 = vpack.c.bf16 %v1604, %v1603
      %v1710 = vpack.c.bf16 %v1606, %v1605
      %v1711 = vpack.c.bf16 %v1608, %v1607
      %v1712 = vpack.c.bf16 %v1610, %v1609
      %v1713 = vpack.c.bf16 %v1612, %v1611
      %v1714 = vpack.c.bf16 %v1614, %v1613
      %v1715 = vpack.c.bf16 %v1616, %v1615
      %v1716 = vpack.c.bf16 %v1618, %v1617
      %v1717 = vpack.c.bf16 %v1620, %v1619
      %v1718 = vpack.c.bf16 %v1622, %v1621
      %v1719 = vpack.c.bf16 %v1624, %v1623
      %v1720 = vpack.c.bf16 %v1626, %v1625
      %v1721 = vpack.c.bf16 %v1628, %v1627
      %v1722 = vpack.c.bf16 %v1630, %v1629
      %v1723 = vpack.c.bf16 %v1632, %v1631
      %v1724 = vpack.c.bf16 %v1634, %v1633
      %v1725 = vpack.c.bf16 %v1636, %v1635
      %v1726 = vpack.c.bf16 %v1638, %v1637
      %v1727 = vpack.c.bf16 %v1640, %v1639
      %v1728 = vpack.c.bf16 %v1642, %v1641
      %v1729 = vpack.c.bf16 %v1644, %v1643
      %v1730 = vpack.c.bf16 %v1646, %v1645
      %v1731 = vpack.c.bf16 %v1648, %v1647
      %v1732 = vpack.c.bf16 %v1650, %v1649
      %v1733 = vpack.c.bf16 %v1652, %v1651
      %v1734 = vpack.c.bf16 %v1654, %v1653
      %v1735 = vpack.c.bf16 %v1656, %v1655
      %v1736 = vpack.c.bf16 %v1658, %v1657
      %v1737 = vpack.c.bf16 %v1660, %v1659
      %v1738 = vpack.c.bf16 %v1662, %v1661
      %v1739 = vpack.c.bf16 %v1664, %v1663
      %v1740 = vpack.c.bf16 %v1666, %v1665
      %v1741 = vpack.c.bf16 %v1668, %v1667
      %v1742 = vpack.c.bf16 %v1670, %v1669
      %v1743 = vpack.c.bf16 %v1672, %v1671
      %v1744 = vpack.c.bf16 %v1674, %v1673
      %v1745 = vpack.c.bf16 %v1676, %v1675
      %v1746 = vpack.c.bf16 %v1678, %v1677
      %v1747 = vpack.c.bf16 %v1680, %v1679
      %v1748 = vpack.c.bf16 %v1682, %v1681
      %v1749 = vpack.c.bf16 %v1684, %v1683
      %v1750 = vpack.c.bf16 %v1686, %v1685
      %v1815 = vunpack.c.l.b16 %v1687
      %v1816 = vunpack.c.h.b16 %v1687
      %v1817 = vunpack.c.l.b16 %v1688
      %v1818 = vunpack.c.h.b16 %v1688
      %v1819 = vunpack.c.l.b16 %v1689
      %v1820 = vunpack.c.h.b16 %v1689
      %v1821 = vunpack.c.l.b16 %v1690
      %v1822 = vunpack.c.h.b16 %v1690
      %v1823 = vunpack.c.l.b16 %v1691
      %v1824 = vunpack.c.h.b16 %v1691
      %v1825 = vunpack.c.l.b16 %v1692
      %v1826 = vunpack.c.h.b16 %v1692
      %v1827 = vunpack.c.l.b16 %v1693
      %v1828 = vunpack.c.h.b16 %v1693
      %v1829 = vunpack.c.l.b16 %v1694
      %v1830 = vunpack.c.h.b16 %v1694
      %v1831 = vunpack.c.l.b16 %v1695
      %v1832 = vunpack.c.h.b16 %v1695
      %v1833 = vunpack.c.l.b16 %v1696
      %v1834 = vunpack.c.h.b16 %v1696
      %v1835 = vunpack.c.l.b16 %v1697
      %v1836 = vunpack.c.h.b16 %v1697
      %v1837 = vunpack.c.l.b16 %v1698
      %v1838 = vunpack.c.h.b16 %v1698
      %v1839 = vunpack.c.l.b16 %v1699
      %v1840 = vunpack.c.h.b16 %v1699
      %v1841 = vunpack.c.l.b16 %v1700
      %v1842 = vunpack.c.h.b16 %v1700
      %v1843 = vunpack.c.l.b16 %v1701
      %v1844 = vunpack.c.h.b16 %v1701
      %v1845 = vunpack.c.l.b16 %v1702
      %v1846 = vunpack.c.h.b16 %v1702
      %v1847 = vunpack.c.l.b16 %v1703
      %v1848 = vunpack.c.h.b16 %v1703
      %v1849 = vunpack.c.l.b16 %v1704
      %v1850 = vunpack.c.h.b16 %v1704
      %v1851 = vunpack.c.l.b16 %v1705
      %v1852 = vunpack.c.h.b16 %v1705
      %v1853 = vunpack.c.l.b16 %v1706
      %v1854 = vunpack.c.h.b16 %v1706
      %v1855 = vunpack.c.l.b16 %v1707
      %v1856 = vunpack.c.h.b16 %v1707
      %v1857 = vunpack.c.l.b16 %v1708
      %v1858 = vunpack.c.h.b16 %v1708
      %v1859 = vunpack.c.l.b16 %v1709
      %v1860 = vunpack.c.h.b16 %v1709
      %v1861 = vunpack.c.l.b16 %v1710
      %v1862 = vunpack.c.h.b16 %v1710
      %v1863 = vunpack.c.l.b16 %v1711
      %v1864 = vunpack.c.h.b16 %v1711
      %v1865 = vunpack.c.l.b16 %v1712
      %v1866 = vunpack.c.h.b16 %v1712
      %v1867 = vunpack.c.l.b16 %v1713
      %v1868 = vunpack.c.h.b16 %v1713
      %v1869 = vunpack.c.l.b16 %v1714
      %v1870 = vunpack.c.h.b16 %v1714
      %v1871 = vunpack.c.l.b16 %v1715
      %v1872 = vunpack.c.h.b16 %v1715
      %v1873 = vunpack.c.l.b16 %v1716
      %v1874 = vunpack.c.h.b16 %v1716
      %v1875 = vunpack.c.l.b16 %v1717
      %v1876 = vunpack.c.h.b16 %v1717
      %v1877 = vunpack.c.l.b16 %v1718
      %v1878 = vunpack.c.h.b16 %v1718
      %v1879 = vunpack.c.l.b16 %v1719
      %v1880 = vunpack.c.h.b16 %v1719
      %v1881 = vunpack.c.l.b16 %v1720
      %v1882 = vunpack.c.h.b16 %v1720
      %v1883 = vunpack.c.l.b16 %v1721
      %v1884 = vunpack.c.h.b16 %v1721
      %v1885 = vunpack.c.l.b16 %v1722
      %v1886 = vunpack.c.h.b16 %v1722
      %v1887 = vunpack.c.l.b16 %v1723
      %v1888 = vunpack.c.h.b16 %v1723
      %v1889 = vunpack.c.l.b16 %v1724
      %v1890 = vunpack.c.h.b16 %v1724
      %v1891 = vunpack.c.l.b16 %v1725
      %v1892 = vunpack.c.h.b16 %v1725
      %v1893 = vunpack.c.l.b16 %v1726
      %v1894 = vunpack.c.h.b16 %v1726
      %v1895 = vunpack.c.l.b16 %v1727
      %v1896 = vunpack.c.h.b16 %v1727
      %v1897 = vunpack.c.l.b16 %v1728
      %v1898 = vunpack.c.h.b16 %v1728
      %v1899 = vunpack.c.l.b16 %v1729
      %v1900 = vunpack.c.h.b16 %v1729
      %v1901 = vunpack.c.l.b16 %v1730
      %v1902 = vunpack.c.h.b16 %v1730
      %v1903 = vunpack.c.l.b16 %v1731
      %v1904 = vunpack.c.h.b16 %v1731
      %v1905 = vunpack.c.l.b16 %v1732
      %v1906 = vunpack.c.h.b16 %v1732
      %v1907 = vunpack.c.l.b16 %v1733
      %v1908 = vunpack.c.h.b16 %v1733
      %v1909 = vunpack.c.l.b16 %v1734
      %v1910 = vunpack.c.h.b16 %v1734
      %v1911 = vunpack.c.l.b16 %v1735
      %v1912 = vunpack.c.h.b16 %v1735
      %v1913 = vunpack.c.l.b16 %v1736
      %v1914 = vunpack.c.h.b16 %v1736
      %v1915 = vunpack.c.l.b16 %v1737
      %v1916 = vunpack.c.h.b16 %v1737
      %v1917 = vunpack.c.l.b16 %v1738
      %v1918 = vunpack.c.h.b16 %v1738
      %v1919 = vunpack.c.l.b16 %v1739
      %v1920 = vunpack.c.h.b16 %v1739
      %v1921 = vunpack.c.l.b16 %v1740
      %v1922 = vunpack.c.h.b16 %v1740
      %v1923 = vunpack.c.l.b16 %v1741
      %v1924 = vunpack.c.h.b16 %v1741
      %v1925 = vunpack.c.l.b16 %v1742
      %v1926 = vunpack.c.h.b16 %v1742
      %v1927 = vunpack.c.l.b16 %v1743
      %v1928 = vunpack.c.h.b16 %v1743
      %v1929 = vunpack.c.l.b16 %v1744
      %v1930 = vunpack.c.h.b16 %v1744
      %v1931 = vunpack.c.l.b16 %v1745
      %v1932 = vunpack.c.h.b16 %v1745
      %v1933 = vunpack.c.l.b16 %v1746
      %v1934 = vunpack.c.h.b16 %v1746
      %v1935 = vunpack.c.l.b16 %v1747
      %v1936 = vunpack.c.h.b16 %v1747
      %v1937 = vunpack.c.l.b16 %v1748
      %v1938 = vunpack.c.h.b16 %v1748
      %v1939 = vunpack.c.l.b16 %v1749
      %v1940 = vunpack.c.h.b16 %v1749
      %v1941 = vunpack.c.l.b16 %v1750
      %v1942 = vunpack.c.h.b16 %v1750
      %v1943 = vpack.c.b16 %v1815, %v1815
      %v1944 = vpack.c.b16 %v1816, %v1816
      %v1945 = vpack.c.b16 %v1817, %v1817
      %v1946 = vpack.c.b16 %v1818, %v1818
      %v1947 = vpack.c.b16 %v1819, %v1819
      %v1948 = vpack.c.b16 %v1820, %v1820
      %v1949 = vpack.c.b16 %v1821, %v1821
      %v1950 = vpack.c.b16 %v1822, %v1822
      %v1951 = vpack.c.b16 %v1823, %v1823
      %v1952 = vpack.c.b16 %v1824, %v1824
      %v1953 = vpack.c.b16 %v1825, %v1825
      %v1954 = vpack.c.b16 %v1826, %v1826
      %v1955 = vpack.c.b16 %v1827, %v1827
      %v1956 = vpack.c.b16 %v1828, %v1828
      %v1957 = vpack.c.b16 %v1829, %v1829
      %v1958 = vpack.c.b16 %v1830, %v1830
      %v1959 = vpack.c.b16 %v1831, %v1831
      %v1960 = vpack.c.b16 %v1832, %v1832
      %v1961 = vpack.c.b16 %v1833, %v1833
      %v1962 = vpack.c.b16 %v1834, %v1834
      %v1963 = vpack.c.b16 %v1835, %v1835
      %v1964 = vpack.c.b16 %v1836, %v1836
      %v1965 = vpack.c.b16 %v1837, %v1837
      %v1966 = vpack.c.b16 %v1838, %v1838
      %v1967 = vpack.c.b16 %v1839, %v1839
      %v1968 = vpack.c.b16 %v1840, %v1840
      %v1969 = vpack.c.b16 %v1841, %v1841
      %v1970 = vpack.c.b16 %v1842, %v1842
      %v1971 = vpack.c.b16 %v1843, %v1843
      %v1972 = vpack.c.b16 %v1844, %v1844
      %v1973 = vpack.c.b16 %v1845, %v1845
      %v1974 = vpack.c.b16 %v1846, %v1846
      %v1975 = vpack.c.b16 %v1847, %v1847
      %v1976 = vpack.c.b16 %v1848, %v1848
      %v1977 = vpack.c.b16 %v1849, %v1849
      %v1978 = vpack.c.b16 %v1850, %v1850
      %v1979 = vpack.c.b16 %v1851, %v1851
      %v1980 = vpack.c.b16 %v1852, %v1852
      %v1981 = vpack.c.b16 %v1853, %v1853
      %v1982 = vpack.c.b16 %v1854, %v1854
      %v1983 = vpack.c.b16 %v1855, %v1855
      %v1984 = vpack.c.b16 %v1856, %v1856
      %v1985 = vpack.c.b16 %v1857, %v1857
      %v1986 = vpack.c.b16 %v1858, %v1858
      %v1987 = vpack.c.b16 %v1859, %v1859
      %v1988 = vpack.c.b16 %v1860, %v1860
      %v1989 = vpack.c.b16 %v1861, %v1861
      %v1990 = vpack.c.b16 %v1862, %v1862
      %v1991 = vpack.c.b16 %v1863, %v1863
      %v1992 = vpack.c.b16 %v1864, %v1864
      %v1993 = vpack.c.b16 %v1865, %v1865
      %v1994 = vpack.c.b16 %v1866, %v1866
      %v1995 = vpack.c.b16 %v1867, %v1867
      %v1996 = vpack.c.b16 %v1868, %v1868
      %v1997 = vpack.c.b16 %v1869, %v1869
      %v1998 = vpack.c.b16 %v1870, %v1870
      %v1999 = vpack.c.b16 %v1871, %v1871
      %v2000 = vpack.c.b16 %v1872, %v1872
      %v2001 = vpack.c.b16 %v1873, %v1873
      %v2002 = vpack.c.b16 %v1874, %v1874
      %v2003 = vpack.c.b16 %v1875, %v1875
      %v2004 = vpack.c.b16 %v1876, %v1876
      %v2005 = vpack.c.b16 %v1877, %v1877
      %v2006 = vpack.c.b16 %v1878, %v1878
      %v2007 = vpack.c.b16 %v1879, %v1879
      %v2008 = vpack.c.b16 %v1880, %v1880
      %v2009 = vpack.c.b16 %v1881, %v1881
      %v2010 = vpack.c.b16 %v1882, %v1882
      %v2011 = vpack.c.b16 %v1883, %v1883
      %v2012 = vpack.c.b16 %v1884, %v1884
      %v2013 = vpack.c.b16 %v1885, %v1885
      %v2014 = vpack.c.b16 %v1886, %v1886
      %v2015 = vpack.c.b16 %v1887, %v1887
      %v2016 = vpack.c.b16 %v1888, %v1888
      %v2017 = vpack.c.b16 %v1889, %v1889
      %v2018 = vpack.c.b16 %v1890, %v1890
      %v2019 = vpack.c.b16 %v1891, %v1891
      %v2020 = vpack.c.b16 %v1892, %v1892
      %v2021 = vpack.c.b16 %v1893, %v1893
      %v2022 = vpack.c.b16 %v1894, %v1894
      %v2023 = vpack.c.b16 %v1895, %v1895
      %v2024 = vpack.c.b16 %v1896, %v1896
      %v2025 = vpack.c.b16 %v1897, %v1897
      %v2026 = vpack.c.b16 %v1898, %v1898
      %v2027 = vpack.c.b16 %v1899, %v1899
      %v2028 = vpack.c.b16 %v1900, %v1900
      %v2029 = vpack.c.b16 %v1901, %v1901
      %v2030 = vpack.c.b16 %v1902, %v1902
      %v2031 = vpack.c.b16 %v1903, %v1903
      %v2032 = vpack.c.b16 %v1904, %v1904
      %v2033 = vpack.c.b16 %v1905, %v1905
      %v2034 = vpack.c.b16 %v1906, %v1906
      %v2035 = vpack.c.b16 %v1907, %v1907
      %v2036 = vpack.c.b16 %v1908, %v1908
      %v2037 = vpack.c.b16 %v1909, %v1909
      %v2038 = vpack.c.b16 %v1910, %v1910
      %v2039 = vpack.c.b16 %v1911, %v1911
      %v2040 = vpack.c.b16 %v1912, %v1912
      %v2041 = vpack.c.b16 %v1913, %v1913
      %v2042 = vpack.c.b16 %v1914, %v1914
      %v2043 = vpack.c.b16 %v1915, %v1915
      %v2044 = vpack.c.b16 %v1916, %v1916
      %v2045 = vpack.c.b16 %v1917, %v1917
      %v2046 = vpack.c.b16 %v1918, %v1918
      %v2047 = vpack.c.b16 %v1919, %v1919
      %v2048 = vpack.c.b16 %v1920, %v1920
      %v2049 = vpack.c.b16 %v1921, %v1921
      %v2050 = vpack.c.b16 %v1922, %v1922
      %v2051 = vpack.c.b16 %v1923, %v1923
      %v2052 = vpack.c.b16 %v1924, %v1924
      %v2053 = vpack.c.b16 %v1925, %v1925
      %v2054 = vpack.c.b16 %v1926, %v1926
      %v2055 = vpack.c.b16 %v1927, %v1927
      %v2056 = vpack.c.b16 %v1928, %v1928
      %v2057 = vpack.c.b16 %v1929, %v1929
      %v2058 = vpack.c.b16 %v1930, %v1930
      %v2059 = vpack.c.b16 %v1931, %v1931
      %v2060 = vpack.c.b16 %v1932, %v1932
      %v2061 = vpack.c.b16 %v1933, %v1933
      %v2062 = vpack.c.b16 %v1934, %v1934
      %v2063 = vpack.c.b16 %v1935, %v1935
      %v2064 = vpack.c.b16 %v1936, %v1936
      %v2065 = vpack.c.b16 %v1937, %v1937
      %v2066 = vpack.c.b16 %v1938, %v1938
      %v2067 = vpack.c.b16 %v1939, %v1939
      %v2068 = vpack.c.b16 %v1940, %v1940
      %v2069 = vpack.c.b16 %v1941, %v1941
      %v2070 = vpack.c.b16 %v1942, %v1942
      %vm2199 = vcmask 60416
      %2200 = vst.msk [vmem:[%s172] sm:$0xf] %vm2199, %v1943
      %2201 = vst.msk [vmem:[%s172 + $0x4] sm:$0xf] %vm2199, %v1944
      %2202 = vst.msk [vmem:[%s172 + $0x8] sm:$0xf] %vm2199, %v1945
      %2203 = vst.msk [vmem:[%s172 + $0xc] sm:$0xf] %vm2199, %v1946
      %2204 = vst.msk [vmem:[%s172 + $0x10] sm:$0xf] %vm2199, %v1947
      %2205 = vst.msk [vmem:[%s172 + $0x14] sm:$0xf] %vm2199, %v1948
      %2206 = vst.msk [vmem:[%s172 + $0x18] sm:$0xf] %vm2199, %v1949
      %2207 = vst.msk [vmem:[%s172 + $0x1c] sm:$0xf] %vm2199, %v1950
      %2208 = vst.msk [vmem:[%s172 + $0x20] sm:$0xf] %vm2199, %v1951
      %2209 = vst.msk [vmem:[%s172 + $0x24] sm:$0xf] %vm2199, %v1952
      %2210 = vst.msk [vmem:[%s172 + $0x28] sm:$0xf] %vm2199, %v1953
      %2211 = vst.msk [vmem:[%s172 + $0x2c] sm:$0xf] %vm2199, %v1954
      %2212 = vst.msk [vmem:[%s172 + $0x30] sm:$0xf] %vm2199, %v1955
      %2213 = vst.msk [vmem:[%s172 + $0x34] sm:$0xf] %vm2199, %v1956
      %2214 = vst.msk [vmem:[%s172 + $0x38] sm:$0xf] %vm2199, %v1957
      %2215 = vst.msk [vmem:[%s172 + $0x3c] sm:$0xf] %vm2199, %v1958
      %2216 = vst.msk [vmem:[%s172 + $0x40] sm:$0xf] %vm2199, %v1959
      %2217 = vst.msk [vmem:[%s172 + $0x44] sm:$0xf] %vm2199, %v1960
      %2218 = vst.msk [vmem:[%s172 + $0x48] sm:$0xf] %vm2199, %v1961
      %2219 = vst.msk [vmem:[%s172 + $0x4c] sm:$0xf] %vm2199, %v1962
      %2220 = vst.msk [vmem:[%s172 + $0x50] sm:$0xf] %vm2199, %v1963
      %2221 = vst.msk [vmem:[%s172 + $0x54] sm:$0xf] %vm2199, %v1964
      %2222 = vst.msk [vmem:[%s172 + $0x58] sm:$0xf] %vm2199, %v1965
      %2223 = vst.msk [vmem:[%s172 + $0x5c] sm:$0xf] %vm2199, %v1966
      %2224 = vst.msk [vmem:[%s172 + $0x60] sm:$0xf] %vm2199, %v1967
      %2225 = vst.msk [vmem:[%s172 + $0x64] sm:$0xf] %vm2199, %v1968
      %2226 = vst.msk [vmem:[%s172 + $0x68] sm:$0xf] %vm2199, %v1969
      %2227 = vst.msk [vmem:[%s172 + $0x6c] sm:$0xf] %vm2199, %v1970
      %2228 = vst.msk [vmem:[%s172 + $0x70] sm:$0xf] %vm2199, %v1971
      %2229 = vst.msk [vmem:[%s172 + $0x74] sm:$0xf] %vm2199, %v1972
      %2230 = vst.msk [vmem:[%s172 + $0x78] sm:$0xf] %vm2199, %v1973
      %2231 = vst.msk [vmem:[%s172 + $0x7c] sm:$0xf] %vm2199, %v1974
      %2232 = vst.msk [vmem:[%s172 + $0x80] sm:$0xf] %vm2199, %v1975
      %2233 = vst.msk [vmem:[%s172 + $0x84] sm:$0xf] %vm2199, %v1976
      %2234 = vst.msk [vmem:[%s172 + $0x88] sm:$0xf] %vm2199, %v1977
      %2235 = vst.msk [vmem:[%s172 + $0x8c] sm:$0xf] %vm2199, %v1978
      %2236 = vst.msk [vmem:[%s172 + $0x90] sm:$0xf] %vm2199, %v1979
      %2237 = vst.msk [vmem:[%s172 + $0x94] sm:$0xf] %vm2199, %v1980
      %2238 = vst.msk [vmem:[%s172 + $0x98] sm:$0xf] %vm2199, %v1981
      %2239 = vst.msk [vmem:[%s172 + $0x9c] sm:$0xf] %vm2199, %v1982
      %2240 = vst.msk [vmem:[%s172 + $0xa0] sm:$0xf] %vm2199, %v1983
      %2241 = vst.msk [vmem:[%s172 + $0xa4] sm:$0xf] %vm2199, %v1984
      %2242 = vst.msk [vmem:[%s172 + $0xa8] sm:$0xf] %vm2199, %v1985
      %2243 = vst.msk [vmem:[%s172 + $0xac] sm:$0xf] %vm2199, %v1986
      %2244 = vst.msk [vmem:[%s172 + $0xb0] sm:$0xf] %vm2199, %v1987
      %2245 = vst.msk [vmem:[%s172 + $0xb4] sm:$0xf] %vm2199, %v1988
      %2246 = vst.msk [vmem:[%s172 + $0xb8] sm:$0xf] %vm2199, %v1989
      %2247 = vst.msk [vmem:[%s172 + $0xbc] sm:$0xf] %vm2199, %v1990
      %2248 = vst.msk [vmem:[%s172 + $0xc0] sm:$0xf] %vm2199, %v1991
      %2249 = vst.msk [vmem:[%s172 + $0xc4] sm:$0xf] %vm2199, %v1992
      %2250 = vst.msk [vmem:[%s172 + $0xc8] sm:$0xf] %vm2199, %v1993
      %2251 = vst.msk [vmem:[%s172 + $0xcc] sm:$0xf] %vm2199, %v1994
      %2252 = vst.msk [vmem:[%s172 + $0xd0] sm:$0xf] %vm2199, %v1995
      %2253 = vst.msk [vmem:[%s172 + $0xd4] sm:$0xf] %vm2199, %v1996
      %2254 = vst.msk [vmem:[%s172 + $0xd8] sm:$0xf] %vm2199, %v1997
      %2255 = vst.msk [vmem:[%s172 + $0xdc] sm:$0xf] %vm2199, %v1998
      %2256 = vst.msk [vmem:[%s172 + $0xe0] sm:$0xf] %vm2199, %v1999
      %2257 = vst.msk [vmem:[%s172 + $0xe4] sm:$0xf] %vm2199, %v2000
      %2258 = vst.msk [vmem:[%s172 + $0xe8] sm:$0xf] %vm2199, %v2001
      %2259 = vst.msk [vmem:[%s172 + $0xec] sm:$0xf] %vm2199, %v2002
      %2260 = vst.msk [vmem:[%s172 + $0xf0] sm:$0xf] %vm2199, %v2003
      %2261 = vst.msk [vmem:[%s172 + $0xf4] sm:$0xf] %vm2199, %v2004
      %2262 = vst.msk [vmem:[%s172 + $0xf8] sm:$0xf] %vm2199, %v2005
      %2263 = vst.msk [vmem:[%s172 + $0xfc] sm:$0xf] %vm2199, %v2006
      %2264 = vst.msk [vmem:[%s172 + $0x100] sm:$0xf] %vm2199, %v2007
      %2265 = vst.msk [vmem:[%s172 + $0x104] sm:$0xf] %vm2199, %v2008
      %2266 = vst.msk [vmem:[%s172 + $0x108] sm:$0xf] %vm2199, %v2009
      %2267 = vst.msk [vmem:[%s172 + $0x10c] sm:$0xf] %vm2199, %v2010
      %2268 = vst.msk [vmem:[%s172 + $0x110] sm:$0xf] %vm2199, %v2011
      %2269 = vst.msk [vmem:[%s172 + $0x114] sm:$0xf] %vm2199, %v2012
      %2270 = vst.msk [vmem:[%s172 + $0x118] sm:$0xf] %vm2199, %v2013
      %2271 = vst.msk [vmem:[%s172 + $0x11c] sm:$0xf] %vm2199, %v2014
      %2272 = vst.msk [vmem:[%s172 + $0x120] sm:$0xf] %vm2199, %v2015
      %2273 = vst.msk [vmem:[%s172 + $0x124] sm:$0xf] %vm2199, %v2016
      %2274 = vst.msk [vmem:[%s172 + $0x128] sm:$0xf] %vm2199, %v2017
      %2275 = vst.msk [vmem:[%s172 + $0x12c] sm:$0xf] %vm2199, %v2018
      %2276 = vst.msk [vmem:[%s172 + $0x130] sm:$0xf] %vm2199, %v2019
      %2277 = vst.msk [vmem:[%s172 + $0x134] sm:$0xf] %vm2199, %v2020
      %2278 = vst.msk [vmem:[%s172 + $0x138] sm:$0xf] %vm2199, %v2021
      %2279 = vst.msk [vmem:[%s172 + $0x13c] sm:$0xf] %vm2199, %v2022
      %2280 = vst.msk [vmem:[%s172 + $0x140] sm:$0xf] %vm2199, %v2023
      %2281 = vst.msk [vmem:[%s172 + $0x144] sm:$0xf] %vm2199, %v2024
      %2282 = vst.msk [vmem:[%s172 + $0x148] sm:$0xf] %vm2199, %v2025
      %2283 = vst.msk [vmem:[%s172 + $0x14c] sm:$0xf] %vm2199, %v2026
      %2284 = vst.msk [vmem:[%s172 + $0x150] sm:$0xf] %vm2199, %v2027
      %2285 = vst.msk [vmem:[%s172 + $0x154] sm:$0xf] %vm2199, %v2028
      %2286 = vst.msk [vmem:[%s172 + $0x158] sm:$0xf] %vm2199, %v2029
      %2287 = vst.msk [vmem:[%s172 + $0x15c] sm:$0xf] %vm2199, %v2030
      %2288 = vst.msk [vmem:[%s172 + $0x160] sm:$0xf] %vm2199, %v2031
      %2289 = vst.msk [vmem:[%s172 + $0x164] sm:$0xf] %vm2199, %v2032
      %2290 = vst.msk [vmem:[%s172 + $0x168] sm:$0xf] %vm2199, %v2033
      %2291 = vst.msk [vmem:[%s172 + $0x16c] sm:$0xf] %vm2199, %v2034
      %2292 = vst.msk [vmem:[%s172 + $0x170] sm:$0xf] %vm2199, %v2035
      %2293 = vst.msk [vmem:[%s172 + $0x174] sm:$0xf] %vm2199, %v2036
      %2294 = vst.msk [vmem:[%s172 + $0x178] sm:$0xf] %vm2199, %v2037
      %2295 = vst.msk [vmem:[%s172 + $0x17c] sm:$0xf] %vm2199, %v2038
      %2296 = vst.msk [vmem:[%s172 + $0x180] sm:$0xf] %vm2199, %v2039
      %2297 = vst.msk [vmem:[%s172 + $0x184] sm:$0xf] %vm2199, %v2040
      %2298 = vst.msk [vmem:[%s172 + $0x188] sm:$0xf] %vm2199, %v2041
      %2299 = vst.msk [vmem:[%s172 + $0x18c] sm:$0xf] %vm2199, %v2042
      %2300 = vst.msk [vmem:[%s172 + $0x190] sm:$0xf] %vm2199, %v2043
      %2301 = vst.msk [vmem:[%s172 + $0x194] sm:$0xf] %vm2199, %v2044
      %2302 = vst.msk [vmem:[%s172 + $0x198] sm:$0xf] %vm2199, %v2045
      %2303 = vst.msk [vmem:[%s172 + $0x19c] sm:$0xf] %vm2199, %v2046
      %2304 = vst.msk [vmem:[%s172 + $0x1a0] sm:$0xf] %vm2199, %v2047
      %2305 = vst.msk [vmem:[%s172 + $0x1a4] sm:$0xf] %vm2199, %v2048
      %2306 = vst.msk [vmem:[%s172 + $0x1a8] sm:$0xf] %vm2199, %v2049
      %2307 = vst.msk [vmem:[%s172 + $0x1ac] sm:$0xf] %vm2199, %v2050
      %2308 = vst.msk [vmem:[%s172 + $0x1b0] sm:$0xf] %vm2199, %v2051
      %2309 = vst.msk [vmem:[%s172 + $0x1b4] sm:$0xf] %vm2199, %v2052
      %2310 = vst.msk [vmem:[%s172 + $0x1b8] sm:$0xf] %vm2199, %v2053
      %2311 = vst.msk [vmem:[%s172 + $0x1bc] sm:$0xf] %vm2199, %v2054
      %2312 = vst.msk [vmem:[%s172 + $0x1c0] sm:$0xf] %vm2199, %v2055
      %2313 = vst.msk [vmem:[%s172 + $0x1c4] sm:$0xf] %vm2199, %v2056
      %2314 = vst.msk [vmem:[%s172 + $0x1c8] sm:$0xf] %vm2199, %v2057
      %2315 = vst.msk [vmem:[%s172 + $0x1cc] sm:$0xf] %vm2199, %v2058
      %2316 = vst.msk [vmem:[%s172 + $0x1d0] sm:$0xf] %vm2199, %v2059
      %2317 = vst.msk [vmem:[%s172 + $0x1d4] sm:$0xf] %vm2199, %v2060
      %2318 = vst.msk [vmem:[%s172 + $0x1d8] sm:$0xf] %vm2199, %v2061
      %2319 = vst.msk [vmem:[%s172 + $0x1dc] sm:$0xf] %vm2199, %v2062
      %2320 = vst.msk [vmem:[%s172 + $0x1e0] sm:$0xf] %vm2199, %v2063
      %2321 = vst.msk [vmem:[%s172 + $0x1e4] sm:$0xf] %vm2199, %v2064
      %2322 = vst.msk [vmem:[%s172 + $0x1e8] sm:$0xf] %vm2199, %v2065
      %2323 = vst.msk [vmem:[%s172 + $0x1ec] sm:$0xf] %vm2199, %v2066
      %2324 = vst.msk [vmem:[%s172 + $0x1f0] sm:$0xf] %vm2199, %v2067
      %2325 = vst.msk [vmem:[%s172 + $0x1f4] sm:$0xf] %vm2199, %v2068
      %2326 = vst.msk [vmem:[%s172 + $0x1f8] sm:$0xf] %vm2199, %v2069
      %2327 = vst.msk [vmem:[%s172 + $0x1fc] sm:$0xf] %vm2199, %v2070
      %s2328 = smul.u32 128, %s14
      %p2329 = scmp.lt.s32.totalorder %s2328, 255
      %s2330 = scalar_select %p2329, %s2328, 255
      %s2331 = smul.addr %s2330, 4
      %s2332 = scalar_lea.vmem %s3, %s2331
      // Predicated region
      $region33: #{egan_discriminator_forward.4} parent=31 // pred_check
        %p2333 = pneg %p100
      $region34: #{egan_discriminator_forward.4} parent=31 // pred_check_branch
        %2335 = sbr.rel (%p2333) target = $region36
      $region35: #{egan_discriminator_forward.4} parent=31 // pred_region
        %s2336 = smul.u32 128, %s14
      $region36: #{egan_discriminator_forward.4} parent=31 // pred_fallthru
        _
    $region32: #{egan_discriminator_forward.4} parent=5 // pred_fallthru
      _
    %p2337 = scmp.le.s32.totalorder 2, %s9
    // Predicated region
    $region37: #{egan_discriminator_forward.4} parent=5 // pred_check
      %p2338 = pneg %p2337
    $region38: #{egan_discriminator_forward.4} parent=5 // pred_check_branch
      %2340 = sbr.rel (%p2338) target = $region40
    $region39: #{egan_discriminator_forward.4} parent=5 // pred_region
      %s2341 = ssub.s32 %s9, 2
      // Predicated region
      $region41: #{egan_discriminator_forward.4} parent=39 // pred_check
        %p2342 = pneg %p106
      $region42: #{egan_discriminator_forward.4} parent=39 // pred_check_branch
        %2344 = sbr.rel (%p2342) target = $region44
      $region43: #{egan_discriminator_forward.4} parent=39 // pred_region
        %s2345 = smul.u32 128, %s15
        %p2346 = scmp.lt.s32.totalorder %s2345, 255
        %s2347 = scalar_select %p2346, %s2345, 255
        %s2348 = smul.addr %s2347, 4
        %s2349 = scalar_lea.vmem %s3, %s2348
      $region44: #{egan_discriminator_forward.4} parent=39 // pred_fallthru
        _
    $region40: #{egan_discriminator_forward.4} parent=5 // pred_fallthru
      _
  $region6: #{egan_discriminator_forward.4} parent=0 // loop_footer
    %s13 = sadd.s32 1, %s9
  $region7: #{egan_discriminator_forward.4} parent=0 // loop_footer_branch
    %8 = sbr.rel target = $region3
  $region8: #{egan_discriminator_forward.4} parent=0 // loop_exit
    _

// kernel: egan_discriminator_forward.5
$region0: #{egan_discriminator_forward.5}
  #allocation0 [shape = 'u32[]', space=smem, size = 0x4, offset = 0x4, fixed_abs, tag = 'smem constant byte address 0x4 - core index']
  #allocation1 [shape = 'u32[144,128]{1,0:T(1,128)}', space=vmem, size = 0x12000, scoped, tag = 'internal scratch']
  %s0 = inlined_call_operand.vmem [shape: bf16[512,128], index: 0, kind: input, shape index: {}]
  %s1 = inlined_call_operand.vmem [shape: bf16[128,16], index: 1, kind: input, shape index: {}]
  %s2 = inlined_call_operand.vmem [shape: f32[1,16], index: 2, kind: input, shape index: {}]
  %s3 = inlined_call_operand.vmem [shape: f32[1,16], index: 3, kind: input, shape index: {}]
  %s4 = inlined_call_operand.vmem [shape: f32[1,16], index: 4, kind: input, shape index: {}]
  %s5 = inlined_call_operand.vmem [shape: bf16[512,16], index: 5, kind: output, shape index: {}]
  %s6 = sld [smem:[#allocation0]]
  $region30: #{egan_discriminator_forward.5} parent=0
    _
  %s8 = ssub.s32 1, %s6
  %s9 = scalar_select 0, %s8, %s6
  // Predicated region
  $region2: #{egan_discriminator_forward.5} parent=0 // pred_check
    _
  $region3: #{egan_discriminator_forward.5} parent=0 // pred_check_branch
    %11 = sbr.rel (0) target = $region5
  $region4: #{egan_discriminator_forward.5} parent=0 // pred_region
    _
  $region5: #{egan_discriminator_forward.5} parent=0 // pred_fallthru
    _
  // Predicated region
  $region6: #{egan_discriminator_forward.5} parent=0 // pred_check
    _
  $region7: #{egan_discriminator_forward.5} parent=0 // pred_check_branch
    %13 = sbr.rel (0) target = $region9
  $region8: #{egan_discriminator_forward.5} parent=0 // pred_region
    _
  $region9: #{egan_discriminator_forward.5} parent=0 // pred_fallthru
    _
  // Predicated region
  $region10: #{egan_discriminator_forward.5} parent=0 // pred_check
    _
  $region11: #{egan_discriminator_forward.5} parent=0 // pred_check_branch
    %15 = sbr.rel (0) target = $region13
  $region12: #{egan_discriminator_forward.5} parent=0 // pred_region
    _
  $region13: #{egan_discriminator_forward.5} parent=0 // pred_fallthru
    _
  // Predicated region
  $region14: #{egan_discriminator_forward.5} parent=0 // pred_check
    _
  $region15: #{egan_discriminator_forward.5} parent=0 // pred_check_branch
    %17 = sbr.rel (0) target = $region17
  $region16: #{egan_discriminator_forward.5} parent=0 // pred_region
    _
  $region17: #{egan_discriminator_forward.5} parent=0 // pred_fallthru
    _
  // Predicated region
  $region18: #{egan_discriminator_forward.5} parent=0 // pred_check
    _
  $region19: #{egan_discriminator_forward.5} parent=0 // pred_check_branch
    %19 = sbr.rel (0) target = $region21
  $region20: #{egan_discriminator_forward.5} parent=0 // pred_region
    _
  $region21: #{egan_discriminator_forward.5} parent=0 // pred_fallthru
    _
  %v21 = vld [vmem:[%s0] sm:$0xf]
  %v22 = vld [vmem:[%s0 + $0x4] sm:$0xf]
  %v23 = vld [vmem:[%s0 + $0x8] sm:$0xf]
  %v24 = vld [vmem:[%s0 + $0xc] sm:$0xf]
  %v25 = vld [vmem:[%s0 + $0x10] sm:$0xf]
  %v26 = vld [vmem:[%s0 + $0x14] sm:$0xf]
  %v27 = vld [vmem:[%s0 + $0x18] sm:$0xf]
  %v28 = vld [vmem:[%s0 + $0x1c] sm:$0xf]
  %v29 = vld [vmem:[%s0 + $0x20] sm:$0xf]
  %v30 = vld [vmem:[%s0 + $0x24] sm:$0xf]
  %v31 = vld [vmem:[%s0 + $0x28] sm:$0xf]
  %v32 = vld [vmem:[%s0 + $0x2c] sm:$0xf]
  %v33 = vld [vmem:[%s0 + $0x30] sm:$0xf]
  %v34 = vld [vmem:[%s0 + $0x34] sm:$0xf]
  %v35 = vld [vmem:[%s0 + $0x38] sm:$0xf]
  %v36 = vld [vmem:[%s0 + $0x3c] sm:$0xf]
  %v37 = vld [vmem:[%s0 + $0x40] sm:$0xf]
  %v38 = vld [vmem:[%s0 + $0x44] sm:$0xf]
  %v39 = vld [vmem:[%s0 + $0x48] sm:$0xf]
  %v40 = vld [vmem:[%s0 + $0x4c] sm:$0xf]
  %v41 = vld [vmem:[%s0 + $0x50] sm:$0xf]
  %v42 = vld [vmem:[%s0 + $0x54] sm:$0xf]
  %v43 = vld [vmem:[%s0 + $0x58] sm:$0xf]
  %v44 = vld [vmem:[%s0 + $0x5c] sm:$0xf]
  %v45 = vld [vmem:[%s0 + $0x60] sm:$0xf]
  %v46 = vld [vmem:[%s0 + $0x64] sm:$0xf]
  %v47 = vld [vmem:[%s0 + $0x68] sm:$0xf]
  %v48 = vld [vmem:[%s0 + $0x6c] sm:$0xf]
  %v49 = vld [vmem:[%s0 + $0x70] sm:$0xf]
  %v50 = vld [vmem:[%s0 + $0x74] sm:$0xf]
  %v51 = vld [vmem:[%s0 + $0x78] sm:$0xf]
  %v52 = vld [vmem:[%s0 + $0x7c] sm:$0xf]
  %v53 = vld [vmem:[%s0 + $0x80] sm:$0xf]
  %v54 = vld [vmem:[%s0 + $0x84] sm:$0xf]
  %v55 = vld [vmem:[%s0 + $0x88] sm:$0xf]
  %v56 = vld [vmem:[%s0 + $0x8c] sm:$0xf]
  %v57 = vld [vmem:[%s0 + $0x90] sm:$0xf]
  %v58 = vld [vmem:[%s0 + $0x94] sm:$0xf]
  %v59 = vld [vmem:[%s0 + $0x98] sm:$0xf]
  %v60 = vld [vmem:[%s0 + $0x9c] sm:$0xf]
  %v61 = vld [vmem:[%s0 + $0xa0] sm:$0xf]
  %v62 = vld [vmem:[%s0 + $0xa4] sm:$0xf]
  %v63 = vld [vmem:[%s0 + $0xa8] sm:$0xf]
  %v64 = vld [vmem:[%s0 + $0xac] sm:$0xf]
  %v65 = vld [vmem:[%s0 + $0xb0] sm:$0xf]
  %v66 = vld [vmem:[%s0 + $0xb4] sm:$0xf]
  %v67 = vld [vmem:[%s0 + $0xb8] sm:$0xf]
  %v68 = vld [vmem:[%s0 + $0xbc] sm:$0xf]
  %v69 = vld [vmem:[%s0 + $0xc0] sm:$0xf]
  %v70 = vld [vmem:[%s0 + $0xc4] sm:$0xf]
  %v71 = vld [vmem:[%s0 + $0xc8] sm:$0xf]
  %v72 = vld [vmem:[%s0 + $0xcc] sm:$0xf]
  %v73 = vld [vmem:[%s0 + $0xd0] sm:$0xf]
  %v74 = vld [vmem:[%s0 + $0xd4] sm:$0xf]
  %v75 = vld [vmem:[%s0 + $0xd8] sm:$0xf]
  %v76 = vld [vmem:[%s0 + $0xdc] sm:$0xf]
  %v77 = vld [vmem:[%s0 + $0xe0] sm:$0xf]
  %v78 = vld [vmem:[%s0 + $0xe4] sm:$0xf]
  %v79 = vld [vmem:[%s0 + $0xe8] sm:$0xf]
  %v80 = vld [vmem:[%s0 + $0xec] sm:$0xf]
  %v81 = vld [vmem:[%s0 + $0xf0] sm:$0xf]
  %v82 = vld [vmem:[%s0 + $0xf4] sm:$0xf]
  %v83 = vld [vmem:[%s0 + $0xf8] sm:$0xf]
  %v84 = vld [vmem:[%s0 + $0xfc] sm:$0xf]
  %v85 = vld [vmem:[%s1] sm:$0xf]
  %v86 = vld [vmem:[%s1 + $0x4] sm:$0xf]
  %v87 = vld [vmem:[%s1 + $0x8] sm:$0xf]
  %v88 = vld [vmem:[%s1 + $0xc] sm:$0xf]
  %v89 = vld [vmem:[%s1 + $0x10] sm:$0xf]
  %v90 = vld [vmem:[%s1 + $0x14] sm:$0xf]
  %v91 = vld [vmem:[%s1 + $0x18] sm:$0xf]
  %v92 = vld [vmem:[%s1 + $0x1c] sm:$0xf]
  %v93 = vld [vmem:[%s1 + $0x20] sm:$0xf]
  %v94 = vld [vmem:[%s1 + $0x24] sm:$0xf]
  %v95 = vld [vmem:[%s1 + $0x28] sm:$0xf]
  %v96 = vld [vmem:[%s1 + $0x2c] sm:$0xf]
  %v97 = vld [vmem:[%s1 + $0x30] sm:$0xf]
  %v98 = vld [vmem:[%s1 + $0x34] sm:$0xf]
  %v99 = vld [vmem:[%s1 + $0x38] sm:$0xf]
  %v100 = vld [vmem:[%s1 + $0x3c] sm:$0xf]
  %v101 = vld [vmem:[%s2] sm:$0x1]
  %v103 = vlaneseq
  %v104 = vshrl.u32 %v103, 7
  %v105 = vsub.s32 0, %v104
  %v106 = vrot.slane %v101, %v105
  %v172 = vunpack.c.l.b16 %v21
  %v173 = vunpack.c.l.b16 %v22
  %v174 = vunpack.c.l.b16 %v23
  %v175 = vunpack.c.l.b16 %v24
  %v176 = vunpack.c.l.b16 %v25
  %v177 = vunpack.c.l.b16 %v26
  %v178 = vunpack.c.l.b16 %v27
  %v179 = vunpack.c.l.b16 %v28
  %v180 = vunpack.c.l.b16 %v29
  %v181 = vunpack.c.l.b16 %v30
  %v182 = vunpack.c.l.b16 %v31
  %v183 = vunpack.c.l.b16 %v32
  %v184 = vunpack.c.l.b16 %v33
  %v185 = vunpack.c.l.b16 %v34
  %v186 = vunpack.c.l.b16 %v35
  %v187 = vunpack.c.l.b16 %v36
  %v188 = vunpack.c.l.b16 %v37
  %v189 = vunpack.c.l.b16 %v38
  %v190 = vunpack.c.l.b16 %v39
  %v191 = vunpack.c.l.b16 %v40
  %v192 = vunpack.c.l.b16 %v41
  %v193 = vunpack.c.l.b16 %v42
  %v194 = vunpack.c.l.b16 %v43
  %v195 = vunpack.c.l.b16 %v44
  %v196 = vunpack.c.l.b16 %v45
  %v197 = vunpack.c.l.b16 %v46
  %v198 = vunpack.c.l.b16 %v47
  %v199 = vunpack.c.l.b16 %v48
  %v200 = vunpack.c.l.b16 %v49
  %v201 = vunpack.c.l.b16 %v50
  %v202 = vunpack.c.l.b16 %v51
  %v203 = vunpack.c.l.b16 %v52
  %v204 = vunpack.c.l.b16 %v53
  %v205 = vunpack.c.l.b16 %v54
  %v206 = vunpack.c.l.b16 %v55
  %v207 = vunpack.c.l.b16 %v56
  %v208 = vunpack.c.l.b16 %v57
  %v209 = vunpack.c.l.b16 %v58
  %v210 = vunpack.c.l.b16 %v59
  %v211 = vunpack.c.l.b16 %v60
  %v212 = vunpack.c.l.b16 %v61
  %v213 = vunpack.c.l.b16 %v62
  %v214 = vunpack.c.l.b16 %v63
  %v215 = vunpack.c.l.b16 %v64
  %v216 = vunpack.c.l.b16 %v65
  %v217 = vunpack.c.l.b16 %v66
  %v218 = vunpack.c.l.b16 %v67
  %v219 = vunpack.c.l.b16 %v68
  %v220 = vunpack.c.l.b16 %v69
  %v221 = vunpack.c.l.b16 %v70
  %v222 = vunpack.c.l.b16 %v71
  %v223 = vunpack.c.l.b16 %v72
  %v224 = vunpack.c.l.b16 %v73
  %v225 = vunpack.c.l.b16 %v74
  %v226 = vunpack.c.l.b16 %v75
  %v227 = vunpack.c.l.b16 %v76
  %v228 = vunpack.c.l.b16 %v77
  %v229 = vunpack.c.l.b16 %v78
  %v230 = vunpack.c.l.b16 %v79
  %v231 = vunpack.c.l.b16 %v80
  %v232 = vunpack.c.l.b16 %v81
  %v233 = vunpack.c.l.b16 %v82
  %v234 = vunpack.c.l.b16 %v83
  %v235 = vunpack.c.l.b16 %v84
  %v236 = vpack.c.b16 %v173, %v172
  %v237 = vpack.c.b16 %v175, %v174
  %v238 = vpack.c.b16 %v177, %v176
  %v239 = vpack.c.b16 %v179, %v178
  %v240 = vpack.c.b16 %v181, %v180
  %v241 = vpack.c.b16 %v183, %v182
  %v242 = vpack.c.b16 %v185, %v184
  %v243 = vpack.c.b16 %v187, %v186
  %v244 = vpack.c.b16 %v189, %v188
  %v245 = vpack.c.b16 %v191, %v190
  %v246 = vpack.c.b16 %v193, %v192
  %v247 = vpack.c.b16 %v195, %v194
  %v248 = vpack.c.b16 %v197, %v196
  %v249 = vpack.c.b16 %v199, %v198
  %v250 = vpack.c.b16 %v201, %v200
  %v251 = vpack.c.b16 %v203, %v202
  %v252 = vpack.c.b16 %v205, %v204
  %v253 = vpack.c.b16 %v207, %v206
  %v254 = vpack.c.b16 %v209, %v208
  %v255 = vpack.c.b16 %v211, %v210
  %v256 = vpack.c.b16 %v213, %v212
  %v257 = vpack.c.b16 %v215, %v214
  %v258 = vpack.c.b16 %v217, %v216
  %v259 = vpack.c.b16 %v219, %v218
  %v260 = vpack.c.b16 %v221, %v220
  %v261 = vpack.c.b16 %v223, %v222
  %v262 = vpack.c.b16 %v225, %v224
  %v263 = vpack.c.b16 %v227, %v226
  %v264 = vpack.c.b16 %v229, %v228
  %v265 = vpack.c.b16 %v231, %v230
  %v266 = vpack.c.b16 %v233, %v232
  %v267 = vpack.c.b16 %v235, %v234
  %v316 = vunpack.c.l.b16 %v85
  %v317 = vunpack.c.l.b16 %v86
  %v318 = vunpack.c.l.b16 %v87
  %v319 = vunpack.c.l.b16 %v88
  %v320 = vunpack.c.l.b16 %v89
  %v321 = vunpack.c.l.b16 %v90
  %v322 = vunpack.c.l.b16 %v91
  %v323 = vunpack.c.l.b16 %v92
  %v324 = vunpack.c.l.b16 %v93
  %v325 = vunpack.c.l.b16 %v94
  %v326 = vunpack.c.l.b16 %v95
  %v327 = vunpack.c.l.b16 %v96
  %v328 = vunpack.c.l.b16 %v97
  %v329 = vunpack.c.l.b16 %v98
  %v330 = vunpack.c.l.b16 %v99
  %v331 = vunpack.c.l.b16 %v100
  %v332 = vpack.c.b16 %v317, %v316
  %v333 = vpack.c.b16 %v319, %v318
  %v334 = vpack.c.b16 %v321, %v320
  %v335 = vpack.c.b16 %v323, %v322
  %v336 = vpack.c.b16 %v325, %v324
  %v337 = vpack.c.b16 %v327, %v326
  %v338 = vpack.c.b16 %v329, %v328
  %v339 = vpack.c.b16 %v331, %v330
  %348 = vmatprep.subr.bf16.mxu0 0
  %349 = vmatpush1.bf16.msra.mxu0 %v332
  %350 = vmatprep.subr.bf16.mxu0 0
  %351 = vmatpush1.bf16.msra.mxu0 %v333
  %352 = vmatprep.subr.bf16.mxu0 0
  %353 = vmatpush1.bf16.msra.mxu0 %v334
  %354 = vmatprep.subr.bf16.mxu0 0
  %355 = vmatpush1.bf16.msra.mxu0 %v335
  %356 = vmatprep.subr.bf16.mxu0 0
  %357 = vmatpush1.bf16.msra.mxu0 %v336
  %358 = vmatprep.subr.bf16.mxu0 0
  %359 = vmatpush1.bf16.msra.mxu0 %v337
  %360 = vmatprep.subr.bf16.mxu0 0
  %361 = vmatpush1.bf16.msra.mxu0 %v338
  %362 = vmatprep.subr.bf16.mxu0 0
  %363 = vmatpush1.bf16.msra.mxu0 %v339
  %364 = vmatprep.subr.bf16.mxu0 0
  %365 = vmatpush1.bf16.msra.mxu0 0
  %366 = vmatprep.subr.bf16.mxu0 0
  %367 = vmatpush1.bf16.msra.mxu0 0
  %368 = vmatprep.subr.bf16.mxu0 0
  %369 = vmatpush1.bf16.msra.mxu0 0
  %370 = vmatprep.subr.bf16.mxu0 0
  %371 = vmatpush1.bf16.msra.mxu0 0
  %372 = vmatprep.subr.bf16.mxu0 0
  %373 = vmatpush1.bf16.msra.mxu0 0
  %374 = vmatprep.subr.bf16.mxu0 0
  %375 = vmatpush1.bf16.msra.mxu0 0
  %376 = vmatprep.subr.bf16.mxu0 0
  %377 = vmatpush1.bf16.msra.mxu0 0
  %378 = vmatprep.subr.bf16.mxu0 0
  %379 = vmatpush1.bf16.msra.mxu0 0
  %380 = vmatprep.mubr.bf16.mxu0 0
  %381 = vmatmul.mubr.bf16.gmra.mrb[0].mxu0 %v236
  %v382 = vpop.f32.mrb[0].mxu0
  %v383 = vadd.f32 %v106, %v382
  %v384 = vpop.f32.mrb[0].mxu0
  %v385 = vpop.f32.mrb[0].mxu0
  %v386 = vadd.f32 %v106, %v385
  %v387 = vpop.f32.mrb[0].mxu0
  %388 = vmatprep.mubr.bf16.mxu0 0
  %389 = vmatmul.mubr.bf16.gmra.mrb[0].mxu0 %v237
  %v390 = vpop.f32.mrb[0].mxu0
  %v391 = vadd.f32 %v106, %v390
  %v392 = vpop.f32.mrb[0].mxu0
  %v393 = vpop.f32.mrb[0].mxu0
  %v394 = vadd.f32 %v106, %v393
  %v395 = vpop.f32.mrb[0].mxu0
  %396 = vmatprep.mubr.bf16.mxu0 0
  %397 = vmatmul.mubr.bf16.gmra.mrb[0].mxu0 %v238
  %v398 = vpop.f32.mrb[0].mxu0
  %v399 = vadd.f32 %v106, %v398
  %v400 = vpop.f32.mrb[0].mxu0
  %v401 = vpop.f32.mrb[0].mxu0
  %v402 = vadd.f32 %v106, %v401
  %v403 = vpop.f32.mrb[0].mxu0
  %404 = vmatprep.mubr.bf16.mxu0 0
  %405 = vmatmul.mubr.bf16.gmra.mrb[0].mxu0 %v239
  %v406 = vpop.f32.mrb[0].mxu0
  %v407 = vadd.f32 %v106, %v406
  %v408 = vpop.f32.mrb[0].mxu0
  %v409 = vpop.f32.mrb[0].mxu0
  %v410 = vadd.f32 %v106, %v409
  %v411 = vpop.f32.mrb[0].mxu0
  %412 = vmatprep.mubr.bf16.mxu0 0
  %413 = vmatmul.mubr.bf16.gmra.mrb[0].mxu0 %v240
  %v414 = vpop.f32.mrb[0].mxu0
  %v415 = vadd.f32 %v106, %v414
  %v416 = vpop.f32.mrb[0].mxu0
  %v417 = vpop.f32.mrb[0].mxu0
  %v418 = vadd.f32 %v106, %v417
  %v419 = vpop.f32.mrb[0].mxu0
  %420 = vmatprep.mubr.bf16.mxu0 0
  %421 = vmatmul.mubr.bf16.gmra.mrb[0].mxu0 %v241
  %v422 = vpop.f32.mrb[0].mxu0
  %v423 = vadd.f32 %v106, %v422
  %v424 = vpop.f32.mrb[0].mxu0
  %v425 = vpop.f32.mrb[0].mxu0
  %v426 = vadd.f32 %v106, %v425
  %v427 = vpop.f32.mrb[0].mxu0
  %428 = vmatprep.mubr.bf16.mxu0 0
  %429 = vmatmul.mubr.bf16.gmra.mrb[0].mxu0 %v242
  %v430 = vpop.f32.mrb[0].mxu0
  %v431 = vadd.f32 %v106, %v430
  %v432 = vpop.f32.mrb[0].mxu0
  %v433 = vpop.f32.mrb[0].mxu0
  %v434 = vadd.f32 %v106, %v433
  %v435 = vpop.f32.mrb[0].mxu0
  %436 = vmatprep.mubr.bf16.mxu0 0
  %437 = vmatmul.mubr.bf16.gmra.mrb[0].mxu0 %v243
  %v438 = vpop.f32.mrb[0].mxu0
  %v439 = vadd.f32 %v106, %v438
  %v440 = vpop.f32.mrb[0].mxu0
  %v441 = vpop.f32.mrb[0].mxu0
  %v442 = vadd.f32 %v106, %v441
  %v443 = vpop.f32.mrb[0].mxu0
  %444 = vmatprep.mubr.bf16.mxu0 0
  %445 = vmatmul.mubr.bf16.gmra.mrb[0].mxu0 %v244
  %v446 = vpop.f32.mrb[0].mxu0
  %v447 = vadd.f32 %v106, %v446
  %v448 = vpop.f32.mrb[0].mxu0
  %v449 = vpop.f32.mrb[0].mxu0
  %v450 = vadd.f32 %v106, %v449
  %v451 = vpop.f32.mrb[0].mxu0
  %452 = vmatprep.mubr.bf16.mxu0 0
  %453 = vmatmul.mubr.bf16.gmra.mrb[0].mxu0 %v245
  %v454 = vpop.f32.mrb[0].mxu0
  %v455 = vadd.f32 %v106, %v454
  %v456 = vpop.f32.mrb[0].mxu0
  %v457 = vpop.f32.mrb[0].mxu0
  %v458 = vadd.f32 %v106, %v457
  %v459 = vpop.f32.mrb[0].mxu0
  %460 = vmatprep.mubr.bf16.mxu0 0
  %461 = vmatmul.mubr.bf16.gmra.mrb[0].mxu0 %v246
  %v462 = vpop.f32.mrb[0].mxu0
  %v463 = vadd.f32 %v106, %v462
  %v464 = vpop.f32.mrb[0].mxu0
  %v465 = vpop.f32.mrb[0].mxu0
  %v466 = vadd.f32 %v106, %v465
  %v467 = vpop.f32.mrb[0].mxu0
  %468 = vmatprep.mubr.bf16.mxu0 0
  %469 = vmatmul.mubr.bf16.gmra.mrb[0].mxu0 %v247
  %v470 = vpop.f32.mrb[0].mxu0
  %v471 = vadd.f32 %v106, %v470
  %v472 = vpop.f32.mrb[0].mxu0
  %v473 = vpop.f32.mrb[0].mxu0
  %v474 = vadd.f32 %v106, %v473
  %v475 = vpop.f32.mrb[0].mxu0
  %476 = vmatprep.mubr.bf16.mxu0 0
  %477 = vmatmul.mubr.bf16.gmra.mrb[0].mxu0 %v248
  %v478 = vpop.f32.mrb[0].mxu0
  %v479 = vadd.f32 %v106, %v478
  %v480 = vpop.f32.mrb[0].mxu0
  %v481 = vpop.f32.mrb[0].mxu0
  %v482 = vadd.f32 %v106, %v481
  %v483 = vpop.f32.mrb[0].mxu0
  %484 = vmatprep.mubr.bf16.mxu0 0
  %485 = vmatmul.mubr.bf16.gmra.mrb[0].mxu0 %v249
  %v486 = vpop.f32.mrb[0].mxu0
  %v487 = vadd.f32 %v106, %v486
  %v488 = vpop.f32.mrb[0].mxu0
  %v489 = vpop.f32.mrb[0].mxu0
  %v490 = vadd.f32 %v106, %v489
  %v491 = vpop.f32.mrb[0].mxu0
  %492 = vmatprep.mubr.bf16.mxu0 0
  %493 = vmatmul.mubr.bf16.gmra.mrb[0].mxu0 %v250
  %v494 = vpop.f32.mrb[0].mxu0
  %v495 = vadd.f32 %v106, %v494
  %v496 = vpop.f32.mrb[0].mxu0
  %v497 = vpop.f32.mrb[0].mxu0
  %v498 = vadd.f32 %v106, %v497
  %v499 = vpop.f32.mrb[0].mxu0
  %500 = vmatprep.mubr.bf16.mxu0 0
  %501 = vmatmul.mubr.bf16.gmra.mrb[0].mxu0 %v251
  %v502 = vpop.f32.mrb[0].mxu0
  %v503 = vadd.f32 %v106, %v502
  %v504 = vpop.f32.mrb[0].mxu0
  %v505 = vpop.f32.mrb[0].mxu0
  %v506 = vadd.f32 %v106, %v505
  %v507 = vpop.f32.mrb[0].mxu0
  %508 = vmatprep.mubr.bf16.mxu0 0
  %509 = vmatmul.mubr.bf16.gmra.mrb[0].mxu0 %v252
  %v510 = vpop.f32.mrb[0].mxu0
  %v511 = vadd.f32 %v106, %v510
  %v512 = vpop.f32.mrb[0].mxu0
  %v513 = vpop.f32.mrb[0].mxu0
  %v514 = vadd.f32 %v106, %v513
  %v515 = vpop.f32.mrb[0].mxu0
  %516 = vmatprep.mubr.bf16.mxu0 0
  %517 = vmatmul.mubr.bf16.gmra.mrb[0].mxu0 %v253
  %v518 = vpop.f32.mrb[0].mxu0
  %v519 = vadd.f32 %v106, %v518
  %v520 = vpop.f32.mrb[0].mxu0
  %v521 = vpop.f32.mrb[0].mxu0
  %v522 = vadd.f32 %v106, %v521
  %v523 = vpop.f32.mrb[0].mxu0
  %524 = vmatprep.mubr.bf16.mxu0 0
  %525 = vmatmul.mubr.bf16.gmra.mrb[0].mxu0 %v254
  %v526 = vpop.f32.mrb[0].mxu0
  %v527 = vadd.f32 %v106, %v526
  %v528 = vpop.f32.mrb[0].mxu0
  %v529 = vpop.f32.mrb[0].mxu0
  %v530 = vadd.f32 %v106, %v529
  %v531 = vpop.f32.mrb[0].mxu0
  %532 = vmatprep.mubr.bf16.mxu0 0
  %533 = vmatmul.mubr.bf16.gmra.mrb[0].mxu0 %v255
  %v534 = vpop.f32.mrb[0].mxu0
  %v535 = vadd.f32 %v106, %v534
  %v536 = vpop.f32.mrb[0].mxu0
  %v537 = vpop.f32.mrb[0].mxu0
  %v538 = vadd.f32 %v106, %v537
  %v539 = vpop.f32.mrb[0].mxu0
  %540 = vmatprep.mubr.bf16.mxu0 0
  %541 = vmatmul.mubr.bf16.gmra.mrb[0].mxu0 %v256
  %v542 = vpop.f32.mrb[0].mxu0
  %v543 = vadd.f32 %v106, %v542
  %v544 = vpop.f32.mrb[0].mxu0
  %v545 = vpop.f32.mrb[0].mxu0
  %v546 = vadd.f32 %v106, %v545
  %v547 = vpop.f32.mrb[0].mxu0
  %548 = vmatprep.mubr.bf16.mxu0 0
  %549 = vmatmul.mubr.bf16.gmra.mrb[0].mxu0 %v257
  %v550 = vpop.f32.mrb[0].mxu0
  %v551 = vadd.f32 %v106, %v550
  %v552 = vpop.f32.mrb[0].mxu0
  %v553 = vpop.f32.mrb[0].mxu0
  %v554 = vadd.f32 %v106, %v553
  %v555 = vpop.f32.mrb[0].mxu0
  %556 = vmatprep.mubr.bf16.mxu0 0
  %557 = vmatmul.mubr.bf16.gmra.mrb[0].mxu0 %v258
  %v558 = vpop.f32.mrb[0].mxu0
  %v559 = vadd.f32 %v106, %v558
  %v560 = vpop.f32.mrb[0].mxu0
  %v561 = vpop.f32.mrb[0].mxu0
  %v562 = vadd.f32 %v106, %v561
  %v563 = vpop.f32.mrb[0].mxu0
  %564 = vmatprep.mubr.bf16.mxu0 0
  %565 = vmatmul.mubr.bf16.gmra.mrb[0].mxu0 %v259
  %v566 = vpop.f32.mrb[0].mxu0
  %v567 = vadd.f32 %v106, %v566
  %v568 = vpop.f32.mrb[0].mxu0
  %v569 = vpop.f32.mrb[0].mxu0
  %v570 = vadd.f32 %v106, %v569
  %v571 = vpop.f32.mrb[0].mxu0
  %572 = vmatprep.mubr.bf16.mxu0 0
  %573 = vmatmul.mubr.bf16.gmra.mrb[0].mxu0 %v260
  %v574 = vpop.f32.mrb[0].mxu0
  %v575 = vadd.f32 %v106, %v574
  %v576 = vpop.f32.mrb[0].mxu0
  %v577 = vpop.f32.mrb[0].mxu0
  %v578 = vadd.f32 %v106, %v577
  %v579 = vpop.f32.mrb[0].mxu0
  %580 = vmatprep.mubr.bf16.mxu0 0
  %581 = vmatmul.mubr.bf16.gmra.mrb[0].mxu0 %v261
  %v582 = vpop.f32.mrb[0].mxu0
  %v583 = vadd.f32 %v106, %v582
  %v584 = vpop.f32.mrb[0].mxu0
  %v585 = vpop.f32.mrb[0].mxu0
  %v586 = vadd.f32 %v106, %v585
  %v587 = vpop.f32.mrb[0].mxu0
  %588 = vmatprep.mubr.bf16.mxu0 0
  %589 = vmatmul.mubr.bf16.gmra.mrb[0].mxu0 %v262
  %v590 = vpop.f32.mrb[0].mxu0
  %v591 = vadd.f32 %v106, %v590
  %v592 = vpop.f32.mrb[0].mxu0
  %v593 = vpop.f32.mrb[0].mxu0
  %v594 = vadd.f32 %v106, %v593
  %v595 = vpop.f32.mrb[0].mxu0
  %596 = vmatprep.mubr.bf16.mxu0 0
  %597 = vmatmul.mubr.bf16.gmra.mrb[0].mxu0 %v263
  %v598 = vpop.f32.mrb[0].mxu0
  %v599 = vadd.f32 %v106, %v598
  %v600 = vpop.f32.mrb[0].mxu0
  %v601 = vpop.f32.mrb[0].mxu0
  %v602 = vadd.f32 %v106, %v601
  %v603 = vpop.f32.mrb[0].mxu0
  %604 = vmatprep.mubr.bf16.mxu0 0
  %605 = vmatmul.mubr.bf16.gmra.mrb[0].mxu0 %v264
  %v606 = vpop.f32.mrb[0].mxu0
  %v607 = vadd.f32 %v106, %v606
  %v608 = vpop.f32.mrb[0].mxu0
  %v609 = vpop.f32.mrb[0].mxu0
  %v610 = vadd.f32 %v106, %v609
  %v611 = vpop.f32.mrb[0].mxu0
  %612 = vmatprep.mubr.bf16.mxu0 0
  %613 = vmatmul.mubr.bf16.gmra.mrb[0].mxu0 %v265
  %v614 = vpop.f32.mrb[0].mxu0
  %v615 = vadd.f32 %v106, %v614
  %v616 = vpop.f32.mrb[0].mxu0
  %v617 = vpop.f32.mrb[0].mxu0
  %v618 = vadd.f32 %v106, %v617
  %v619 = vpop.f32.mrb[0].mxu0
  %620 = vmatprep.mubr.bf16.mxu0 0
  %621 = vmatmul.mubr.bf16.gmra.mrb[0].mxu0 %v266
  %v622 = vpop.f32.mrb[0].mxu0
  %v623 = vadd.f32 %v106, %v622
  %v624 = vpop.f32.mrb[0].mxu0
  %v625 = vpop.f32.mrb[0].mxu0
  %v626 = vadd.f32 %v106, %v625
  %v627 = vpop.f32.mrb[0].mxu0
  %628 = vmatprep.mubr.bf16.mxu0 0
  %629 = vmatmul.mubr.bf16.gmra.mrb[0].mxu0 %v267
  %v630 = vpop.f32.mrb[0].mxu0
  %v631 = vadd.f32 %v106, %v630
  %v632 = vpop.f32.mrb[0].mxu0
  %v633 = vpop.f32.mrb[0].mxu0
  %v634 = vadd.f32 %v106, %v633
  %v635 = vpop.f32.mrb[0].mxu0
  %636 = vdwg.mxu0
  %vm637 = vcmask 130048
  %v638 = vsel %vm637, %v383, 0.0
  %v639 = vsel %vm637, %v386, 0.0
  %v640 = vadd.f32 %v638, %v639
  %v641 = vsel %vm637, %v391, 0.0
  %v642 = vadd.f32 %v640, %v641
  %v643 = vsel %vm637, %v394, 0.0
  %v644 = vadd.f32 %v642, %v643
  %v645 = vsel %vm637, %v399, 0.0
  %v646 = vadd.f32 %v644, %v645
  %v647 = vsel %vm637, %v402, 0.0
  %v648 = vadd.f32 %v646, %v647
  %v649 = vsel %vm637, %v407, 0.0
  %v650 = vadd.f32 %v648, %v649
  %v651 = vsel %vm637, %v410, 0.0
  %v652 = vadd.f32 %v650, %v651
  %v653 = vsel %vm637, %v415, 0.0
  %v654 = vadd.f32 %v652, %v653
  %v655 = vsel %vm637, %v418, 0.0
  %v656 = vadd.f32 %v654, %v655
  %v657 = vsel %vm637, %v423, 0.0
  %v658 = vadd.f32 %v656, %v657
  %v659 = vsel %vm637, %v426, 0.0
  %v660 = vadd.f32 %v658, %v659
  %v661 = vsel %vm637, %v431, 0.0
  %v662 = vadd.f32 %v660, %v661
  %v663 = vsel %vm637, %v434, 0.0
  %v664 = vadd.f32 %v662, %v663
  %v665 = vsel %vm637, %v439, 0.0
  %v666 = vadd.f32 %v664, %v665
  %v667 = vsel %vm637, %v442, 0.0
  %v668 = vadd.f32 %v666, %v667
  %v669 = vsel %vm637, %v447, 0.0
  %v670 = vadd.f32 %v668, %v669
  %v671 = vsel %vm637, %v450, 0.0
  %v672 = vadd.f32 %v670, %v671
  %v673 = vsel %vm637, %v455, 0.0
  %v674 = vadd.f32 %v672, %v673
  %v675 = vsel %vm637, %v458, 0.0
  %v676 = vadd.f32 %v674, %v675
  %v677 = vsel %vm637, %v463, 0.0
  %v678 = vadd.f32 %v676, %v677
  %v679 = vsel %vm637, %v466, 0.0
  %v680 = vadd.f32 %v678, %v679
  %v681 = vsel %vm637, %v471, 0.0
  %v682 = vadd.f32 %v680, %v681
  %v683 = vsel %vm637, %v474, 0.0
  %v684 = vadd.f32 %v682, %v683
  %v685 = vsel %vm637, %v479, 0.0
  %v686 = vadd.f32 %v684, %v685
  %v687 = vsel %vm637, %v482, 0.0
  %v688 = vadd.f32 %v686, %v687
  %v689 = vsel %vm637, %v487, 0.0
  %v690 = vadd.f32 %v688, %v689
  %v691 = vsel %vm637, %v490, 0.0
  %v692 = vadd.f32 %v690, %v691
  %v693 = vsel %vm637, %v495, 0.0
  %v694 = vadd.f32 %v692, %v693
  %v695 = vsel %vm637, %v498, 0.0
  %v696 = vadd.f32 %v694, %v695
  %v697 = vsel %vm637, %v503, 0.0
  %v698 = vadd.f32 %v696, %v697
  %v699 = vsel %vm637, %v506, 0.0
  %v700 = vadd.f32 %v698, %v699
  %v701 = vsel %vm637, %v511, 0.0
  %v702 = vadd.f32 %v700, %v701
  %v703 = vsel %vm637, %v514, 0.0
  %v704 = vadd.f32 %v702, %v703
  %v705 = vsel %vm637, %v519, 0.0
  %v706 = vadd.f32 %v704, %v705
  %v707 = vsel %vm637, %v522, 0.0
  %v708 = vadd.f32 %v706, %v707
  %v709 = vsel %vm637, %v527, 0.0
  %v710 = vadd.f32 %v708, %v709
  %v711 = vsel %vm637, %v530, 0.0
  %v712 = vadd.f32 %v710, %v711
  %v713 = vsel %vm637, %v535, 0.0
  %v714 = vadd.f32 %v712, %v713
  %v715 = vsel %vm637, %v538, 0.0
  %v716 = vadd.f32 %v714, %v715
  %v717 = vsel %vm637, %v543, 0.0
  %v718 = vadd.f32 %v716, %v717
  %v719 = vsel %vm637, %v546, 0.0
  %v720 = vadd.f32 %v718, %v719
  %v721 = vsel %vm637, %v551, 0.0
  %v722 = vadd.f32 %v720, %v721
  %v723 = vsel %vm637, %v554, 0.0
  %v724 = vadd.f32 %v722, %v723
  %v725 = vsel %vm637, %v559, 0.0
  %v726 = vadd.f32 %v724, %v725
  %v727 = vsel %vm637, %v562, 0.0
  %v728 = vadd.f32 %v726, %v727
  %v729 = vsel %vm637, %v567, 0.0
  %v730 = vadd.f32 %v728, %v729
  %v731 = vsel %vm637, %v570, 0.0
  %v732 = vadd.f32 %v730, %v731
  %v733 = vsel %vm637, %v575, 0.0
  %v734 = vadd.f32 %v732, %v733
  %v735 = vsel %vm637, %v578, 0.0
  %v736 = vadd.f32 %v734, %v735
  %v737 = vsel %vm637, %v583, 0.0
  %v738 = vadd.f32 %v736, %v737
  %v739 = vsel %vm637, %v586, 0.0
  %v740 = vadd.f32 %v738, %v739
  %v741 = vsel %vm637, %v591, 0.0
  %v742 = vadd.f32 %v740, %v741
  %v743 = vsel %vm637, %v594, 0.0
  %v744 = vadd.f32 %v742, %v743
  %v745 = vsel %vm637, %v599, 0.0
  %v746 = vadd.f32 %v744, %v745
  %v747 = vsel %vm637, %v602, 0.0
  %v748 = vadd.f32 %v746, %v747
  %v749 = vsel %vm637, %v607, 0.0
  %v750 = vadd.f32 %v748, %v749
  %v751 = vsel %vm637, %v610, 0.0
  %v752 = vadd.f32 %v750, %v751
  %v753 = vsel %vm637, %v615, 0.0
  %v754 = vadd.f32 %v752, %v753
  %v755 = vsel %vm637, %v618, 0.0
  %v756 = vadd.f32 %v754, %v755
  %v757 = vsel %vm637, %v623, 0.0
  %v758 = vadd.f32 %v756, %v757
  %v759 = vsel %vm637, %v626, 0.0
  %v760 = vadd.f32 %v758, %v759
  %v761 = vsel %vm637, %v631, 0.0
  %v762 = vadd.f32 %v760, %v761
  %v763 = vsel %vm637, %v634, 0.0
  %v764 = vadd.f32 %v762, %v763
  %v765 = vrot.slane %v764, 4
  %v766 = vadd.f32 %v764, %v765
  %v767 = vrot.slane %v766, 2
  %v768 = vadd.f32 %v766, %v767
  %v769 = vrot.slane %v768, 1
  %v770 = vadd.f32 %v768, %v769
  %v771 = vmul.f32 %v770, 0.001953125
  %v772 = vsub.f32 %v383, %v771
  %v773 = vsub.f32 %v386, %v771
  %v774 = vsub.f32 %v391, %v771
  %v775 = vsub.f32 %v394, %v771
  %v776 = vsub.f32 %v399, %v771
  %v777 = vsub.f32 %v402, %v771
  %v778 = vsub.f32 %v407, %v771
  %v779 = vsub.f32 %v410, %v771
  %v780 = vsub.f32 %v415, %v771
  %v781 = vsub.f32 %v418, %v771
  %v782 = vsub.f32 %v423, %v771
  %v783 = vsub.f32 %v426, %v771
  %v784 = vsub.f32 %v431, %v771
  %v785 = vsub.f32 %v434, %v771
  %v786 = vsub.f32 %v439, %v771
  %v787 = vsub.f32 %v442, %v771
  %v788 = vsub.f32 %v447, %v771
  %v789 = vsub.f32 %v450, %v771
  %v790 = vsub.f32 %v455, %v771
  %v791 = vsub.f32 %v458, %v771
  %v792 = vsub.f32 %v463, %v771
  %v793 = vsub.f32 %v466, %v771
  %v794 = vsub.f32 %v471, %v771
  %v795 = vsub.f32 %v474, %v771
  %v796 = vsub.f32 %v479, %v771
  %v797 = vsub.f32 %v482, %v771
  %v798 = vsub.f32 %v487, %v771
  %v799 = vsub.f32 %v490, %v771
  %v800 = vsub.f32 %v495, %v771
  %v801 = vsub.f32 %v498, %v771
  %v802 = vsub.f32 %v503, %v771
  %v803 = vsub.f32 %v506, %v771
  %v804 = vsub.f32 %v511, %v771
  %v805 = vsub.f32 %v514, %v771
  %v806 = vsub.f32 %v519, %v771
  %v807 = vsub.f32 %v522, %v771
  %v808 = vsub.f32 %v527, %v771
  %v809 = vsub.f32 %v530, %v771
  %v810 = vsub.f32 %v535, %v771
  %v811 = vsub.f32 %v538, %v771
  %v812 = vsub.f32 %v543, %v771
  %v813 = vsub.f32 %v546, %v771
  %v814 = vsub.f32 %v551, %v771
  %v815 = vsub.f32 %v554, %v771
  %v816 = vsub.f32 %v559, %v771
  %v817 = vsub.f32 %v562, %v771
  %v818 = vsub.f32 %v567, %v771
  %v819 = vsub.f32 %v570, %v771
  %v820 = vsub.f32 %v575, %v771
  %v821 = vsub.f32 %v578, %v771
  %v822 = vsub.f32 %v583, %v771
  %v823 = vsub.f32 %v586, %v771
  %v824 = vsub.f32 %v591, %v771
  %v825 = vsub.f32 %v594, %v771
  %v826 = vsub.f32 %v599, %v771
  %v827 = vsub.f32 %v602, %v771
  %v828 = vsub.f32 %v607, %v771
  %v829 = vsub.f32 %v610, %v771
  %v830 = vsub.f32 %v615, %v771
  %v831 = vsub.f32 %v618, %v771
  %v832 = vsub.f32 %v623, %v771
  %v833 = vsub.f32 %v626, %v771
  %v834 = vsub.f32 %v631, %v771
  %v835 = vsub.f32 %v634, %v771
  %v836 = vmul.f32 %v772, %v772
  %v837 = vmul.f32 %v773, %v773
  %v838 = vmul.f32 %v774, %v774
  %v839 = vmul.f32 %v775, %v775
  %v840 = vmul.f32 %v776, %v776
  %v841 = vmul.f32 %v777, %v777
  %v842 = vmul.f32 %v778, %v778
  %v843 = vmul.f32 %v779, %v779
  %v844 = vmul.f32 %v780, %v780
  %v845 = vmul.f32 %v781, %v781
  %v846 = vmul.f32 %v782, %v782
  %v847 = vmul.f32 %v783, %v783
  %v848 = vmul.f32 %v784, %v784
  %v849 = vmul.f32 %v785, %v785
  %v850 = vmul.f32 %v786, %v786
  %v851 = vmul.f32 %v787, %v787
  %v852 = vmul.f32 %v788, %v788
  %v853 = vmul.f32 %v789, %v789
  %v854 = vmul.f32 %v790, %v790
  %v855 = vmul.f32 %v791, %v791
  %v856 = vmul.f32 %v792, %v792
  %v857 = vmul.f32 %v793, %v793
  %v858 = vmul.f32 %v794, %v794
  %v859 = vmul.f32 %v795, %v795
  %v860 = vmul.f32 %v796, %v796
  %v861 = vmul.f32 %v797, %v797
  %v862 = vmul.f32 %v798, %v798
  %v863 = vmul.f32 %v799, %v799
  %v864 = vmul.f32 %v800, %v800
  %v865 = vmul.f32 %v801, %v801
  %v866 = vmul.f32 %v802, %v802
  %v867 = vmul.f32 %v803, %v803
  %v868 = vmul.f32 %v804, %v804
  %v869 = vmul.f32 %v805, %v805
  %v870 = vmul.f32 %v806, %v806
  %v871 = vmul.f32 %v807, %v807
  %v872 = vmul.f32 %v808, %v808
  %v873 = vmul.f32 %v809, %v809
  %v874 = vmul.f32 %v810, %v810
  %v875 = vmul.f32 %v811, %v811
  %v876 = vmul.f32 %v812, %v812
  %v877 = vmul.f32 %v813, %v813
  %v878 = vmul.f32 %v814, %v814
  %v879 = vmul.f32 %v815, %v815
  %v880 = vmul.f32 %v816, %v816
  %v881 = vmul.f32 %v817, %v817
  %v882 = vmul.f32 %v818, %v818
  %v883 = vmul.f32 %v819, %v819
  %v884 = vmul.f32 %v820, %v820
  %v885 = vmul.f32 %v821, %v821
  %v886 = vmul.f32 %v822, %v822
  %v887 = vmul.f32 %v823, %v823
  %v888 = vmul.f32 %v824, %v824
  %v889 = vmul.f32 %v825, %v825
  %v890 = vmul.f32 %v826, %v826
  %v891 = vmul.f32 %v827, %v827
  %v892 = vmul.f32 %v828, %v828
  %v893 = vmul.f32 %v829, %v829
  %v894 = vmul.f32 %v830, %v830
  %v895 = vmul.f32 %v831, %v831
  %v896 = vmul.f32 %v832, %v832
  %v897 = vmul.f32 %v833, %v833
  %v898 = vmul.f32 %v834, %v834
  %v899 = vmul.f32 %v835, %v835
  %v900 = vsel %vm637, %v836, 0.0
  %v901 = vsel %vm637, %v837, 0.0
  %v902 = vadd.f32 %v900, %v901
  %v903 = vsel %vm637, %v838, 0.0
  %v904 = vadd.f32 %v902, %v903
  %v905 = vsel %vm637, %v839, 0.0
  %v906 = vadd.f32 %v904, %v905
  %v907 = vsel %vm637, %v840, 0.0
  %v908 = vadd.f32 %v906, %v907
  %v909 = vsel %vm637, %v841, 0.0
  %v910 = vadd.f32 %v908, %v909
  %v911 = vsel %vm637, %v842, 0.0
  %v912 = vadd.f32 %v910, %v911
  %v913 = vsel %vm637, %v843, 0.0
  %v914 = vadd.f32 %v912, %v913
  %v915 = vsel %vm637, %v844, 0.0
  %v916 = vadd.f32 %v914, %v915
  %v917 = vsel %vm637, %v845, 0.0
  %v918 = vadd.f32 %v916, %v917
  %v919 = vsel %vm637, %v846, 0.0
  %v920 = vadd.f32 %v918, %v919
  %v921 = vsel %vm637, %v847, 0.0
  %v922 = vadd.f32 %v920, %v921
  %v923 = vsel %vm637, %v848, 0.0
  %v924 = vadd.f32 %v922, %v923
  %v925 = vsel %vm637, %v849, 0.0
  %v926 = vadd.f32 %v924, %v925
  %v927 = vsel %vm637, %v850, 0.0
  %v928 = vadd.f32 %v926, %v927
  %v929 = vsel %vm637, %v851, 0.0
  %v930 = vadd.f32 %v928, %v929
  %v931 = vsel %vm637, %v852, 0.0
  %v932 = vadd.f32 %v930, %v931
  %v933 = vsel %vm637, %v853, 0.0
  %v934 = vadd.f32 %v932, %v933
  %v935 = vsel %vm637, %v854, 0.0
  %v936 = vadd.f32 %v934, %v935
  %v937 = vsel %vm637, %v855, 0.0
  %v938 = vadd.f32 %v936, %v937
  %v939 = vsel %vm637, %v856, 0.0
  %v940 = vadd.f32 %v938, %v939
  %v941 = vsel %vm637, %v857, 0.0
  %v942 = vadd.f32 %v940, %v941
  %v943 = vsel %vm637, %v858, 0.0
  %v944 = vadd.f32 %v942, %v943
  %v945 = vsel %vm637, %v859, 0.0
  %v946 = vadd.f32 %v944, %v945
  %v947 = vsel %vm637, %v860, 0.0
  %v948 = vadd.f32 %v946, %v947
  %v949 = vsel %vm637, %v861, 0.0
  %v950 = vadd.f32 %v948, %v949
  %v951 = vsel %vm637, %v862, 0.0
  %v952 = vadd.f32 %v950, %v951
  %v953 = vsel %vm637, %v863, 0.0
  %v954 = vadd.f32 %v952, %v953
  %v955 = vsel %vm637, %v864, 0.0
  %v956 = vadd.f32 %v954, %v955
  %v957 = vsel %vm637, %v865, 0.0
  %v958 = vadd.f32 %v956, %v957
  %v959 = vsel %vm637, %v866, 0.0
  %v960 = vadd.f32 %v958, %v959
  %v961 = vsel %vm637, %v867, 0.0
  %v962 = vadd.f32 %v960, %v961
  %v963 = vsel %vm637, %v868, 0.0
  %v964 = vadd.f32 %v962, %v963
  %v965 = vsel %vm637, %v869, 0.0
  %v966 = vadd.f32 %v964, %v965
  %v967 = vsel %vm637, %v870, 0.0
  %v968 = vadd.f32 %v966, %v967
  %v969 = vsel %vm637, %v871, 0.0
  %v970 = vadd.f32 %v968, %v969
  %v971 = vsel %vm637, %v872, 0.0
  %v972 = vadd.f32 %v970, %v971
  %v973 = vsel %vm637, %v873, 0.0
  %v974 = vadd.f32 %v972, %v973
  %v975 = vsel %vm637, %v874, 0.0
  %v976 = vadd.f32 %v974, %v975
  %v977 = vsel %vm637, %v875, 0.0
  %v978 = vadd.f32 %v976, %v977
  %v979 = vsel %vm637, %v876, 0.0
  %v980 = vadd.f32 %v978, %v979
  %v981 = vsel %vm637, %v877, 0.0
  %v982 = vadd.f32 %v980, %v981
  %v983 = vsel %vm637, %v878, 0.0
  %v984 = vadd.f32 %v982, %v983
  %v985 = vsel %vm637, %v879, 0.0
  %v986 = vadd.f32 %v984, %v985
  %v987 = vsel %vm637, %v880, 0.0
  %v988 = vadd.f32 %v986, %v987
  %v989 = vsel %vm637, %v881, 0.0
  %v990 = vadd.f32 %v988, %v989
  %v991 = vsel %vm637, %v882, 0.0
  %v992 = vadd.f32 %v990, %v991
  %v993 = vsel %vm637, %v883, 0.0
  %v994 = vadd.f32 %v992, %v993
  %v995 = vsel %vm637, %v884, 0.0
  %v996 = vadd.f32 %v994, %v995
  %v997 = vsel %vm637, %v885, 0.0
  %v998 = vadd.f32 %v996, %v997
  %v999 = vsel %vm637, %v886, 0.0
  %v1000 = vadd.f32 %v998, %v999
  %v1001 = vsel %vm637, %v887, 0.0
  %v1002 = vadd.f32 %v1000, %v1001
  %v1003 = vsel %vm637, %v888, 0.0
  %v1004 = vadd.f32 %v1002, %v1003
  %v1005 = vsel %vm637, %v889, 0.0
  %v1006 = vadd.f32 %v1004, %v1005
  %v1007 = vsel %vm637, %v890, 0.0
  %v1008 = vadd.f32 %v1006, %v1007
  %v1009 = vsel %vm637, %v891, 0.0
  %v1010 = vadd.f32 %v1008, %v1009
  %v1011 = vsel %vm637, %v892, 0.0
  %v1012 = vadd.f32 %v1010, %v1011
  %v1013 = vsel %vm637, %v893, 0.0
  %v1014 = vadd.f32 %v1012, %v1013
  %v1015 = vsel %vm637, %v894, 0.0
  %v1016 = vadd.f32 %v1014, %v1015
  %v1017 = vsel %vm637, %v895, 0.0
  %v1018 = vadd.f32 %v1016, %v1017
  %v1019 = vsel %vm637, %v896, 0.0
  %v1020 = vadd.f32 %v1018, %v1019
  %v1021 = vsel %vm637, %v897, 0.0
  %v1022 = vadd.f32 %v1020, %v1021
  %v1023 = vsel %vm637, %v898, 0.0
  %v1024 = vadd.f32 %v1022, %v1023
  %v1025 = vsel %vm637, %v899, 0.0
  %v1026 = vadd.f32 %v1024, %v1025
  %v1027 = vrot.slane %v1026, 4
  %v1028 = vadd.f32 %v1026, %v1027
  %v1029 = vrot.slane %v1028, 2
  %v1030 = vadd.f32 %v1028, %v1029
  %v1031 = vrot.slane %v1030, 1
  %v1032 = vadd.f32 %v1030, %v1031
  %v1033 = vmul.f32 %v1032, 0.001953125
  %v1034 = vld [vmem:[%s3] sm:$0x1]
  %v1035 = vadd.f32 %v1033, 1e-05
  %v1036 = vrsqrt.pop %v1035
  %v1037 = vmul.f32 %v1034, %v1036
  %v1039 = vlaneseq
  %v1040 = vshrl.u32 %v1039, 7
  %v1041 = vsub.s32 0, %v1040
  %v1042 = vrot.slane %v1037, %v1041
  %v1044 = vmul.f32 %v772, %v1042
  %v1045 = vmul.f32 %v773, %v1042
  %v1046 = vmul.f32 %v774, %v1042
  %v1047 = vmul.f32 %v775, %v1042
  %v1048 = vmul.f32 %v776, %v1042
  %v1049 = vmul.f32 %v777, %v1042
  %v1050 = vmul.f32 %v778, %v1042
  %v1051 = vmul.f32 %v779, %v1042
  %v1052 = vmul.f32 %v780, %v1042
  %v1053 = vmul.f32 %v781, %v1042
  %v1054 = vmul.f32 %v782, %v1042
  %v1055 = vmul.f32 %v783, %v1042
  %v1056 = vmul.f32 %v784, %v1042
  %v1057 = vmul.f32 %v785, %v1042
  %v1058 = vmul.f32 %v786, %v1042
  %v1059 = vmul.f32 %v787, %v1042
  %v1060 = vmul.f32 %v788, %v1042
  %v1061 = vmul.f32 %v789, %v1042
  %v1062 = vmul.f32 %v790, %v1042
  %v1063 = vmul.f32 %v791, %v1042
  %v1064 = vmul.f32 %v792, %v1042
  %v1065 = vmul.f32 %v793, %v1042
  %v1066 = vmul.f32 %v794, %v1042
  %v1067 = vmul.f32 %v795, %v1042
  %v1068 = vmul.f32 %v796, %v1042
  %v1069 = vmul.f32 %v797, %v1042
  %v1070 = vmul.f32 %v798, %v1042
  %v1071 = vmul.f32 %v799, %v1042
  %v1072 = vmul.f32 %v800, %v1042
  %v1073 = vmul.f32 %v801, %v1042
  %v1074 = vmul.f32 %v802, %v1042
  %v1075 = vmul.f32 %v803, %v1042
  %v1076 = vmul.f32 %v804, %v1042
  %v1077 = vmul.f32 %v805, %v1042
  %v1078 = vmul.f32 %v806, %v1042
  %v1079 = vmul.f32 %v807, %v1042
  %v1080 = vmul.f32 %v808, %v1042
  %v1081 = vmul.f32 %v809, %v1042
  %v1082 = vmul.f32 %v810, %v1042
  %v1083 = vmul.f32 %v811, %v1042
  %v1084 = vmul.f32 %v812, %v1042
  %v1085 = vmul.f32 %v813, %v1042
  %v1086 = vmul.f32 %v814, %v1042
  %v1087 = vmul.f32 %v815, %v1042
  %v1088 = vmul.f32 %v816, %v1042
  %v1089 = vmul.f32 %v817, %v1042
  %v1090 = vmul.f32 %v818, %v1042
  %v1091 = vmul.f32 %v819, %v1042
  %v1092 = vmul.f32 %v820, %v1042
  %v1093 = vmul.f32 %v821, %v1042
  %v1094 = vmul.f32 %v822, %v1042
  %v1095 = vmul.f32 %v823, %v1042
  %v1096 = vmul.f32 %v824, %v1042
  %v1097 = vmul.f32 %v825, %v1042
  %v1098 = vmul.f32 %v826, %v1042
  %v1099 = vmul.f32 %v827, %v1042
  %v1100 = vmul.f32 %v828, %v1042
  %v1101 = vmul.f32 %v829, %v1042
  %v1102 = vmul.f32 %v830, %v1042
  %v1103 = vmul.f32 %v831, %v1042
  %v1104 = vmul.f32 %v832, %v1042
  %v1105 = vmul.f32 %v833, %v1042
  %v1106 = vmul.f32 %v834, %v1042
  %v1107 = vmul.f32 %v835, %v1042
  %v1108 = vld [vmem:[%s4] sm:$0x1]
  %v1110 = vlaneseq
  %v1111 = vshrl.u32 %v1110, 7
  %v1112 = vsub.s32 0, %v1111
  %v1113 = vrot.slane %v1108, %v1112
  %v1115 = vadd.f32 %v1044, %v1113
  %v1116 = vadd.f32 %v1045, %v1113
  %v1117 = vadd.f32 %v1046, %v1113
  %v1118 = vadd.f32 %v1047, %v1113
  %v1119 = vadd.f32 %v1048, %v1113
  %v1120 = vadd.f32 %v1049, %v1113
  %v1121 = vadd.f32 %v1050, %v1113
  %v1122 = vadd.f32 %v1051, %v1113
  %v1123 = vadd.f32 %v1052, %v1113
  %v1124 = vadd.f32 %v1053, %v1113
  %v1125 = vadd.f32 %v1054, %v1113
  %v1126 = vadd.f32 %v1055, %v1113
  %v1127 = vadd.f32 %v1056, %v1113
  %v1128 = vadd.f32 %v1057, %v1113
  %v1129 = vadd.f32 %v1058, %v1113
  %v1130 = vadd.f32 %v1059, %v1113
  %v1131 = vadd.f32 %v1060, %v1113
  %v1132 = vadd.f32 %v1061, %v1113
  %v1133 = vadd.f32 %v1062, %v1113
  %v1134 = vadd.f32 %v1063, %v1113
  %v1135 = vadd.f32 %v1064, %v1113
  %v1136 = vadd.f32 %v1065, %v1113
  %v1137 = vadd.f32 %v1066, %v1113
  %v1138 = vadd.f32 %v1067, %v1113
  %v1139 = vadd.f32 %v1068, %v1113
  %v1140 = vadd.f32 %v1069, %v1113
  %v1141 = vadd.f32 %v1070, %v1113
  %v1142 = vadd.f32 %v1071, %v1113
  %v1143 = vadd.f32 %v1072, %v1113
  %v1144 = vadd.f32 %v1073, %v1113
  %v1145 = vadd.f32 %v1074, %v1113
  %v1146 = vadd.f32 %v1075, %v1113
  %v1147 = vadd.f32 %v1076, %v1113
  %v1148 = vadd.f32 %v1077, %v1113
  %v1149 = vadd.f32 %v1078, %v1113
  %v1150 = vadd.f32 %v1079, %v1113
  %v1151 = vadd.f32 %v1080, %v1113
  %v1152 = vadd.f32 %v1081, %v1113
  %v1153 = vadd.f32 %v1082, %v1113
  %v1154 = vadd.f32 %v1083, %v1113
  %v1155 = vadd.f32 %v1084, %v1113
  %v1156 = vadd.f32 %v1085, %v1113
  %v1157 = vadd.f32 %v1086, %v1113
  %v1158 = vadd.f32 %v1087, %v1113
  %v1159 = vadd.f32 %v1088, %v1113
  %v1160 = vadd.f32 %v1089, %v1113
  %v1161 = vadd.f32 %v1090, %v1113
  %v1162 = vadd.f32 %v1091, %v1113
  %v1163 = vadd.f32 %v1092, %v1113
  %v1164 = vadd.f32 %v1093, %v1113
  %v1165 = vadd.f32 %v1094, %v1113
  %v1166 = vadd.f32 %v1095, %v1113
  %v1167 = vadd.f32 %v1096, %v1113
  %v1168 = vadd.f32 %v1097, %v1113
  %v1169 = vadd.f32 %v1098, %v1113
  %v1170 = vadd.f32 %v1099, %v1113
  %v1171 = vadd.f32 %v1100, %v1113
  %v1172 = vadd.f32 %v1101, %v1113
  %v1173 = vadd.f32 %v1102, %v1113
  %v1174 = vadd.f32 %v1103, %v1113
  %v1175 = vadd.f32 %v1104, %v1113
  %v1176 = vadd.f32 %v1105, %v1113
  %v1177 = vadd.f32 %v1106, %v1113
  %v1178 = vadd.f32 %v1107, %v1113
  %vm1179 = vcmp.gt.f32.partialorder %v1115, 0.0
  %vm1180 = vcmp.gt.f32.partialorder %v1116, 0.0
  %vm1181 = vcmp.gt.f32.partialorder %v1117, 0.0
  %vm1182 = vcmp.gt.f32.partialorder %v1118, 0.0
  %vm1183 = vcmp.gt.f32.partialorder %v1119, 0.0
  %vm1184 = vcmp.gt.f32.partialorder %v1120, 0.0
  %vm1185 = vcmp.gt.f32.partialorder %v1121, 0.0
  %vm1186 = vcmp.gt.f32.partialorder %v1122, 0.0
  %vm1187 = vcmp.gt.f32.partialorder %v1123, 0.0
  %vm1188 = vcmp.gt.f32.partialorder %v1124, 0.0
  %vm1189 = vcmp.gt.f32.partialorder %v1125, 0.0
  %vm1190 = vcmp.gt.f32.partialorder %v1126, 0.0
  %vm1191 = vcmp.gt.f32.partialorder %v1127, 0.0
  %vm1192 = vcmp.gt.f32.partialorder %v1128, 0.0
  %vm1193 = vcmp.gt.f32.partialorder %v1129, 0.0
  %vm1194 = vcmp.gt.f32.partialorder %v1130, 0.0
  %vm1195 = vcmp.gt.f32.partialorder %v1131, 0.0
  %vm1196 = vcmp.gt.f32.partialorder %v1132, 0.0
  %vm1197 = vcmp.gt.f32.partialorder %v1133, 0.0
  %vm1198 = vcmp.gt.f32.partialorder %v1134, 0.0
  %vm1199 = vcmp.gt.f32.partialorder %v1135, 0.0
  %vm1200 = vcmp.gt.f32.partialorder %v1136, 0.0
  %vm1201 = vcmp.gt.f32.partialorder %v1137, 0.0
  %vm1202 = vcmp.gt.f32.partialorder %v1138, 0.0
  %vm1203 = vcmp.gt.f32.partialorder %v1139, 0.0
  %vm1204 = vcmp.gt.f32.partialorder %v1140, 0.0
  %vm1205 = vcmp.gt.f32.partialorder %v1141, 0.0
  %vm1206 = vcmp.gt.f32.partialorder %v1142, 0.0
  %vm1207 = vcmp.gt.f32.partialorder %v1143, 0.0
  %vm1208 = vcmp.gt.f32.partialorder %v1144, 0.0
  %vm1209 = vcmp.gt.f32.partialorder %v1145, 0.0
  %vm1210 = vcmp.gt.f32.partialorder %v1146, 0.0
  %vm1211 = vcmp.gt.f32.partialorder %v1147, 0.0
  %vm1212 = vcmp.gt.f32.partialorder %v1148, 0.0
  %vm1213 = vcmp.gt.f32.partialorder %v1149, 0.0
  %vm1214 = vcmp.gt.f32.partialorder %v1150, 0.0
  %vm1215 = vcmp.gt.f32.partialorder %v1151, 0.0
  %vm1216 = vcmp.gt.f32.partialorder %v1152, 0.0
  %vm1217 = vcmp.gt.f32.partialorder %v1153, 0.0
  %vm1218 = vcmp.gt.f32.partialorder %v1154, 0.0
  %vm1219 = vcmp.gt.f32.partialorder %v1155, 0.0
  %vm1220 = vcmp.gt.f32.partialorder %v1156, 0.0
  %vm1221 = vcmp.gt.f32.partialorder %v1157, 0.0
  %vm1222 = vcmp.gt.f32.partialorder %v1158, 0.0
  %vm1223 = vcmp.gt.f32.partialorder %v1159, 0.0
  %vm1224 = vcmp.gt.f32.partialorder %v1160, 0.0
  %vm1225 = vcmp.gt.f32.partialorder %v1161, 0.0
  %vm1226 = vcmp.gt.f32.partialorder %v1162, 0.0
  %vm1227 = vcmp.gt.f32.partialorder %v1163, 0.0
  %vm1228 = vcmp.gt.f32.partialorder %v1164, 0.0
  %vm1229 = vcmp.gt.f32.partialorder %v1165, 0.0
  %vm1230 = vcmp.gt.f32.partialorder %v1166, 0.0
  %vm1231 = vcmp.gt.f32.partialorder %v1167, 0.0
  %vm1232 = vcmp.gt.f32.partialorder %v1168, 0.0
  %vm1233 = vcmp.gt.f32.partialorder %v1169, 0.0
  %vm1234 = vcmp.gt.f32.partialorder %v1170, 0.0
  %vm1235 = vcmp.gt.f32.partialorder %v1171, 0.0
  %vm1236 = vcmp.gt.f32.partialorder %v1172, 0.0
  %vm1237 = vcmp.gt.f32.partialorder %v1173, 0.0
  %vm1238 = vcmp.gt.f32.partialorder %v1174, 0.0
  %vm1239 = vcmp.gt.f32.partialorder %v1175, 0.0
  %vm1240 = vcmp.gt.f32.partialorder %v1176, 0.0
  %vm1241 = vcmp.gt.f32.partialorder %v1177, 0.0
  %vm1242 = vcmp.gt.f32.partialorder %v1178, 0.0
  %v1243 = vmul.f32 %v1115, 0.2
  %v1244 = vmul.f32 %v1116, 0.2
  %v1245 = vmul.f32 %v1117, 0.2
  %v1246 = vmul.f32 %v1118, 0.2
  %v1247 = vmul.f32 %v1119, 0.2
  %v1248 = vmul.f32 %v1120, 0.2
  %v1249 = vmul.f32 %v1121, 0.2
  %v1250 = vmul.f32 %v1122, 0.2
  %v1251 = vmul.f32 %v1123, 0.2
  %v1252 = vmul.f32 %v1124, 0.2
  %v1253 = vmul.f32 %v1125, 0.2
  %v1254 = vmul.f32 %v1126, 0.2
  %v1255 = vmul.f32 %v1127, 0.2
  %v1256 = vmul.f32 %v1128, 0.2
  %v1257 = vmul.f32 %v1129, 0.2
  %v1258 = vmul.f32 %v1130, 0.2
  %v1259 = vmul.f32 %v1131, 0.2
  %v1260 = vmul.f32 %v1132, 0.2
  %v1261 = vmul.f32 %v1133, 0.2
  %v1262 = vmul.f32 %v1134, 0.2
  %v1263 = vmul.f32 %v1135, 0.2
  %v1264 = vmul.f32 %v1136, 0.2
  %v1265 = vmul.f32 %v1137, 0.2
  %v1266 = vmul.f32 %v1138, 0.2
  %v1267 = vmul.f32 %v1139, 0.2
  %v1268 = vmul.f32 %v1140, 0.2
  %v1269 = vmul.f32 %v1141, 0.2
  %v1270 = vmul.f32 %v1142, 0.2
  %v1271 = vmul.f32 %v1143, 0.2
  %v1272 = vmul.f32 %v1144, 0.2
  %v1273 = vmul.f32 %v1145, 0.2
  %v1274 = vmul.f32 %v1146, 0.2
  %v1275 = vmul.f32 %v1147, 0.2
  %v1276 = vmul.f32 %v1148, 0.2
  %v1277 = vmul.f32 %v1149, 0.2
  %v1278 = vmul.f32 %v1150, 0.2
  %v1279 = vmul.f32 %v1151, 0.2
  %v1280 = vmul.f32 %v1152, 0.2
  %v1281 = vmul.f32 %v1153, 0.2
  %v1282 = vmul.f32 %v1154, 0.2
  %v1283 = vmul.f32 %v1155, 0.2
  %v1284 = vmul.f32 %v1156, 0.2
  %v1285 = vmul.f32 %v1157, 0.2
  %v1286 = vmul.f32 %v1158, 0.2
  %v1287 = vmul.f32 %v1159, 0.2
  %v1288 = vmul.f32 %v1160, 0.2
  %v1289 = vmul.f32 %v1161, 0.2
  %v1290 = vmul.f32 %v1162, 0.2
  %v1291 = vmul.f32 %v1163, 0.2
  %v1292 = vmul.f32 %v1164, 0.2
  %v1293 = vmul.f32 %v1165, 0.2
  %v1294 = vmul.f32 %v1166, 0.2
  %v1295 = vmul.f32 %v1167, 0.2
  %v1296 = vmul.f32 %v1168, 0.2
  %v1297 = vmul.f32 %v1169, 0.2
  %v1298 = vmul.f32 %v1170, 0.2
  %v1299 = vmul.f32 %v1171, 0.2
  %v1300 = vmul.f32 %v1172, 0.2
  %v1301 = vmul.f32 %v1173, 0.2
  %v1302 = vmul.f32 %v1174, 0.2
  %v1303 = vmul.f32 %v1175, 0.2
  %v1304 = vmul.f32 %v1176, 0.2
  %v1305 = vmul.f32 %v1177, 0.2
  %v1306 = vmul.f32 %v1178, 0.2
  %v1307 = vsel %vm1179, %v1115, %v1243
  %v1308 = vsel %vm1180, %v1116, %v1244
  %v1309 = vsel %vm1181, %v1117, %v1245
  %v1310 = vsel %vm1182, %v1118, %v1246
  %v1311 = vsel %vm1183, %v1119, %v1247
  %v1312 = vsel %vm1184, %v1120, %v1248
  %v1313 = vsel %vm1185, %v1121, %v1249
  %v1314 = vsel %vm1186, %v1122, %v1250
  %v1315 = vsel %vm1187, %v1123, %v1251
  %v1316 = vsel %vm1188, %v1124, %v1252
  %v1317 = vsel %vm1189, %v1125, %v1253
  %v1318 = vsel %vm1190, %v1126, %v1254
  %v1319 = vsel %vm1191, %v1127, %v1255
  %v1320 = vsel %vm1192, %v1128, %v1256
  %v1321 = vsel %vm1193, %v1129, %v1257
  %v1322 = vsel %vm1194, %v1130, %v1258
  %v1323 = vsel %vm1195, %v1131, %v1259
  %v1324 = vsel %vm1196, %v1132, %v1260
  %v1325 = vsel %vm1197, %v1133, %v1261
  %v1326 = vsel %vm1198, %v1134, %v1262
  %v1327 = vsel %vm1199, %v1135, %v1263
  %v1328 = vsel %vm1200, %v1136, %v1264
  %v1329 = vsel %vm1201, %v1137, %v1265
  %v1330 = vsel %vm1202, %v1138, %v1266
  %v1331 = vsel %vm1203, %v1139, %v1267
  %v1332 = vsel %vm1204, %v1140, %v1268
  %v1333 = vsel %vm1205, %v1141, %v1269
  %v1334 = vsel %vm1206, %v1142, %v1270
  %v1335 = vsel %vm1207, %v1143, %v1271
  %v1336 = vsel %vm1208, %v1144, %v1272
  %v1337 = vsel %vm1209, %v1145, %v1273
  %v1338 = vsel %vm1210, %v1146, %v1274
  %v1339 = vsel %vm1211, %v1147, %v1275
  %v1340 = vsel %vm1212, %v1148, %v1276
  %v1341 = vsel %vm1213, %v1149, %v1277
  %v1342 = vsel %vm1214, %v1150, %v1278
  %v1343 = vsel %vm1215, %v1151, %v1279
  %v1344 = vsel %vm1216, %v1152, %v1280
  %v1345 = vsel %vm1217, %v1153, %v1281
  %v1346 = vsel %vm1218, %v1154, %v1282
  %v1347 = vsel %vm1219, %v1155, %v1283
  %v1348 = vsel %vm1220, %v1156, %v1284
  %v1349 = vsel %vm1221, %v1157, %v1285
  %v1350 = vsel %vm1222, %v1158, %v1286
  %v1351 = vsel %vm1223, %v1159, %v1287
  %v1352 = vsel %vm1224, %v1160, %v1288
  %v1353 = vsel %vm1225, %v1161, %v1289
  %v1354 = vsel %vm1226, %v1162, %v1290
  %v1355 = vsel %vm1227, %v1163, %v1291
  %v1356 = vsel %vm1228, %v1164, %v1292
  %v1357 = vsel %vm1229, %v1165, %v1293
  %v1358 = vsel %vm1230, %v1166, %v1294
  %v1359 = vsel %vm1231, %v1167, %v1295
  %v1360 = vsel %vm1232, %v1168, %v1296
  %v1361 = vsel %vm1233, %v1169, %v1297
  %v1362 = vsel %vm1234, %v1170, %v1298
  %v1363 = vsel %vm1235, %v1171, %v1299
  %v1364 = vsel %vm1236, %v1172, %v1300
  %v1365 = vsel %vm1237, %v1173, %v1301
  %v1366 = vsel %vm1238, %v1174, %v1302
  %v1367 = vsel %vm1239, %v1175, %v1303
  %v1368 = vsel %vm1240, %v1176, %v1304
  %v1369 = vsel %vm1241, %v1177, %v1305
  %v1370 = vsel %vm1242, %v1178, %v1306
  %v1371 = vpack.c.bf16 %v1308, %v1307
  %v1372 = vpack.c.bf16 %v1310, %v1309
  %v1373 = vpack.c.bf16 %v1312, %v1311
  %v1374 = vpack.c.bf16 %v1314, %v1313
  %v1375 = vpack.c.bf16 %v1316, %v1315
  %v1376 = vpack.c.bf16 %v1318, %v1317
  %v1377 = vpack.c.bf16 %v1320, %v1319
  %v1378 = vpack.c.bf16 %v1322, %v1321
  %v1379 = vpack.c.bf16 %v1324, %v1323
  %v1380 = vpack.c.bf16 %v1326, %v1325
  %v1381 = vpack.c.bf16 %v1328, %v1327
  %v1382 = vpack.c.bf16 %v1330, %v1329
  %v1383 = vpack.c.bf16 %v1332, %v1331
  %v1384 = vpack.c.bf16 %v1334, %v1333
  %v1385 = vpack.c.bf16 %v1336, %v1335
  %v1386 = vpack.c.bf16 %v1338, %v1337
  %v1387 = vpack.c.bf16 %v1340, %v1339
  %v1388 = vpack.c.bf16 %v1342, %v1341
  %v1389 = vpack.c.bf16 %v1344, %v1343
  %v1390 = vpack.c.bf16 %v1346, %v1345
  %v1391 = vpack.c.bf16 %v1348, %v1347
  %v1392 = vpack.c.bf16 %v1350, %v1349
  %v1393 = vpack.c.bf16 %v1352, %v1351
  %v1394 = vpack.c.bf16 %v1354, %v1353
  %v1395 = vpack.c.bf16 %v1356, %v1355
  %v1396 = vpack.c.bf16 %v1358, %v1357
  %v1397 = vpack.c.bf16 %v1360, %v1359
  %v1398 = vpack.c.bf16 %v1362, %v1361
  %v1399 = vpack.c.bf16 %v1364, %v1363
  %v1400 = vpack.c.bf16 %v1366, %v1365
  %v1401 = vpack.c.bf16 %v1368, %v1367
  %v1402 = vpack.c.bf16 %v1370, %v1369
  %v1435 = vunpack.c.l.b16 %v1371
  %v1436 = vunpack.c.h.b16 %v1371
  %v1437 = vunpack.c.l.b16 %v1372
  %v1438 = vunpack.c.h.b16 %v1372
  %v1439 = vunpack.c.l.b16 %v1373
  %v1440 = vunpack.c.h.b16 %v1373
  %v1441 = vunpack.c.l.b16 %v1374
  %v1442 = vunpack.c.h.b16 %v1374
  %v1443 = vunpack.c.l.b16 %v1375
  %v1444 = vunpack.c.h.b16 %v1375
  %v1445 = vunpack.c.l.b16 %v1376
  %v1446 = vunpack.c.h.b16 %v1376
  %v1447 = vunpack.c.l.b16 %v1377
  %v1448 = vunpack.c.h.b16 %v1377
  %v1449 = vunpack.c.l.b16 %v1378
  %v1450 = vunpack.c.h.b16 %v1378
  %v1451 = vunpack.c.l.b16 %v1379
  %v1452 = vunpack.c.h.b16 %v1379
  %v1453 = vunpack.c.l.b16 %v1380
  %v1454 = vunpack.c.h.b16 %v1380
  %v1455 = vunpack.c.l.b16 %v1381
  %v1456 = vunpack.c.h.b16 %v1381
  %v1457 = vunpack.c.l.b16 %v1382
  %v1458 = vunpack.c.h.b16 %v1382
  %v1459 = vunpack.c.l.b16 %v1383
  %v1460 = vunpack.c.h.b16 %v1383
  %v1461 = vunpack.c.l.b16 %v1384
  %v1462 = vunpack.c.h.b16 %v1384
  %v1463 = vunpack.c.l.b16 %v1385
  %v1464 = vunpack.c.h.b16 %v1385
  %v1465 = vunpack.c.l.b16 %v1386
  %v1466 = vunpack.c.h.b16 %v1386
  %v1467 = vunpack.c.l.b16 %v1387
  %v1468 = vunpack.c.h.b16 %v1387
  %v1469 = vunpack.c.l.b16 %v1388
  %v1470 = vunpack.c.h.b16 %v1388
  %v1471 = vunpack.c.l.b16 %v1389
  %v1472 = vunpack.c.h.b16 %v1389
  %v1473 = vunpack.c.l.b16 %v1390
  %v1474 = vunpack.c.h.b16 %v1390
  %v1475 = vunpack.c.l.b16 %v1391
  %v1476 = vunpack.c.h.b16 %v1391
  %v1477 = vunpack.c.l.b16 %v1392
  %v1478 = vunpack.c.h.b16 %v1392
  %v1479 = vunpack.c.l.b16 %v1393
  %v1480 = vunpack.c.h.b16 %v1393
  %v1481 = vunpack.c.l.b16 %v1394
  %v1482 = vunpack.c.h.b16 %v1394
  %v1483 = vunpack.c.l.b16 %v1395
  %v1484 = vunpack.c.h.b16 %v1395
  %v1485 = vunpack.c.l.b16 %v1396
  %v1486 = vunpack.c.h.b16 %v1396
  %v1487 = vunpack.c.l.b16 %v1397
  %v1488 = vunpack.c.h.b16 %v1397
  %v1489 = vunpack.c.l.b16 %v1398
  %v1490 = vunpack.c.h.b16 %v1398
  %v1491 = vunpack.c.l.b16 %v1399
  %v1492 = vunpack.c.h.b16 %v1399
  %v1493 = vunpack.c.l.b16 %v1400
  %v1494 = vunpack.c.h.b16 %v1400
  %v1495 = vunpack.c.l.b16 %v1401
  %v1496 = vunpack.c.h.b16 %v1401
  %v1497 = vunpack.c.l.b16 %v1402
  %v1498 = vunpack.c.h.b16 %v1402
  %v1499 = vpack.c.b16 %v1435, %v1435
  %v1500 = vpack.c.b16 %v1436, %v1436
  %v1501 = vpack.c.b16 %v1437, %v1437
  %v1502 = vpack.c.b16 %v1438, %v1438
  %v1503 = vpack.c.b16 %v1439, %v1439
  %v1504 = vpack.c.b16 %v1440, %v1440
  %v1505 = vpack.c.b16 %v1441, %v1441
  %v1506 = vpack.c.b16 %v1442, %v1442
  %v1507 = vpack.c.b16 %v1443, %v1443
  %v1508 = vpack.c.b16 %v1444, %v1444
  %v1509 = vpack.c.b16 %v1445, %v1445
  %v1510 = vpack.c.b16 %v1446, %v1446
  %v1511 = vpack.c.b16 %v1447, %v1447
  %v1512 = vpack.c.b16 %v1448, %v1448
  %v1513 = vpack.c.b16 %v1449, %v1449
  %v1514 = vpack.c.b16 %v1450, %v1450
  %v1515 = vpack.c.b16 %v1451, %v1451
  %v1516 = vpack.c.b16 %v1452, %v1452
  %v1517 = vpack.c.b16 %v1453, %v1453
  %v1518 = vpack.c.b16 %v1454, %v1454
  %v1519 = vpack.c.b16 %v1455, %v1455
  %v1520 = vpack.c.b16 %v1456, %v1456
  %v1521 = vpack.c.b16 %v1457, %v1457
  %v1522 = vpack.c.b16 %v1458, %v1458
  %v1523 = vpack.c.b16 %v1459, %v1459
  %v1524 = vpack.c.b16 %v1460, %v1460
  %v1525 = vpack.c.b16 %v1461, %v1461
  %v1526 = vpack.c.b16 %v1462, %v1462
  %v1527 = vpack.c.b16 %v1463, %v1463
  %v1528 = vpack.c.b16 %v1464, %v1464
  %v1529 = vpack.c.b16 %v1465, %v1465
  %v1530 = vpack.c.b16 %v1466, %v1466
  %v1531 = vpack.c.b16 %v1467, %v1467
  %v1532 = vpack.c.b16 %v1468, %v1468
  %v1533 = vpack.c.b16 %v1469, %v1469
  %v1534 = vpack.c.b16 %v1470, %v1470
  %v1535 = vpack.c.b16 %v1471, %v1471
  %v1536 = vpack.c.b16 %v1472, %v1472
  %v1537 = vpack.c.b16 %v1473, %v1473
  %v1538 = vpack.c.b16 %v1474, %v1474
  %v1539 = vpack.c.b16 %v1475, %v1475
  %v1540 = vpack.c.b16 %v1476, %v1476
  %v1541 = vpack.c.b16 %v1477, %v1477
  %v1542 = vpack.c.b16 %v1478, %v1478
  %v1543 = vpack.c.b16 %v1479, %v1479
  %v1544 = vpack.c.b16 %v1480, %v1480
  %v1545 = vpack.c.b16 %v1481, %v1481
  %v1546 = vpack.c.b16 %v1482, %v1482
  %v1547 = vpack.c.b16 %v1483, %v1483
  %v1548 = vpack.c.b16 %v1484, %v1484
  %v1549 = vpack.c.b16 %v1485, %v1485
  %v1550 = vpack.c.b16 %v1486, %v1486
  %v1551 = vpack.c.b16 %v1487, %v1487
  %v1552 = vpack.c.b16 %v1488, %v1488
  %v1553 = vpack.c.b16 %v1489, %v1489
  %v1554 = vpack.c.b16 %v1490, %v1490
  %v1555 = vpack.c.b16 %v1491, %v1491
  %v1556 = vpack.c.b16 %v1492, %v1492
  %v1557 = vpack.c.b16 %v1493, %v1493
  %v1558 = vpack.c.b16 %v1494, %v1494
  %v1559 = vpack.c.b16 %v1495, %v1495
  %v1560 = vpack.c.b16 %v1496, %v1496
  %v1561 = vpack.c.b16 %v1497, %v1497
  %v1562 = vpack.c.b16 %v1498, %v1498
  %vm1627 = vcmask 125952
  %1628 = vst.msk [vmem:[%s5] sm:$0xf] %vm1627, %v1499
  %1629 = vst.msk [vmem:[%s5 + $0x4] sm:$0xf] %vm1627, %v1500
  %1630 = vst.msk [vmem:[%s5 + $0x8] sm:$0xf] %vm1627, %v1501
  %1631 = vst.msk [vmem:[%s5 + $0xc] sm:$0xf] %vm1627, %v1502
  %1632 = vst.msk [vmem:[%s5 + $0x10] sm:$0xf] %vm1627, %v1503
  %1633 = vst.msk [vmem:[%s5 + $0x14] sm:$0xf] %vm1627, %v1504
  %1634 = vst.msk [vmem:[%s5 + $0x18] sm:$0xf] %vm1627, %v1505
  %1635 = vst.msk [vmem:[%s5 + $0x1c] sm:$0xf] %vm1627, %v1506
  %1636 = vst.msk [vmem:[%s5 + $0x20] sm:$0xf] %vm1627, %v1507
  %1637 = vst.msk [vmem:[%s5 + $0x24] sm:$0xf] %vm1627, %v1508
  %1638 = vst.msk [vmem:[%s5 + $0x28] sm:$0xf] %vm1627, %v1509
  %1639 = vst.msk [vmem:[%s5 + $0x2c] sm:$0xf] %vm1627, %v1510
  %1640 = vst.msk [vmem:[%s5 + $0x30] sm:$0xf] %vm1627, %v1511
  %1641 = vst.msk [vmem:[%s5 + $0x34] sm:$0xf] %vm1627, %v1512
  %1642 = vst.msk [vmem:[%s5 + $0x38] sm:$0xf] %vm1627, %v1513
  %1643 = vst.msk [vmem:[%s5 + $0x3c] sm:$0xf] %vm1627, %v1514
  %1644 = vst.msk [vmem:[%s5 + $0x40] sm:$0xf] %vm1627, %v1515
  %1645 = vst.msk [vmem:[%s5 + $0x44] sm:$0xf] %vm1627, %v1516
  %1646 = vst.msk [vmem:[%s5 + $0x48] sm:$0xf] %vm1627, %v1517
  %1647 = vst.msk [vmem:[%s5 + $0x4c] sm:$0xf] %vm1627, %v1518
  %1648 = vst.msk [vmem:[%s5 + $0x50] sm:$0xf] %vm1627, %v1519
  %1649 = vst.msk [vmem:[%s5 + $0x54] sm:$0xf] %vm1627, %v1520
  %1650 = vst.msk [vmem:[%s5 + $0x58] sm:$0xf] %vm1627, %v1521
  %1651 = vst.msk [vmem:[%s5 + $0x5c] sm:$0xf] %vm1627, %v1522
  %1652 = vst.msk [vmem:[%s5 + $0x60] sm:$0xf] %vm1627, %v1523
  %1653 = vst.msk [vmem:[%s5 + $0x64] sm:$0xf] %vm1627, %v1524
  %1654 = vst.msk [vmem:[%s5 + $0x68] sm:$0xf] %vm1627, %v1525
  %1655 = vst.msk [vmem:[%s5 + $0x6c] sm:$0xf] %vm1627, %v1526
  %1656 = vst.msk [vmem:[%s5 + $0x70] sm:$0xf] %vm1627, %v1527
  %1657 = vst.msk [vmem:[%s5 + $0x74] sm:$0xf] %vm1627, %v1528
  %1658 = vst.msk [vmem:[%s5 + $0x78] sm:$0xf] %vm1627, %v1529
  %1659 = vst.msk [vmem:[%s5 + $0x7c] sm:$0xf] %vm1627, %v1530
  %1660 = vst.msk [vmem:[%s5 + $0x80] sm:$0xf] %vm1627, %v1531
  %1661 = vst.msk [vmem:[%s5 + $0x84] sm:$0xf] %vm1627, %v1532
  %1662 = vst.msk [vmem:[%s5 + $0x88] sm:$0xf] %vm1627, %v1533
  %1663 = vst.msk [vmem:[%s5 + $0x8c] sm:$0xf] %vm1627, %v1534
  %1664 = vst.msk [vmem:[%s5 + $0x90] sm:$0xf] %vm1627, %v1535
  %1665 = vst.msk [vmem:[%s5 + $0x94] sm:$0xf] %vm1627, %v1536
  %1666 = vst.msk [vmem:[%s5 + $0x98] sm:$0xf] %vm1627, %v1537
  %1667 = vst.msk [vmem:[%s5 + $0x9c] sm:$0xf] %vm1627, %v1538
  %1668 = vst.msk [vmem:[%s5 + $0xa0] sm:$0xf] %vm1627, %v1539
  %1669 = vst.msk [vmem:[%s5 + $0xa4] sm:$0xf] %vm1627, %v1540
  %1670 = vst.msk [vmem:[%s5 + $0xa8] sm:$0xf] %vm1627, %v1541
  %1671 = vst.msk [vmem:[%s5 + $0xac] sm:$0xf] %vm1627, %v1542
  %1672 = vst.msk [vmem:[%s5 + $0xb0] sm:$0xf] %vm1627, %v1543
  %1673 = vst.msk [vmem:[%s5 + $0xb4] sm:$0xf] %vm1627, %v1544
  %1674 = vst.msk [vmem:[%s5 + $0xb8] sm:$0xf] %vm1627, %v1545
  %1675 = vst.msk [vmem:[%s5 + $0xbc] sm:$0xf] %vm1627, %v1546
  %1676 = vst.msk [vmem:[%s5 + $0xc0] sm:$0xf] %vm1627, %v1547
  %1677 = vst.msk [vmem:[%s5 + $0xc4] sm:$0xf] %vm1627, %v1548
  %1678 = vst.msk [vmem:[%s5 + $0xc8] sm:$0xf] %vm1627, %v1549
  %1679 = vst.msk [vmem:[%s5 + $0xcc] sm:$0xf] %vm1627, %v1550
  %1680 = vst.msk [vmem:[%s5 + $0xd0] sm:$0xf] %vm1627, %v1551
  %1681 = vst.msk [vmem:[%s5 + $0xd4] sm:$0xf] %vm1627, %v1552
  %1682 = vst.msk [vmem:[%s5 + $0xd8] sm:$0xf] %vm1627, %v1553
  %1683 = vst.msk [vmem:[%s5 + $0xdc] sm:$0xf] %vm1627, %v1554
  %1684 = vst.msk [vmem:[%s5 + $0xe0] sm:$0xf] %vm1627, %v1555
  %1685 = vst.msk [vmem:[%s5 + $0xe4] sm:$0xf] %vm1627, %v1556
  %1686 = vst.msk [vmem:[%s5 + $0xe8] sm:$0xf] %vm1627, %v1557
  %1687 = vst.msk [vmem:[%s5 + $0xec] sm:$0xf] %vm1627, %v1558
  %1688 = vst.msk [vmem:[%s5 + $0xf0] sm:$0xf] %vm1627, %v1559
  %1689 = vst.msk [vmem:[%s5 + $0xf4] sm:$0xf] %vm1627, %v1560
  %1690 = vst.msk [vmem:[%s5 + $0xf8] sm:$0xf] %vm1627, %v1561
  %1691 = vst.msk [vmem:[%s5 + $0xfc] sm:$0xf] %vm1627, %v1562
  // Predicated region
  $region22: #{egan_discriminator_forward.5} parent=0 // pred_check
    _
  $region23: #{egan_discriminator_forward.5} parent=0 // pred_check_branch
    %1693 = sbr.rel (0) target = $region25
  $region24: #{egan_discriminator_forward.5} parent=0 // pred_region
    _
  $region25: #{egan_discriminator_forward.5} parent=0 // pred_fallthru
    _
  // Predicated region
  $region26: #{egan_discriminator_forward.5} parent=0 // pred_check
    _
  $region27: #{egan_discriminator_forward.5} parent=0 // pred_check_branch
    %1695 = sbr.rel (0) target = $region29
  $region28: #{egan_discriminator_forward.5} parent=0 // pred_region
    _
  $region29: #{egan_discriminator_forward.5} parent=0 // pred_fallthru
    _

// kernel: egan_discriminator_forward.6
$region0: #{egan_discriminator_forward.6}
  #allocation0 [shape = 'u32[]', space=smem, size = 0x4, offset = 0x4, fixed_abs, tag = 'smem constant byte address 0x4 - core index']
  #allocation1 [shape = 'u32[144,128]{1,0:T(1,128)}', space=vmem, size = 0x12000, scoped, tag = 'internal scratch']
  %s0 = inlined_call_operand.vmem [shape: bf16[128,256], index: 0, kind: input, shape index: {}]
  %s1 = inlined_call_operand.vmem [shape: bf16[256,32], index: 1, kind: input, shape index: {}]
  %s2 = inlined_call_operand.vmem [shape: f32[1,32], index: 2, kind: input, shape index: {}]
  %s3 = inlined_call_operand.vmem [shape: f32[1,32], index: 3, kind: input, shape index: {}]
  %s4 = inlined_call_operand.vmem [shape: f32[1,32], index: 4, kind: input, shape index: {}]
  %s5 = inlined_call_operand.vmem [shape: bf16[128,32], index: 5, kind: output, shape index: {}]
  %s6 = sld [smem:[#allocation0]]
  $region30: #{egan_discriminator_forward.6} parent=0
    _
  %s8 = ssub.s32 1, %s6
  %s9 = scalar_select 0, %s8, %s6
  // Predicated region
  $region2: #{egan_discriminator_forward.6} parent=0 // pred_check
    _
  $region3: #{egan_discriminator_forward.6} parent=0 // pred_check_branch
    %11 = sbr.rel (0) target = $region5
  $region4: #{egan_discriminator_forward.6} parent=0 // pred_region
    _
  $region5: #{egan_discriminator_forward.6} parent=0 // pred_fallthru
    _
  // Predicated region
  $region6: #{egan_discriminator_forward.6} parent=0 // pred_check
    _
  $region7: #{egan_discriminator_forward.6} parent=0 // pred_check_branch
    %13 = sbr.rel (0) target = $region9
  $region8: #{egan_discriminator_forward.6} parent=0 // pred_region
    _
  $region9: #{egan_discriminator_forward.6} parent=0 // pred_fallthru
    _
  // Predicated region
  $region10: #{egan_discriminator_forward.6} parent=0 // pred_check
    _
  $region11: #{egan_discriminator_forward.6} parent=0 // pred_check_branch
    %15 = sbr.rel (0) target = $region13
  $region12: #{egan_discriminator_forward.6} parent=0 // pred_region
    _
  $region13: #{egan_discriminator_forward.6} parent=0 // pred_fallthru
    _
  // Predicated region
  $region14: #{egan_discriminator_forward.6} parent=0 // pred_check
    _
  $region15: #{egan_discriminator_forward.6} parent=0 // pred_check_branch
    %17 = sbr.rel (0) target = $region17
  $region16: #{egan_discriminator_forward.6} parent=0 // pred_region
    _
  $region17: #{egan_discriminator_forward.6} parent=0 // pred_fallthru
    _
  // Predicated region
  $region18: #{egan_discriminator_forward.6} parent=0 // pred_check
    _
  $region19: #{egan_discriminator_forward.6} parent=0 // pred_check_branch
    %19 = sbr.rel (0) target = $region21
  $region20: #{egan_discriminator_forward.6} parent=0 // pred_region
    _
  $region21: #{egan_discriminator_forward.6} parent=0 // pred_fallthru
    _
  %v21 = vld [vmem:[%s0] sm:$0xff]
  %v22 = vld [vmem:[%s0 + $0x8] sm:$0xff]
  %v23 = vld [vmem:[%s0 + $0x10] sm:$0xff]
  %v24 = vld [vmem:[%s0 + $0x18] sm:$0xff]
  %v25 = vld [vmem:[%s0 + $0x20] sm:$0xff]
  %v26 = vld [vmem:[%s0 + $0x28] sm:$0xff]
  %v27 = vld [vmem:[%s0 + $0x30] sm:$0xff]
  %v28 = vld [vmem:[%s0 + $0x38] sm:$0xff]
  %v29 = vld [vmem:[%s0 + $0x40] sm:$0xff]
  %v30 = vld [vmem:[%s0 + $0x48] sm:$0xff]
  %v31 = vld [vmem:[%s0 + $0x50] sm:$0xff]
  %v32 = vld [vmem:[%s0 + $0x58] sm:$0xff]
  %v33 = vld [vmem:[%s0 + $0x60] sm:$0xff]
  %v34 = vld [vmem:[%s0 + $0x68] sm:$0xff]
  %v35 = vld [vmem:[%s0 + $0x70] sm:$0xff]
  %v36 = vld [vmem:[%s0 + $0x78] sm:$0xff]
  %v37 = vld [vmem:[%s1] sm:$0xf]
  %v38 = vld [vmem:[%s1 + $0x4] sm:$0xf]
  %v39 = vld [vmem:[%s1 + $0x8] sm:$0xf]
  %v40 = vld [vmem:[%s1 + $0xc] sm:$0xf]
  %v41 = vld [vmem:[%s1 + $0x10] sm:$0xf]
  %v42 = vld [vmem:[%s1 + $0x14] sm:$0xf]
  %v43 = vld [vmem:[%s1 + $0x18] sm:$0xf]
  %v44 = vld [vmem:[%s1 + $0x1c] sm:$0xf]
  %v45 = vld [vmem:[%s1 + $0x20] sm:$0xf]
  %v46 = vld [vmem:[%s1 + $0x24] sm:$0xf]
  %v47 = vld [vmem:[%s1 + $0x28] sm:$0xf]
  %v48 = vld [vmem:[%s1 + $0x2c] sm:$0xf]
  %v49 = vld [vmem:[%s1 + $0x30] sm:$0xf]
  %v50 = vld [vmem:[%s1 + $0x34] sm:$0xf]
  %v51 = vld [vmem:[%s1 + $0x38] sm:$0xf]
  %v52 = vld [vmem:[%s1 + $0x3c] sm:$0xf]
  %v53 = vld [vmem:[%s1 + $0x40] sm:$0xf]
  %v54 = vld [vmem:[%s1 + $0x44] sm:$0xf]
  %v55 = vld [vmem:[%s1 + $0x48] sm:$0xf]
  %v56 = vld [vmem:[%s1 + $0x4c] sm:$0xf]
  %v57 = vld [vmem:[%s1 + $0x50] sm:$0xf]
  %v58 = vld [vmem:[%s1 + $0x54] sm:$0xf]
  %v59 = vld [vmem:[%s1 + $0x58] sm:$0xf]
  %v60 = vld [vmem:[%s1 + $0x5c] sm:$0xf]
  %v61 = vld [vmem:[%s1 + $0x60] sm:$0xf]
  %v62 = vld [vmem:[%s1 + $0x64] sm:$0xf]
  %v63 = vld [vmem:[%s1 + $0x68] sm:$0xf]
  %v64 = vld [vmem:[%s1 + $0x6c] sm:$0xf]
  %v65 = vld [vmem:[%s1 + $0x70] sm:$0xf]
  %v66 = vld [vmem:[%s1 + $0x74] sm:$0xf]
  %v67 = vld [vmem:[%s1 + $0x78] sm:$0xf]
  %v68 = vld [vmem:[%s1 + $0x7c] sm:$0xf]
  %v69 = vld [vmem:[%s2] sm:$0x1]
  %v71 = vlaneseq
  %v72 = vshrl.u32 %v71, 7
  %v73 = vsub.s32 0, %v72
  %v74 = vrot.slane %v69, %v73
  %v92 = vunpack.c.l.b16 %v21
  %v93 = vunpack.c.h.b16 %v21
  %v94 = vunpack.c.l.b16 %v22
  %v95 = vunpack.c.h.b16 %v22
  %v96 = vunpack.c.l.b16 %v23
  %v97 = vunpack.c.h.b16 %v23
  %v98 = vunpack.c.l.b16 %v24
  %v99 = vunpack.c.h.b16 %v24
  %v100 = vunpack.c.l.b16 %v25
  %v101 = vunpack.c.h.b16 %v25
  %v102 = vunpack.c.l.b16 %v26
  %v103 = vunpack.c.h.b16 %v26
  %v104 = vunpack.c.l.b16 %v27
  %v105 = vunpack.c.h.b16 %v27
  %v106 = vunpack.c.l.b16 %v28
  %v107 = vunpack.c.h.b16 %v28
  %v108 = vunpack.c.l.b16 %v29
  %v109 = vunpack.c.h.b16 %v29
  %v110 = vunpack.c.l.b16 %v30
  %v111 = vunpack.c.h.b16 %v30
  %v112 = vunpack.c.l.b16 %v31
  %v113 = vunpack.c.h.b16 %v31
  %v114 = vunpack.c.l.b16 %v32
  %v115 = vunpack.c.h.b16 %v32
  %v116 = vunpack.c.l.b16 %v33
  %v117 = vunpack.c.h.b16 %v33
  %v118 = vunpack.c.l.b16 %v34
  %v119 = vunpack.c.h.b16 %v34
  %v120 = vunpack.c.l.b16 %v35
  %v121 = vunpack.c.h.b16 %v35
  %v122 = vunpack.c.l.b16 %v36
  %v123 = vunpack.c.h.b16 %v36
  %v124 = vpack.c.b16 %v94, %v92
  %v125 = vpack.c.b16 %v95, %v93
  %v126 = vpack.c.b16 %v98, %v96
  %v127 = vpack.c.b16 %v99, %v97
  %v128 = vpack.c.b16 %v102, %v100
  %v129 = vpack.c.b16 %v103, %v101
  %v130 = vpack.c.b16 %v106, %v104
  %v131 = vpack.c.b16 %v107, %v105
  %v132 = vpack.c.b16 %v110, %v108
  %v133 = vpack.c.b16 %v111, %v109
  %v134 = vpack.c.b16 %v114, %v112
  %v135 = vpack.c.b16 %v115, %v113
  %v136 = vpack.c.b16 %v118, %v116
  %v137 = vpack.c.b16 %v119, %v117
  %v138 = vpack.c.b16 %v122, %v120
  %v139 = vpack.c.b16 %v123, %v121
  %v188 = vunpack.c.l.b16 %v37
  %v189 = vunpack.c.l.b16 %v38
  %v190 = vunpack.c.l.b16 %v39
  %v191 = vunpack.c.l.b16 %v40
  %v192 = vunpack.c.l.b16 %v41
  %v193 = vunpack.c.l.b16 %v42
  %v194 = vunpack.c.l.b16 %v43
  %v195 = vunpack.c.l.b16 %v44
  %v196 = vunpack.c.l.b16 %v45
  %v197 = vunpack.c.l.b16 %v46
  %v198 = vunpack.c.l.b16 %v47
  %v199 = vunpack.c.l.b16 %v48
  %v200 = vunpack.c.l.b16 %v49
  %v201 = vunpack.c.l.b16 %v50
  %v202 = vunpack.c.l.b16 %v51
  %v203 = vunpack.c.l.b16 %v52
  %v204 = vunpack.c.l.b16 %v53
  %v205 = vunpack.c.l.b16 %v54
  %v206 = vunpack.c.l.b16 %v55
  %v207 = vunpack.c.l.b16 %v56
  %v208 = vunpack.c.l.b16 %v57
  %v209 = vunpack.c.l.b16 %v58
  %v210 = vunpack.c.l.b16 %v59
  %v211 = vunpack.c.l.b16 %v60
  %v212 = vunpack.c.l.b16 %v61
  %v213 = vunpack.c.l.b16 %v62
  %v214 = vunpack.c.l.b16 %v63
  %v215 = vunpack.c.l.b16 %v64
  %v216 = vunpack.c.l.b16 %v65
  %v217 = vunpack.c.l.b16 %v66
  %v218 = vunpack.c.l.b16 %v67
  %v219 = vunpack.c.l.b16 %v68
  %v220 = vpack.c.b16 %v189, %v188
  %v221 = vpack.c.b16 %v191, %v190
  %v222 = vpack.c.b16 %v193, %v192
  %v223 = vpack.c.b16 %v195, %v194
  %v224 = vpack.c.b16 %v197, %v196
  %v225 = vpack.c.b16 %v199, %v198
  %v226 = vpack.c.b16 %v201, %v200
  %v227 = vpack.c.b16 %v203, %v202
  %v228 = vpack.c.b16 %v205, %v204
  %v229 = vpack.c.b16 %v207, %v206
  %v230 = vpack.c.b16 %v209, %v208
  %v231 = vpack.c.b16 %v211, %v210
  %v232 = vpack.c.b16 %v213, %v212
  %v233 = vpack.c.b16 %v215, %v214
  %v234 = vpack.c.b16 %v217, %v216
  %v235 = vpack.c.b16 %v219, %v218
  %252 = vmatprep.subr.bf16.mxu0 0
  %253 = vmatpush1.bf16.msra.mxu0 %v220
  %254 = vmatprep.subr.bf16.mxu0 0
  %255 = vmatpush1.bf16.msra.mxu0 %v221
  %256 = vmatprep.subr.bf16.mxu0 0
  %257 = vmatpush1.bf16.msra.mxu0 %v222
  %258 = vmatprep.subr.bf16.mxu0 0
  %259 = vmatpush1.bf16.msra.mxu0 %v223
  %260 = vmatprep.subr.bf16.mxu0 0
  %261 = vmatpush1.bf16.msra.mxu0 %v224
  %262 = vmatprep.subr.bf16.mxu0 0
  %263 = vmatpush1.bf16.msra.mxu0 %v225
  %264 = vmatprep.subr.bf16.mxu0 0
  %265 = vmatpush1.bf16.msra.mxu0 %v226
  %266 = vmatprep.subr.bf16.mxu0 0
  %267 = vmatpush1.bf16.msra.mxu0 %v227
  %268 = vmatprep.subr.bf16.mxu0 0
  %269 = vmatpush1.bf16.msra.mxu0 %v228
  %270 = vmatprep.subr.bf16.mxu0 0
  %271 = vmatpush1.bf16.msra.mxu0 %v229
  %272 = vmatprep.subr.bf16.mxu0 0
  %273 = vmatpush1.bf16.msra.mxu0 %v230
  %274 = vmatprep.subr.bf16.mxu0 0
  %275 = vmatpush1.bf16.msra.mxu0 %v231
  %276 = vmatprep.subr.bf16.mxu0 0
  %277 = vmatpush1.bf16.msra.mxu0 %v232
  %278 = vmatprep.subr.bf16.mxu0 0
  %279 = vmatpush1.bf16.msra.mxu0 %v233
  %280 = vmatprep.subr.bf16.mxu0 0
  %281 = vmatpush1.bf16.msra.mxu0 %v234
  %282 = vmatprep.subr.bf16.mxu0 0
  %283 = vmatpush1.bf16.msra.mxu0 %v235
  %284 = vmatprep.mubr.bf16.mxu0 %v125
  %285 = vmatmul.mubr.bf16.gmra.mrb[0].mxu0 %v124
  %v286 = vpop.f32.mrb[0].mxu0
  %v287 = vadd.f32 %v74, %v286
  %v288 = vpop.f32.mrb[0].mxu0
  %v289 = vpop.f32.mrb[0].mxu0
  %v290 = vadd.f32 %v74, %v289
  %v291 = vpop.f32.mrb[0].mxu0
  %292 = vmatprep.mubr.bf16.mxu0 %v127
  %293 = vmatmul.mubr.bf16.gmra.mrb[0].mxu0 %v126
  %v294 = vpop.f32.mrb[0].mxu0
  %v295 = vadd.f32 %v74, %v294
  %v296 = vpop.f32.mrb[0].mxu0
  %v297 = vpop.f32.mrb[0].mxu0
  %v298 = vadd.f32 %v74, %v297
  %v299 = vpop.f32.mrb[0].mxu0
  %300 = vmatprep.mubr.bf16.mxu0 %v129
  %301 = vmatmul.mubr.bf16.gmra.mrb[0].mxu0 %v128
  %v302 = vpop.f32.mrb[0].mxu0
  %v303 = vadd.f32 %v74, %v302
  %v304 = vpop.f32.mrb[0].mxu0
  %v305 = vpop.f32.mrb[0].mxu0
  %v306 = vadd.f32 %v74, %v305
  %v307 = vpop.f32.mrb[0].mxu0
  %308 = vmatprep.mubr.bf16.mxu0 %v131
  %309 = vmatmul.mubr.bf16.gmra.mrb[0].mxu0 %v130
  %v310 = vpop.f32.mrb[0].mxu0
  %v311 = vadd.f32 %v74, %v310
  %v312 = vpop.f32.mrb[0].mxu0
  %v313 = vpop.f32.mrb[0].mxu0
  %v314 = vadd.f32 %v74, %v313
  %v315 = vpop.f32.mrb[0].mxu0
  %316 = vmatprep.mubr.bf16.mxu0 %v133
  %317 = vmatmul.mubr.bf16.gmra.mrb[0].mxu0 %v132
  %v318 = vpop.f32.mrb[0].mxu0
  %v319 = vadd.f32 %v74, %v318
  %v320 = vpop.f32.mrb[0].mxu0
  %v321 = vpop.f32.mrb[0].mxu0
  %v322 = vadd.f32 %v74, %v321
  %v323 = vpop.f32.mrb[0].mxu0
  %324 = vmatprep.mubr.bf16.mxu0 %v135
  %325 = vmatmul.mubr.bf16.gmra.mrb[0].mxu0 %v134
  %v326 = vpop.f32.mrb[0].mxu0
  %v327 = vadd.f32 %v74, %v326
  %v328 = vpop.f32.mrb[0].mxu0
  %v329 = vpop.f32.mrb[0].mxu0
  %v330 = vadd.f32 %v74, %v329
  %v331 = vpop.f32.mrb[0].mxu0
  %332 = vmatprep.mubr.bf16.mxu0 %v137
  %333 = vmatmul.mubr.bf16.gmra.mrb[0].mxu0 %v136
  %v334 = vpop.f32.mrb[0].mxu0
  %v335 = vadd.f32 %v74, %v334
  %v336 = vpop.f32.mrb[0].mxu0
  %v337 = vpop.f32.mrb[0].mxu0
  %v338 = vadd.f32 %v74, %v337
  %v339 = vpop.f32.mrb[0].mxu0
  %340 = vmatprep.mubr.bf16.mxu0 %v139
  %341 = vmatmul.mubr.bf16.gmra.mrb[0].mxu0 %v138
  %v342 = vpop.f32.mrb[0].mxu0
  %v343 = vadd.f32 %v74, %v342
  %v344 = vpop.f32.mrb[0].mxu0
  %v345 = vpop.f32.mrb[0].mxu0
  %v346 = vadd.f32 %v74, %v345
  %v347 = vpop.f32.mrb[0].mxu0
  %348 = vdwg.mxu0
  %vm349 = vcmask 261120
  %v350 = vsel %vm349, %v287, 0.0
  %v351 = vsel %vm349, %v290, 0.0
  %v352 = vadd.f32 %v350, %v351
  %v353 = vsel %vm349, %v295, 0.0
  %v354 = vadd.f32 %v352, %v353
  %v355 = vsel %vm349, %v298, 0.0
  %v356 = vadd.f32 %v354, %v355
  %v357 = vsel %vm349, %v303, 0.0
  %v358 = vadd.f32 %v356, %v357
  %v359 = vsel %vm349, %v306, 0.0
  %v360 = vadd.f32 %v358, %v359
  %v361 = vsel %vm349, %v311, 0.0
  %v362 = vadd.f32 %v360, %v361
  %v363 = vsel %vm349, %v314, 0.0
  %v364 = vadd.f32 %v362, %v363
  %v365 = vsel %vm349, %v319, 0.0
  %v366 = vadd.f32 %v364, %v365
  %v367 = vsel %vm349, %v322, 0.0
  %v368 = vadd.f32 %v366, %v367
  %v369 = vsel %vm349, %v327, 0.0
  %v370 = vadd.f32 %v368, %v369
  %v371 = vsel %vm349, %v330, 0.0
  %v372 = vadd.f32 %v370, %v371
  %v373 = vsel %vm349, %v335, 0.0
  %v374 = vadd.f32 %v372, %v373
  %v375 = vsel %vm349, %v338, 0.0
  %v376 = vadd.f32 %v374, %v375
  %v377 = vsel %vm349, %v343, 0.0
  %v378 = vadd.f32 %v376, %v377
  %v379 = vsel %vm349, %v346, 0.0
  %v380 = vadd.f32 %v378, %v379
  %v381 = vrot.slane %v380, 4
  %v382 = vadd.f32 %v380, %v381
  %v383 = vrot.slane %v382, 2
  %v384 = vadd.f32 %v382, %v383
  %v385 = vrot.slane %v384, 1
  %v386 = vadd.f32 %v384, %v385
  %v387 = vmul.f32 %v386, 0.0078125
  %v388 = vsub.f32 %v287, %v387
  %v389 = vsub.f32 %v290, %v387
  %v390 = vsub.f32 %v295, %v387
  %v391 = vsub.f32 %v298, %v387
  %v392 = vsub.f32 %v303, %v387
  %v393 = vsub.f32 %v306, %v387
  %v394 = vsub.f32 %v311, %v387
  %v395 = vsub.f32 %v314, %v387
  %v396 = vsub.f32 %v319, %v387
  %v397 = vsub.f32 %v322, %v387
  %v398 = vsub.f32 %v327, %v387
  %v399 = vsub.f32 %v330, %v387
  %v400 = vsub.f32 %v335, %v387
  %v401 = vsub.f32 %v338, %v387
  %v402 = vsub.f32 %v343, %v387
  %v403 = vsub.f32 %v346, %v387
  %v404 = vmul.f32 %v388, %v388
  %v405 = vmul.f32 %v389, %v389
  %v406 = vmul.f32 %v390, %v390
  %v407 = vmul.f32 %v391, %v391
  %v408 = vmul.f32 %v392, %v392
  %v409 = vmul.f32 %v393, %v393
  %v410 = vmul.f32 %v394, %v394
  %v411 = vmul.f32 %v395, %v395
  %v412 = vmul.f32 %v396, %v396
  %v413 = vmul.f32 %v397, %v397
  %v414 = vmul.f32 %v398, %v398
  %v415 = vmul.f32 %v399, %v399
  %v416 = vmul.f32 %v400, %v400
  %v417 = vmul.f32 %v401, %v401
  %v418 = vmul.f32 %v402, %v402
  %v419 = vmul.f32 %v403, %v403
  %v420 = vsel %vm349, %v404, 0.0
  %v421 = vsel %vm349, %v405, 0.0
  %v422 = vadd.f32 %v420, %v421
  %v423 = vsel %vm349, %v406, 0.0
  %v424 = vadd.f32 %v422, %v423
  %v425 = vsel %vm349, %v407, 0.0
  %v426 = vadd.f32 %v424, %v425
  %v427 = vsel %vm349, %v408, 0.0
  %v428 = vadd.f32 %v426, %v427
  %v429 = vsel %vm349, %v409, 0.0
  %v430 = vadd.f32 %v428, %v429
  %v431 = vsel %vm349, %v410, 0.0
  %v432 = vadd.f32 %v430, %v431
  %v433 = vsel %vm349, %v411, 0.0
  %v434 = vadd.f32 %v432, %v433
  %v435 = vsel %vm349, %v412, 0.0
  %v436 = vadd.f32 %v434, %v435
  %v437 = vsel %vm349, %v413, 0.0
  %v438 = vadd.f32 %v436, %v437
  %v439 = vsel %vm349, %v414, 0.0
  %v440 = vadd.f32 %v438, %v439
  %v441 = vsel %vm349, %v415, 0.0
  %v442 = vadd.f32 %v440, %v441
  %v443 = vsel %vm349, %v416, 0.0
  %v444 = vadd.f32 %v442, %v443
  %v445 = vsel %vm349, %v417, 0.0
  %v446 = vadd.f32 %v444, %v445
  %v447 = vsel %vm349, %v418, 0.0
  %v448 = vadd.f32 %v446, %v447
  %v449 = vsel %vm349, %v419, 0.0
  %v450 = vadd.f32 %v448, %v449
  %v451 = vrot.slane %v450, 4
  %v452 = vadd.f32 %v450, %v451
  %v453 = vrot.slane %v452, 2
  %v454 = vadd.f32 %v452, %v453
  %v455 = vrot.slane %v454, 1
  %v456 = vadd.f32 %v454, %v455
  %v457 = vmul.f32 %v456, 0.0078125
  %v458 = vld [vmem:[%s3] sm:$0x1]
  %v459 = vadd.f32 %v457, 1e-05
  %v460 = vrsqrt.pop %v459
  %v461 = vmul.f32 %v458, %v460
  %v463 = vlaneseq
  %v464 = vshrl.u32 %v463, 7
  %v465 = vsub.s32 0, %v464
  %v466 = vrot.slane %v461, %v465
  %v468 = vmul.f32 %v388, %v466
  %v469 = vmul.f32 %v389, %v466
  %v470 = vmul.f32 %v390, %v466
  %v471 = vmul.f32 %v391, %v466
  %v472 = vmul.f32 %v392, %v466
  %v473 = vmul.f32 %v393, %v466
  %v474 = vmul.f32 %v394, %v466
  %v475 = vmul.f32 %v395, %v466
  %v476 = vmul.f32 %v396, %v466
  %v477 = vmul.f32 %v397, %v466
  %v478 = vmul.f32 %v398, %v466
  %v479 = vmul.f32 %v399, %v466
  %v480 = vmul.f32 %v400, %v466
  %v481 = vmul.f32 %v401, %v466
  %v482 = vmul.f32 %v402, %v466
  %v483 = vmul.f32 %v403, %v466
  %v484 = vld [vmem:[%s4] sm:$0x1]
  %v486 = vlaneseq
  %v487 = vshrl.u32 %v486, 7
  %v488 = vsub.s32 0, %v487
  %v489 = vrot.slane %v484, %v488
  %v491 = vadd.f32 %v468, %v489
  %v492 = vadd.f32 %v469, %v489
  %v493 = vadd.f32 %v470, %v489
  %v494 = vadd.f32 %v471, %v489
  %v495 = vadd.f32 %v472, %v489
  %v496 = vadd.f32 %v473, %v489
  %v497 = vadd.f32 %v474, %v489
  %v498 = vadd.f32 %v475, %v489
  %v499 = vadd.f32 %v476, %v489
  %v500 = vadd.f32 %v477, %v489
  %v501 = vadd.f32 %v478, %v489
  %v502 = vadd.f32 %v479, %v489
  %v503 = vadd.f32 %v480, %v489
  %v504 = vadd.f32 %v481, %v489
  %v505 = vadd.f32 %v482, %v489
  %v506 = vadd.f32 %v483, %v489
  %vm507 = vcmp.gt.f32.partialorder %v491, 0.0
  %vm508 = vcmp.gt.f32.partialorder %v492, 0.0
  %vm509 = vcmp.gt.f32.partialorder %v493, 0.0
  %vm510 = vcmp.gt.f32.partialorder %v494, 0.0
  %vm511 = vcmp.gt.f32.partialorder %v495, 0.0
  %vm512 = vcmp.gt.f32.partialorder %v496, 0.0
  %vm513 = vcmp.gt.f32.partialorder %v497, 0.0
  %vm514 = vcmp.gt.f32.partialorder %v498, 0.0
  %vm515 = vcmp.gt.f32.partialorder %v499, 0.0
  %vm516 = vcmp.gt.f32.partialorder %v500, 0.0
  %vm517 = vcmp.gt.f32.partialorder %v501, 0.0
  %vm518 = vcmp.gt.f32.partialorder %v502, 0.0
  %vm519 = vcmp.gt.f32.partialorder %v503, 0.0
  %vm520 = vcmp.gt.f32.partialorder %v504, 0.0
  %vm521 = vcmp.gt.f32.partialorder %v505, 0.0
  %vm522 = vcmp.gt.f32.partialorder %v506, 0.0
  %v523 = vmul.f32 %v491, 0.2
  %v524 = vmul.f32 %v492, 0.2
  %v525 = vmul.f32 %v493, 0.2
  %v526 = vmul.f32 %v494, 0.2
  %v527 = vmul.f32 %v495, 0.2
  %v528 = vmul.f32 %v496, 0.2
  %v529 = vmul.f32 %v497, 0.2
  %v530 = vmul.f32 %v498, 0.2
  %v531 = vmul.f32 %v499, 0.2
  %v532 = vmul.f32 %v500, 0.2
  %v533 = vmul.f32 %v501, 0.2
  %v534 = vmul.f32 %v502, 0.2
  %v535 = vmul.f32 %v503, 0.2
  %v536 = vmul.f32 %v504, 0.2
  %v537 = vmul.f32 %v505, 0.2
  %v538 = vmul.f32 %v506, 0.2
  %v539 = vsel %vm507, %v491, %v523
  %v540 = vsel %vm508, %v492, %v524
  %v541 = vsel %vm509, %v493, %v525
  %v542 = vsel %vm510, %v494, %v526
  %v543 = vsel %vm511, %v495, %v527
  %v544 = vsel %vm512, %v496, %v528
  %v545 = vsel %vm513, %v497, %v529
  %v546 = vsel %vm514, %v498, %v530
  %v547 = vsel %vm515, %v499, %v531
  %v548 = vsel %vm516, %v500, %v532
  %v549 = vsel %vm517, %v501, %v533
  %v550 = vsel %vm518, %v502, %v534
  %v551 = vsel %vm519, %v503, %v535
  %v552 = vsel %vm520, %v504, %v536
  %v553 = vsel %vm521, %v505, %v537
  %v554 = vsel %vm522, %v506, %v538
  %v555 = vpack.c.bf16 %v540, %v539
  %v556 = vpack.c.bf16 %v542, %v541
  %v557 = vpack.c.bf16 %v544, %v543
  %v558 = vpack.c.bf16 %v546, %v545
  %v559 = vpack.c.bf16 %v548, %v547
  %v560 = vpack.c.bf16 %v550, %v549
  %v561 = vpack.c.bf16 %v552, %v551
  %v562 = vpack.c.bf16 %v554, %v553
  %v571 = vunpack.c.l.b16 %v555
  %v572 = vunpack.c.h.b16 %v555
  %v573 = vunpack.c.l.b16 %v556
  %v574 = vunpack.c.h.b16 %v556
  %v575 = vunpack.c.l.b16 %v557
  %v576 = vunpack.c.h.b16 %v557
  %v577 = vunpack.c.l.b16 %v558
  %v578 = vunpack.c.h.b16 %v558
  %v579 = vunpack.c.l.b16 %v559
  %v580 = vunpack.c.h.b16 %v559
  %v581 = vunpack.c.l.b16 %v560
  %v582 = vunpack.c.h.b16 %v560
  %v583 = vunpack.c.l.b16 %v561
  %v584 = vunpack.c.h.b16 %v561
  %v585 = vunpack.c.l.b16 %v562
  %v586 = vunpack.c.h.b16 %v562
  %v587 = vpack.c.b16 %v571, %v571
  %v588 = vpack.c.b16 %v572, %v572
  %v589 = vpack.c.b16 %v573, %v573
  %v590 = vpack.c.b16 %v574, %v574
  %v591 = vpack.c.b16 %v575, %v575
  %v592 = vpack.c.b16 %v576, %v576
  %v593 = vpack.c.b16 %v577, %v577
  %v594 = vpack.c.b16 %v578, %v578
  %v595 = vpack.c.b16 %v579, %v579
  %v596 = vpack.c.b16 %v580, %v580
  %v597 = vpack.c.b16 %v581, %v581
  %v598 = vpack.c.b16 %v582, %v582
  %v599 = vpack.c.b16 %v583, %v583
  %v600 = vpack.c.b16 %v584, %v584
  %v601 = vpack.c.b16 %v585, %v585
  %v602 = vpack.c.b16 %v586, %v586
  %vm619 = vcmask 257024
  %620 = vst.msk [vmem:[%s5] sm:$0xf] %vm619, %v587
  %621 = vst.msk [vmem:[%s5 + $0x4] sm:$0xf] %vm619, %v588
  %622 = vst.msk [vmem:[%s5 + $0x8] sm:$0xf] %vm619, %v589
  %623 = vst.msk [vmem:[%s5 + $0xc] sm:$0xf] %vm619, %v590
  %624 = vst.msk [vmem:[%s5 + $0x10] sm:$0xf] %vm619, %v591
  %625 = vst.msk [vmem:[%s5 + $0x14] sm:$0xf] %vm619, %v592
  %626 = vst.msk [vmem:[%s5 + $0x18] sm:$0xf] %vm619, %v593
  %627 = vst.msk [vmem:[%s5 + $0x1c] sm:$0xf] %vm619, %v594
  %628 = vst.msk [vmem:[%s5 + $0x20] sm:$0xf] %vm619, %v595
  %629 = vst.msk [vmem:[%s5 + $0x24] sm:$0xf] %vm619, %v596
  %630 = vst.msk [vmem:[%s5 + $0x28] sm:$0xf] %vm619, %v597
  %631 = vst.msk [vmem:[%s5 + $0x2c] sm:$0xf] %vm619, %v598
  %632 = vst.msk [vmem:[%s5 + $0x30] sm:$0xf] %vm619, %v599
  %633 = vst.msk [vmem:[%s5 + $0x34] sm:$0xf] %vm619, %v600
  %634 = vst.msk [vmem:[%s5 + $0x38] sm:$0xf] %vm619, %v601
  %635 = vst.msk [vmem:[%s5 + $0x3c] sm:$0xf] %vm619, %v602
  // Predicated region
  $region22: #{egan_discriminator_forward.6} parent=0 // pred_check
    _
  $region23: #{egan_discriminator_forward.6} parent=0 // pred_check_branch
    %637 = sbr.rel (0) target = $region25
  $region24: #{egan_discriminator_forward.6} parent=0 // pred_region
    _
  $region25: #{egan_discriminator_forward.6} parent=0 // pred_fallthru
    _
  // Predicated region
  $region26: #{egan_discriminator_forward.6} parent=0 // pred_check
    _
  $region27: #{egan_discriminator_forward.6} parent=0 // pred_check_branch
    %639 = sbr.rel (0) target = $region29
  $region28: #{egan_discriminator_forward.6} parent=0 // pred_region
    _
  $region29: #{egan_discriminator_forward.6} parent=0 // pred_fallthru
    _

// kernel: egan_discriminator_forward.7
$region0: #{egan_discriminator_forward.7}
  #allocation0 [shape = 'u32[]', space=smem, size = 0x4, offset = 0x4, fixed_abs, tag = 'smem constant byte address 0x4 - core index']
  #allocation1 [shape = 'u32[144,128]{1,0:T(1,128)}', space=vmem, size = 0x12000, scoped, tag = 'internal scratch']
  #allocation2 [shape = 'f32[1,1]{1,0:T(1,128)S(1)}', space=vmem, size = 0x200, scoped, tag = 'scoped memory for egan_discriminator_forward.7']
  %s0 = inlined_call_operand.vmem [shape: bf16[32,512], index: 0, kind: input, shape index: {}]
  %s1 = inlined_call_operand.vmem [shape: bf16[512,64], index: 1, kind: input, shape index: {}]
  %s2 = inlined_call_operand.vmem [shape: f32[1,64], index: 2, kind: input, shape index: {}]
  %s3 = inlined_call_operand.vmem [shape: f32[1,64], index: 3, kind: input, shape index: {}]
  %s4 = inlined_call_operand.vmem [shape: f32[1,64], index: 4, kind: input, shape index: {}]
  %s5 = inlined_call_operand.vmem [shape: f32[16,64], index: 5, kind: input, shape index: {}]
  %s6 = inlined_call_operand.<no memory space> [shape: f32[1,1], index: 6, kind: input, shape index: {}]
  %s7 = inlined_call_operand.vmem [shape: f32[2,1], index: 7, kind: output, shape index: {}]
  %s8 = sld [smem:[#allocation0]]
  $region38: #{egan_discriminator_forward.7} parent=0
    _
  %s10 = ssub.s32 1, %s8
  %s11 = scalar_select 0, %s10, %s8
  %v12 = vstv %s6
  %13 = vst [vmem:[#allocation2] sm:$0x1] %v12
  // Predicated region
  $region2: #{egan_discriminator_forward.7} parent=0 // pred_check
    _
  $region3: #{egan_discriminator_forward.7} parent=0 // pred_check_branch
    %15 = sbr.rel (0) target = $region5
  $region4: #{egan_discriminator_forward.7} parent=0 // pred_region
    _
  $region5: #{egan_discriminator_forward.7} parent=0 // pred_fallthru
    _
  // Predicated region
  $region6: #{egan_discriminator_forward.7} parent=0 // pred_check
    _
  $region7: #{egan_discriminator_forward.7} parent=0 // pred_check_branch
    %17 = sbr.rel (0) target = $region9
  $region8: #{egan_discriminator_forward.7} parent=0 // pred_region
    _
  $region9: #{egan_discriminator_forward.7} parent=0 // pred_fallthru
    _
  // Predicated region
  $region10: #{egan_discriminator_forward.7} parent=0 // pred_check
    _
  $region11: #{egan_discriminator_forward.7} parent=0 // pred_check_branch
    %19 = sbr.rel (0) target = $region13
  $region12: #{egan_discriminator_forward.7} parent=0 // pred_region
    _
  $region13: #{egan_discriminator_forward.7} parent=0 // pred_fallthru
    _
  // Predicated region
  $region14: #{egan_discriminator_forward.7} parent=0 // pred_check
    _
  $region15: #{egan_discriminator_forward.7} parent=0 // pred_check_branch
    %21 = sbr.rel (0) target = $region17
  $region16: #{egan_discriminator_forward.7} parent=0 // pred_region
    _
  $region17: #{egan_discriminator_forward.7} parent=0 // pred_fallthru
    _
  // Predicated region
  $region18: #{egan_discriminator_forward.7} parent=0 // pred_check
    _
  $region19: #{egan_discriminator_forward.7} parent=0 // pred_check_branch
    %23 = sbr.rel (0) target = $region21
  $region20: #{egan_discriminator_forward.7} parent=0 // pred_region
    _
  $region21: #{egan_discriminator_forward.7} parent=0 // pred_fallthru
    _
  // Predicated region
  $region22: #{egan_discriminator_forward.7} parent=0 // pred_check
    _
  $region23: #{egan_discriminator_forward.7} parent=0 // pred_check_branch
    %25 = sbr.rel (0) target = $region25
  $region24: #{egan_discriminator_forward.7} parent=0 // pred_region
    _
  $region25: #{egan_discriminator_forward.7} parent=0 // pred_fallthru
    _
  // Predicated region
  $region26: #{egan_discriminator_forward.7} parent=0 // pred_check
    _
  $region27: #{egan_discriminator_forward.7} parent=0 // pred_check_branch
    %27 = sbr.rel (0) target = $region29
  $region28: #{egan_discriminator_forward.7} parent=0 // pred_region
    _
  $region29: #{egan_discriminator_forward.7} parent=0 // pred_fallthru
    _
  %v29 = vld [vmem:[%s0] sm:$0xff]
  %v30 = vld [vmem:[%s0 + $0x8] sm:$0xff]
  %v31 = vld [vmem:[%s0 + $0x10] sm:$0xff]
  %v32 = vld [vmem:[%s0 + $0x18] sm:$0xff]
  %v33 = vld [vmem:[%s0 + $0x20] sm:$0xff]
  %v34 = vld [vmem:[%s0 + $0x28] sm:$0xff]
  %v35 = vld [vmem:[%s0 + $0x30] sm:$0xff]
  %v36 = vld [vmem:[%s0 + $0x38] sm:$0xff]
  %v37 = vld [vmem:[%s1] sm:$0xf]
  %v38 = vld [vmem:[%s1 + $0x4] sm:$0xf]
  %v39 = vld [vmem:[%s1 + $0x8] sm:$0xf]
  %v40 = vld [vmem:[%s1 + $0xc] sm:$0xf]
  %v41 = vld [vmem:[%s1 + $0x10] sm:$0xf]
  %v42 = vld [vmem:[%s1 + $0x14] sm:$0xf]
  %v43 = vld [vmem:[%s1 + $0x18] sm:$0xf]
  %v44 = vld [vmem:[%s1 + $0x1c] sm:$0xf]
  %v45 = vld [vmem:[%s1 + $0x20] sm:$0xf]
  %v46 = vld [vmem:[%s1 + $0x24] sm:$0xf]
  %v47 = vld [vmem:[%s1 + $0x28] sm:$0xf]
  %v48 = vld [vmem:[%s1 + $0x2c] sm:$0xf]
  %v49 = vld [vmem:[%s1 + $0x30] sm:$0xf]
  %v50 = vld [vmem:[%s1 + $0x34] sm:$0xf]
  %v51 = vld [vmem:[%s1 + $0x38] sm:$0xf]
  %v52 = vld [vmem:[%s1 + $0x3c] sm:$0xf]
  %v53 = vld [vmem:[%s1 + $0x40] sm:$0xf]
  %v54 = vld [vmem:[%s1 + $0x44] sm:$0xf]
  %v55 = vld [vmem:[%s1 + $0x48] sm:$0xf]
  %v56 = vld [vmem:[%s1 + $0x4c] sm:$0xf]
  %v57 = vld [vmem:[%s1 + $0x50] sm:$0xf]
  %v58 = vld [vmem:[%s1 + $0x54] sm:$0xf]
  %v59 = vld [vmem:[%s1 + $0x58] sm:$0xf]
  %v60 = vld [vmem:[%s1 + $0x5c] sm:$0xf]
  %v61 = vld [vmem:[%s1 + $0x60] sm:$0xf]
  %v62 = vld [vmem:[%s1 + $0x64] sm:$0xf]
  %v63 = vld [vmem:[%s1 + $0x68] sm:$0xf]
  %v64 = vld [vmem:[%s1 + $0x6c] sm:$0xf]
  %v65 = vld [vmem:[%s1 + $0x70] sm:$0xf]
  %v66 = vld [vmem:[%s1 + $0x74] sm:$0xf]
  %v67 = vld [vmem:[%s1 + $0x78] sm:$0xf]
  %v68 = vld [vmem:[%s1 + $0x7c] sm:$0xf]
  %v69 = vld [vmem:[%s1 + $0x80] sm:$0xf]
  %v70 = vld [vmem:[%s1 + $0x84] sm:$0xf]
  %v71 = vld [vmem:[%s1 + $0x88] sm:$0xf]
  %v72 = vld [vmem:[%s1 + $0x8c] sm:$0xf]
  %v73 = vld [vmem:[%s1 + $0x90] sm:$0xf]
  %v74 = vld [vmem:[%s1 + $0x94] sm:$0xf]
  %v75 = vld [vmem:[%s1 + $0x98] sm:$0xf]
  %v76 = vld [vmem:[%s1 + $0x9c] sm:$0xf]
  %v77 = vld [vmem:[%s1 + $0xa0] sm:$0xf]
  %v78 = vld [vmem:[%s1 + $0xa4] sm:$0xf]
  %v79 = vld [vmem:[%s1 + $0xa8] sm:$0xf]
  %v80 = vld [vmem:[%s1 + $0xac] sm:$0xf]
  %v81 = vld [vmem:[%s1 + $0xb0] sm:$0xf]
  %v82 = vld [vmem:[%s1 + $0xb4] sm:$0xf]
  %v83 = vld [vmem:[%s1 + $0xb8] sm:$0xf]
  %v84 = vld [vmem:[%s1 + $0xbc] sm:$0xf]
  %v85 = vld [vmem:[%s1 + $0xc0] sm:$0xf]
  %v86 = vld [vmem:[%s1 + $0xc4] sm:$0xf]
  %v87 = vld [vmem:[%s1 + $0xc8] sm:$0xf]
  %v88 = vld [vmem:[%s1 + $0xcc] sm:$0xf]
  %v89 = vld [vmem:[%s1 + $0xd0] sm:$0xf]
  %v90 = vld [vmem:[%s1 + $0xd4] sm:$0xf]
  %v91 = vld [vmem:[%s1 + $0xd8] sm:$0xf]
  %v92 = vld [vmem:[%s1 + $0xdc] sm:$0xf]
  %v93 = vld [vmem:[%s1 + $0xe0] sm:$0xf]
  %v94 = vld [vmem:[%s1 + $0xe4] sm:$0xf]
  %v95 = vld [vmem:[%s1 + $0xe8] sm:$0xf]
  %v96 = vld [vmem:[%s1 + $0xec] sm:$0xf]
  %v97 = vld [vmem:[%s1 + $0xf0] sm:$0xf]
  %v98 = vld [vmem:[%s1 + $0xf4] sm:$0xf]
  %v99 = vld [vmem:[%s1 + $0xf8] sm:$0xf]
  %v100 = vld [vmem:[%s1 + $0xfc] sm:$0xf]
  %v101 = vld [vmem:[%s2] sm:$0x1]
  %v103 = vlaneseq
  %v104 = vshrl.u32 %v103, 7
  %v105 = vsub.s32 0, %v104
  %v106 = vrot.slane %v101, %v105
  %v116 = vunpack.c.l.b16 %v29
  %v117 = vunpack.c.h.b16 %v29
  %v118 = vunpack.c.l.b16 %v30
  %v119 = vunpack.c.h.b16 %v30
  %v120 = vunpack.c.l.b16 %v31
  %v121 = vunpack.c.h.b16 %v31
  %v122 = vunpack.c.l.b16 %v32
  %v123 = vunpack.c.h.b16 %v32
  %v124 = vunpack.c.l.b16 %v33
  %v125 = vunpack.c.h.b16 %v33
  %v126 = vunpack.c.l.b16 %v34
  %v127 = vunpack.c.h.b16 %v34
  %v128 = vunpack.c.l.b16 %v35
  %v129 = vunpack.c.h.b16 %v35
  %v130 = vunpack.c.l.b16 %v36
  %v131 = vunpack.c.h.b16 %v36
  %v132 = vpack.c.b16 %v120, %v116
  %v133 = vpack.c.b16 %v121, %v117
  %v134 = vpack.c.b16 %v122, %v118
  %v135 = vpack.c.b16 %v123, %v119
  %v136 = vpack.c.b16 %v128, %v124
  %v137 = vpack.c.b16 %v129, %v125
  %v138 = vpack.c.b16 %v130, %v126
  %v139 = vpack.c.b16 %v131, %v127
  %v212 = vunpack.c.l.b16 %v37
  %v213 = vunpack.c.l.b16 %v38
  %v214 = vunpack.c.l.b16 %v39
  %v215 = vunpack.c.l.b16 %v40
  %v216 = vunpack.c.l.b16 %v41
  %v217 = vunpack.c.l.b16 %v42
  %v218 = vunpack.c.l.b16 %v43
  %v219 = vunpack.c.l.b16 %v44
  %v220 = vunpack.c.l.b16 %v45
  %v221 = vunpack.c.l.b16 %v46
  %v222 = vunpack.c.l.b16 %v47
  %v223 = vunpack.c.l.b16 %v48
  %v224 = vunpack.c.l.b16 %v49
  %v225 = vunpack.c.l.b16 %v50
  %v226 = vunpack.c.l.b16 %v51
  %v227 = vunpack.c.l.b16 %v52
  %v228 = vunpack.c.l.b16 %v53
  %v229 = vunpack.c.l.b16 %v54
  %v230 = vunpack.c.l.b16 %v55
  %v231 = vunpack.c.l.b16 %v56
  %v232 = vunpack.c.l.b16 %v57
  %v233 = vunpack.c.l.b16 %v58
  %v234 = vunpack.c.l.b16 %v59
  %v235 = vunpack.c.l.b16 %v60
  %v236 = vunpack.c.l.b16 %v61
  %v237 = vunpack.c.l.b16 %v62
  %v238 = vunpack.c.l.b16 %v63
  %v239 = vunpack.c.l.b16 %v64
  %v240 = vunpack.c.l.b16 %v65
  %v241 = vunpack.c.l.b16 %v66
  %v242 = vunpack.c.l.b16 %v67
  %v243 = vunpack.c.l.b16 %v68
  %v244 = vunpack.c.l.b16 %v69
  %v245 = vunpack.c.l.b16 %v70
  %v246 = vunpack.c.l.b16 %v71
  %v247 = vunpack.c.l.b16 %v72
  %v248 = vunpack.c.l.b16 %v73
  %v249 = vunpack.c.l.b16 %v74
  %v250 = vunpack.c.l.b16 %v75
  %v251 = vunpack.c.l.b16 %v76
  %v252 = vunpack.c.l.b16 %v77
  %v253 = vunpack.c.l.b16 %v78
  %v254 = vunpack.c.l.b16 %v79
  %v255 = vunpack.c.l.b16 %v80
  %v256 = vunpack.c.l.b16 %v81
  %v257 = vunpack.c.l.b16 %v82
  %v258 = vunpack.c.l.b16 %v83
  %v259 = vunpack.c.l.b16 %v84
  %v260 = vunpack.c.l.b16 %v85
  %v261 = vunpack.c.l.b16 %v86
  %v262 = vunpack.c.l.b16 %v87
  %v263 = vunpack.c.l.b16 %v88
  %v264 = vunpack.c.l.b16 %v89
  %v265 = vunpack.c.l.b16 %v90
  %v266 = vunpack.c.l.b16 %v91
  %v267 = vunpack.c.l.b16 %v92
  %v268 = vunpack.c.l.b16 %v93
  %v269 = vunpack.c.l.b16 %v94
  %v270 = vunpack.c.l.b16 %v95
  %v271 = vunpack.c.l.b16 %v96
  %v272 = vunpack.c.l.b16 %v97
  %v273 = vunpack.c.l.b16 %v98
  %v274 = vunpack.c.l.b16 %v99
  %v275 = vunpack.c.l.b16 %v100
  %v276 = vpack.c.b16 %v213, %v212
  %v277 = vpack.c.b16 %v215, %v214
  %v278 = vpack.c.b16 %v217, %v216
  %v279 = vpack.c.b16 %v219, %v218
  %v280 = vpack.c.b16 %v221, %v220
  %v281 = vpack.c.b16 %v223, %v222
  %v282 = vpack.c.b16 %v225, %v224
  %v283 = vpack.c.b16 %v227, %v226
  %v284 = vpack.c.b16 %v229, %v228
  %v285 = vpack.c.b16 %v231, %v230
  %v286 = vpack.c.b16 %v233, %v232
  %v287 = vpack.c.b16 %v235, %v234
  %v288 = vpack.c.b16 %v237, %v236
  %v289 = vpack.c.b16 %v239, %v238
  %v290 = vpack.c.b16 %v241, %v240
  %v291 = vpack.c.b16 %v243, %v242
  %v292 = vpack.c.b16 %v245, %v244
  %v293 = vpack.c.b16 %v247, %v246
  %v294 = vpack.c.b16 %v249, %v248
  %v295 = vpack.c.b16 %v251, %v250
  %v296 = vpack.c.b16 %v253, %v252
  %v297 = vpack.c.b16 %v255, %v254
  %v298 = vpack.c.b16 %v257, %v256
  %v299 = vpack.c.b16 %v259, %v258
  %v300 = vpack.c.b16 %v261, %v260
  %v301 = vpack.c.b16 %v263, %v262
  %v302 = vpack.c.b16 %v265, %v264
  %v303 = vpack.c.b16 %v267, %v266
  %v304 = vpack.c.b16 %v269, %v268
  %v305 = vpack.c.b16 %v271, %v270
  %v306 = vpack.c.b16 %v273, %v272
  %v307 = vpack.c.b16 %v275, %v274
  %340 = vmatprep.subr.bf16.mxu0 0
  %341 = vmatpush1.bf16.msra.mxu0 %v276
  %342 = vmatprep.subr.bf16.mxu0 0
  %343 = vmatpush1.bf16.msra.mxu0 %v277
  %344 = vmatprep.subr.bf16.mxu0 0
  %345 = vmatpush1.bf16.msra.mxu0 %v278
  %346 = vmatprep.subr.bf16.mxu0 0
  %347 = vmatpush1.bf16.msra.mxu0 %v279
  %348 = vmatprep.subr.bf16.mxu0 0
  %349 = vmatpush1.bf16.msra.mxu0 %v280
  %350 = vmatprep.subr.bf16.mxu0 0
  %351 = vmatpush1.bf16.msra.mxu0 %v281
  %352 = vmatprep.subr.bf16.mxu0 0
  %353 = vmatpush1.bf16.msra.mxu0 %v282
  %354 = vmatprep.subr.bf16.mxu0 0
  %355 = vmatpush1.bf16.msra.mxu0 %v283
  %356 = vmatprep.subr.bf16.mxu0 0
  %357 = vmatpush1.bf16.msra.mxu0 %v284
  %358 = vmatprep.subr.bf16.mxu0 0
  %359 = vmatpush1.bf16.msra.mxu0 %v285
  %360 = vmatprep.subr.bf16.mxu0 0
  %361 = vmatpush1.bf16.msra.mxu0 %v286
  %362 = vmatprep.subr.bf16.mxu0 0
  %363 = vmatpush1.bf16.msra.mxu0 %v287
  %364 = vmatprep.subr.bf16.mxu0 0
  %365 = vmatpush1.bf16.msra.mxu0 %v288
  %366 = vmatprep.subr.bf16.mxu0 0
  %367 = vmatpush1.bf16.msra.mxu0 %v289
  %368 = vmatprep.subr.bf16.mxu0 0
  %369 = vmatpush1.bf16.msra.mxu0 %v290
  %370 = vmatprep.subr.bf16.mxu0 0
  %371 = vmatpush1.bf16.msra.mxu0 %v291
  %372 = vmatprep.mubr.bf16.mxu0 %v133
  %373 = vmatmul.mubr.bf16.gmra.mrb[0].mxu0 %v132
  %v374 = vpop.f32.mrb[0].mxu0
  %v375 = vadd.f32 %v106, %v374
  %v376 = vpop.f32.mrb[0].mxu0
  %v377 = vpop.f32.mrb[0].mxu0
  %v378 = vadd.f32 %v106, %v377
  %v379 = vpop.f32.mrb[0].mxu0
  %380 = vmatprep.mubr.bf16.mxu0 %v137
  %381 = vmatmul.mubr.bf16.gmra.mrb[0].mxu0 %v136
  %v382 = vpop.f32.mrb[0].mxu0
  %v383 = vadd.f32 %v106, %v382
  %v384 = vpop.f32.mrb[0].mxu0
  %v385 = vpop.f32.mrb[0].mxu0
  %v386 = vadd.f32 %v106, %v385
  %v387 = vpop.f32.mrb[0].mxu0
  %388 = vdwg.mxu0
  %389 = vmatprep.subr.bf16.mxu0 0
  %390 = vmatpush1.bf16.msra.mxu0 %v292
  %391 = vmatprep.subr.bf16.mxu0 0
  %392 = vmatpush1.bf16.msra.mxu0 %v293
  %393 = vmatprep.subr.bf16.mxu0 0
  %394 = vmatpush1.bf16.msra.mxu0 %v294
  %395 = vmatprep.subr.bf16.mxu0 0
  %396 = vmatpush1.bf16.msra.mxu0 %v295
  %397 = vmatprep.subr.bf16.mxu0 0
  %398 = vmatpush1.bf16.msra.mxu0 %v296
  %399 = vmatprep.subr.bf16.mxu0 0
  %400 = vmatpush1.bf16.msra.mxu0 %v297
  %401 = vmatprep.subr.bf16.mxu0 0
  %402 = vmatpush1.bf16.msra.mxu0 %v298
  %403 = vmatprep.subr.bf16.mxu0 0
  %404 = vmatpush1.bf16.msra.mxu0 %v299
  %405 = vmatprep.subr.bf16.mxu0 0
  %406 = vmatpush1.bf16.msra.mxu0 %v300
  %407 = vmatprep.subr.bf16.mxu0 0
  %408 = vmatpush1.bf16.msra.mxu0 %v301
  %409 = vmatprep.subr.bf16.mxu0 0
  %410 = vmatpush1.bf16.msra.mxu0 %v302
  %411 = vmatprep.subr.bf16.mxu0 0
  %412 = vmatpush1.bf16.msra.mxu0 %v303
  %413 = vmatprep.subr.bf16.mxu0 0
  %414 = vmatpush1.bf16.msra.mxu0 %v304
  %415 = vmatprep.subr.bf16.mxu0 0
  %416 = vmatpush1.bf16.msra.mxu0 %v305
  %417 = vmatprep.subr.bf16.mxu0 0
  %418 = vmatpush1.bf16.msra.mxu0 %v306
  %419 = vmatprep.subr.bf16.mxu0 0
  %420 = vmatpush1.bf16.msra.mxu0 %v307
  %421 = vmatprep.mubr.bf16.mxu0 %v135
  %422 = vmatmul.mubr.bf16.gmra.mrb[0].mxu0 %v134
  %v423 = vpop.f32.mrb[0].mxu0
  %v424 = vadd.f32 %v375, %v423
  %v425 = vpop.f32.mrb[0].mxu0
  %v426 = vpop.f32.mrb[0].mxu0
  %v427 = vadd.f32 %v378, %v426
  %v428 = vpop.f32.mrb[0].mxu0
  %429 = vmatprep.mubr.bf16.mxu0 %v139
  %430 = vmatmul.mubr.bf16.gmra.mrb[0].mxu0 %v138
  %v431 = vpop.f32.mrb[0].mxu0
  %v432 = vadd.f32 %v383, %v431
  %v433 = vpop.f32.mrb[0].mxu0
  %v434 = vpop.f32.mrb[0].mxu0
  %v435 = vadd.f32 %v386, %v434
  %v436 = vpop.f32.mrb[0].mxu0
  %437 = vdwg.mxu0
  %vm438 = vcmask 523264
  %v439 = vsel %vm438, %v424, 0.0
  %v440 = vsel %vm438, %v427, 0.0
  %v441 = vadd.f32 %v439, %v440
  %v442 = vsel %vm438, %v432, 0.0
  %v443 = vadd.f32 %v441, %v442
  %v444 = vsel %vm438, %v435, 0.0
  %v445 = vadd.f32 %v443, %v444
  %v446 = vrot.slane %v445, 4
  %v447 = vadd.f32 %v445, %v446
  %v448 = vrot.slane %v447, 2
  %v449 = vadd.f32 %v447, %v448
  %v450 = vrot.slane %v449, 1
  %v451 = vadd.f32 %v449, %v450
  %v452 = vmul.f32 %v451, 0.03125
  %v453 = vsub.f32 %v424, %v452
  %v454 = vsub.f32 %v427, %v452
  %v455 = vsub.f32 %v432, %v452
  %v456 = vsub.f32 %v435, %v452
  %v457 = vmul.f32 %v453, %v453
  %v458 = vmul.f32 %v454, %v454
  %v459 = vmul.f32 %v455, %v455
  %v460 = vmul.f32 %v456, %v456
  %v461 = vsel %vm438, %v457, 0.0
  %v462 = vsel %vm438, %v458, 0.0
  %v463 = vadd.f32 %v461, %v462
  %v464 = vsel %vm438, %v459, 0.0
  %v465 = vadd.f32 %v463, %v464
  %v466 = vsel %vm438, %v460, 0.0
  %v467 = vadd.f32 %v465, %v466
  %v468 = vrot.slane %v467, 4
  %v469 = vadd.f32 %v467, %v468
  %v470 = vrot.slane %v469, 2
  %v471 = vadd.f32 %v469, %v470
  %v472 = vrot.slane %v471, 1
  %v473 = vadd.f32 %v471, %v472
  %v474 = vmul.f32 %v473, 0.03125
  %v475 = vld [vmem:[%s3] sm:$0x1]
  %v476 = vadd.f32 %v474, 1e-05
  %v477 = vrsqrt.pop %v476
  %v478 = vmul.f32 %v475, %v477
  %v480 = vlaneseq
  %v481 = vshrl.u32 %v480, 7
  %v482 = vsub.s32 0, %v481
  %v483 = vrot.slane %v478, %v482
  %v485 = vmul.f32 %v453, %v483
  %v486 = vmul.f32 %v454, %v483
  %v487 = vmul.f32 %v455, %v483
  %v488 = vmul.f32 %v456, %v483
  %v489 = vld [vmem:[%s4] sm:$0x1]
  %v491 = vlaneseq
  %v492 = vshrl.u32 %v491, 7
  %v493 = vsub.s32 0, %v492
  %v494 = vrot.slane %v489, %v493
  %v496 = vadd.f32 %v485, %v494
  %v497 = vadd.f32 %v486, %v494
  %v498 = vadd.f32 %v487, %v494
  %v499 = vadd.f32 %v488, %v494
  %vm500 = vcmp.gt.f32.partialorder %v496, 0.0
  %vm501 = vcmp.gt.f32.partialorder %v497, 0.0
  %vm502 = vcmp.gt.f32.partialorder %v498, 0.0
  %vm503 = vcmp.gt.f32.partialorder %v499, 0.0
  %v504 = vmul.f32 %v496, 0.2
  %v505 = vmul.f32 %v497, 0.2
  %v506 = vmul.f32 %v498, 0.2
  %v507 = vmul.f32 %v499, 0.2
  %v508 = vsel %vm500, %v496, %v504
  %v509 = vsel %vm501, %v497, %v505
  %v510 = vsel %vm502, %v498, %v506
  %v511 = vsel %vm503, %v499, %v507
  %v512 = vld [vmem:[%s5] sm:$0xff]
  %v513 = vld [vmem:[%s5 + $0x8] sm:$0xff]
  %v514 = vmul.f32 %v508, %v512
  %v515 = vmul.f32 %v509, %v513
  %v516 = vmul.f32 %v510, %v512
  %v517 = vmul.f32 %v511, %v513
  %v518 = vsel %vm438, %v514, 0.0
  %519 = vadd.xlane.f32.xlu0 %v518
  %v520 = vpop.xlane.xlu0 %519
  %v521 = vsel %vm438, %v515, 0.0
  %522 = vadd.xlane.f32.xlu0 %v521
  %v523 = vpop.xlane.xlu0 %522
  %v524 = vsel %vm438, %v516, 0.0
  %525 = vadd.xlane.f32.xlu0 %v524
  %v526 = vpop.xlane.xlu0 %525
  %v527 = vsel %vm438, %v517, 0.0
  %528 = vadd.xlane.f32.xlu0 %v527
  %v529 = vpop.xlane.xlu0 %528
  %v534 = vlaneseq
  %v535 = vand.u32 %v534, 127
  %v536 = vlaneseq
  %v537 = vshrl.u32 %v536, 7
  %v538 = vsub.s32 %v535, %v537
  %v539 = vrot.slane %v520, %v538
  %v540 = vadd.s32 %v535, 4294967288
  %v541 = vlaneseq
  %v542 = vshrl.u32 %v541, 7
  %v543 = vsub.s32 %v540, %v542
  %v544 = vrot.slane %v523, %v543
  %vm545 = vcmask 130112
  %v546 = vsel %vm545, %v544, %v539
  %v547 = vlaneseq
  %v548 = vshrl.u32 %v547, 7
  %v549 = vsub.s32 %v535, %v548
  %v550 = vrot.slane %v526, %v549
  %v551 = vlaneseq
  %v552 = vshrl.u32 %v551, 7
  %v553 = vsub.s32 %v540, %v552
  %v554 = vrot.slane %v529, %v553
  %v555 = vsel %vm545, %v554, %v550
  %vm556 = vcmask 1041409
  %v557 = vsel %vm556, %v555, %v546
  %vm559 = vcmask 123904
  %v560 = vsel %vm559, %v557, 0.0
  %561 = vadd.xlane.f32.xlu0 %v560
  %v562 = vpop.xlane.xlu0 %561
  %v563 = vld [vmem:[#allocation2] sm:$0x1]
  %v565 = vlaneseq
  %v566 = vshrl.u32 %v565, 7
  %v567 = vsub.s32 0, %v566
  %v568 = vrot.slane %v563, %v567
  %v570 = vadd.f32 %v562, %v568
  %vm571 = vcmask 1024
  %572 = vst.msk [vmem:[%s7] sm:$0x3] %vm571, %v570
  // Predicated region
  $region30: #{egan_discriminator_forward.7} parent=0 // pred_check
    _
  $region31: #{egan_discriminator_forward.7} parent=0 // pred_check_branch
    %574 = sbr.rel (0) target = $region33
  $region32: #{egan_discriminator_forward.7} parent=0 // pred_region
    _
  $region33: #{egan_discriminator_forward.7} parent=0 // pred_fallthru
    _
  // Predicated region
  $region34: #{egan_discriminator_forward.7} parent=0 // pred_check
    _
  $region35: #{egan_discriminator_forward.7} parent=0 // pred_check_branch
    %576 = sbr.rel (0) target = $region37
  $region36: #{egan_discriminator_forward.7} parent=0 // pred_region
    _
  $region37: #{egan_discriminator_forward.7} parent=0 // pred_fallthru
    _

</llo_original>
